<compile_context>
chip_gen: v7x
topology: tpu7x:2x2x1
jax: 0.10.0
libtpu: 0.0.40
codegen_flags: <defaults>
</compile_context>

<pallas_src>
import functools
import math

import jax
import jax.numpy as jnp
import numpy as np
from jax.experimental import pallas as pl
from jax.experimental.pallas import tpu as pltpu

# ----------------------------- configuration ------------------------------
N_VOCAB = 128          # original: 49408
N_EMBD = 64            # original: 768
N_TOKEN = 16           # original: 77
N_HEAD = 4             # original: 12
N_LAYERS = 2           # original: 12
D_HEAD = N_EMBD // N_HEAD
EPS = 1e-5             # nn.LayerNorm default eps


# ------------------------------ kernel code --------------------------------
def _layernorm(x, gamma, beta):
    # Single-pass E[x], E[x^2] reduction (half the cross-lane XLU work).
    mean = jnp.mean(x, axis=-1, keepdims=True)
    mean2 = jnp.mean(x * x, axis=-1, keepdims=True)
    var = mean2 - mean * mean
    inv = jax.lax.rsqrt(var + EPS)
    return (x - mean) * inv * gamma + beta


def clip_stack_kernel(x_ref,
                      ln1_g_ref, ln1_b_ref, wqkv_ref, bqkv_ref, wo_ref, bo_ref,
                      ln2_g_ref, ln2_b_ref, w1_ref, b1_ref, w2_ref, b2_ref,
                      lnf_g_ref, lnf_b_ref,
                      o_ref, *, n_head, n_layers):
    """One grid step = (one batch row) x (one CLIPLayer).

    The output block index depends only on the batch axis, so o_ref is the
    VMEM-resident residual stream carried across the layer ("arbitrary") axis.
    """
    layer = pl.program_id(1)
    bt, T, D = x_ref.shape
    assert bt == 1                      # one batch row per grid step
    d_head = D // n_head
    bf16 = jnp.bfloat16

    # Initialise the resident residual stream from the embedding at layer 0.
    @pl.when(layer == 0)
    def _():
        o_ref[...] = x_ref[...]

    x = o_ref[...].reshape(T, D)        # (T, D) f32 residual stream

    # ---- LayerNorm 1 + fused QKV projection (bf16 MXU, f32 accumulate) ----
    h = _layernorm(x, ln1_g_ref[0], ln1_b_ref[0])
    qkv = jnp.dot(h.astype(bf16), wqkv_ref[0],
                  preferred_element_type=jnp.float32) + bqkv_ref[0]
    # 1/sqrt(d_head) was folded into the q columns of wqkv/bqkv at prep time;
    # cast once here, no f32 scale multiply.
    qkv16 = qkv.astype(bf16)

    def to_heads(a):                    # (T, D) -> (H, T, d_head)
        return jnp.transpose(a.reshape(T, n_head, d_head), (1, 0, 2))

    q = to_heads(qkv16[:, 0 * D:1 * D])
    k = to_heads(qkv16[:, 1 * D:2 * D])
    v = to_heads(qkv16[:, 2 * D:3 * D])

    # Additive causal bias, shared across heads (single select, no per-head mask).
    row = jax.lax.broadcasted_iota(jnp.int32, (T, T), 0)
    col = jax.lax.broadcasted_iota(jnp.int32, (T, T), 1)
    causal_bias = jnp.where(col > row, jnp.float32(-1e30), jnp.float32(0.0))

    # Batched attention over heads: two batched matmuls instead of 2*H small ones.
    s = jnp.einsum('htd,hsd->hts', q, k,
                   preferred_element_type=jnp.float32)          # (H, T, T)
    s = s + causal_bias[None, :, :]
    m = jnp.max(s, axis=-1, keepdims=True)
    p = jnp.exp(s - m)
    p = p * pl.reciprocal(jnp.sum(p, axis=-1, keepdims=True), approx=True)
    pv = jnp.einsum('hts,hsd->htd', p.astype(bf16), v,
                    preferred_element_type=jnp.float32)         # (H, T, d_head)

    # Re-assemble heads along the lane axis, then ONE K = D output projection.
    ctx = jnp.transpose(pv, (1, 0, 2)).reshape(T, D)
    attn = jnp.dot(ctx.astype(bf16), wo_ref[0],
                   preferred_element_type=jnp.float32) + bo_ref[0]
    x = attn + x                        # attention residual

    # ---- LayerNorm 2 + MLP with quick-GELU (f32 elementwise, bf16 matmuls) ----
    h = _layernorm(x, ln2_g_ref[0], ln2_b_ref[0])
    h = jnp.dot(h.astype(bf16), w1_ref[0],
                preferred_element_type=jnp.float32) + b1_ref[0]
    h = h * jax.nn.sigmoid(1.702 * h)   # quick-GELU
    h = jnp.dot(h.astype(bf16), w2_ref[0],
                preferred_element_type=jnp.float32) + b2_ref[0]
    x = x + h                           # MLP residual

    @pl.when(layer < n_layers - 1)
    def _():
        o_ref[...] = x.reshape(1, T, D)

    @pl.when(layer == n_layers - 1)     # fused final LayerNorm
    def _():
        y = _layernorm(x, lnf_g_ref[...], lnf_b_ref[...])
        o_ref[...] = y.reshape(1, T, D)


# ------------------------------ wrappers ------------------------------------
def _vmem_limit_bytes():
    """~5/8 of physical VMEM, capped at 64 MiB (=> ~40 MiB on v7x, 64 MiB on v5e/v6e)."""
    try:
        phys = getattr(pltpu.get_tpu_info(), 'vmem_capacity_bytes',
                       128 * 1024 * 1024)
    except Exception:
        phys = 128 * 1024 * 1024
    return int(min(phys * 5 // 8, 64 * 1024 * 1024))


def clip_transformer(x, kp):
    """All layers + final LayerNorm in a single pallas_call, grid = (B, L)."""
    B, T, D = x.shape
    L = kp['wqkv'].shape[0]

    def act_spec():
        return pl.BlockSpec((1, T, D), lambda b, l: (b, 0, 0))

    def layer_spec(a):                  # stacked per-layer tensor (L, ...)
        n_trail = a.ndim - 1
        return pl.BlockSpec((1,) + a.shape[1:],
                            lambda b, l, n=n_trail: (l,) + (0,) * n)

    def const_spec(a):                  # grid-invariant tensor
        n = a.ndim
        return pl.BlockSpec(a.shape, lambda b, l, n=n: (0,) * n)

    layer_args = [kp['ln1_g'], kp['ln1_b'], kp['wqkv'], kp['bqkv'],
                  kp['wo'], kp['bo'], kp['ln2_g'], kp['ln2_b'],
                  kp['w1'], kp['b1'], kp['w2'], kp['b2']]
    const_args = [kp['ln_f_g'], kp['ln_f_b']]

    kernel = functools.partial(clip_stack_kernel, n_head=N_HEAD, n_layers=L)
    return pl.pallas_call(
        kernel,
        out_shape=jax.ShapeDtypeStruct((B, T, D), jnp.float32),
        grid=(B, L),
        in_specs=([act_spec()]
                  + [layer_spec(a) for a in layer_args]
                  + [const_spec(a) for a in const_args]),
        out_specs=act_spec(),
        compiler_params=pltpu.CompilerParams(
            dimension_semantics=("parallel", "arbitrary"),
            vmem_limit_bytes=_vmem_limit_bytes()),
    )(x, *layer_args, *const_args)


def clip_forward(tokens, kp):
    # CLIPEmbedding: token gather + positional add.
    # TODO(synk): the embedding gather has no clean rectangular BlockSpec; it is
    # left to XLA as a plain gather outside the kernel.
    x = kp['tok_emb'][tokens] + kp['pos_emb']                    # (B, T, D)
    return clip_transformer(x, kp)


def prepare_params(params):
    """One-time prep: stack per-layer weights, fold 1/sqrt(d_head) into the q
    columns of wqkv/bqkv, and pre-cast matmul weights to bf16 (done once, not
    per forward pass)."""
    bf16 = jnp.bfloat16
    D = N_EMBD
    scale = jnp.float32(1.0 / math.sqrt(D_HEAD))

    def stack(name):
        return jnp.stack([lp[name] for lp in params['layers']])

    wqkv = stack('wqkv')                                         # (L, D, 3D)
    bqkv = stack('bqkv')                                         # (L, 1, 3D)
    wqkv = wqkv.at[:, :, :D].multiply(scale)
    bqkv = bqkv.at[:, :, :D].multiply(scale)

    return {
        'tok_emb': params['tok_emb'],
        'pos_emb': params['pos_emb'],
        'ln_f_g': params['ln_f_g'], 'ln_f_b': params['ln_f_b'],
        'ln1_g': stack('ln1_g'), 'ln1_b': stack('ln1_b'),
        'wqkv': wqkv.astype(bf16), 'bqkv': bqkv,
        'wo': stack('wo').astype(bf16), 'bo': stack('bo'),
        'ln2_g': stack('ln2_g'), 'ln2_b': stack('ln2_b'),
        'w1': stack('w1').astype(bf16), 'b1': stack('b1'),
        'w2': stack('w2').astype(bf16), 'b2': stack('b2'),
    }


# --------------------------- pure-JAX reference ------------------------------
def _ln_ref(x, g, b):
    mean = x.mean(-1, keepdims=True)
    var = ((x - mean) ** 2).mean(-1, keepdims=True)
    return (x - mean) / jnp.sqrt(var + EPS) * g + b


def _q(a):
    # Simulate the kernel's bf16 matmul operands (f32 accumulation is kept).
    return a.astype(jnp.bfloat16).astype(jnp.float32)


def clip_reference(tokens, params):
    hp = jax.lax.Precision.HIGHEST
    x = params['tok_emb'][tokens] + params['pos_emb']
    B, T, D = x.shape
    mask = jnp.triu(jnp.ones((T, T), bool), 1)
    scale = 1.0 / math.sqrt(D_HEAD)
    for p in params['layers']:
        res = x
        h = _ln_ref(x, p['ln1_g'], p['ln1_b'])
        qkv = jnp.matmul(_q(h), _q(p['wqkv']), precision=hp) + p['bqkv']
        q, k, v = jnp.split(qkv, 3, axis=-1)
        to_heads = lambda a: a.reshape(B, T, N_HEAD, D_HEAD).transpose(0, 2, 1, 3)
        q, k, v = to_heads(q * scale), to_heads(k), to_heads(v)
        s = jnp.matmul(_q(q), _q(k).transpose(0, 1, 3, 2), precision=hp)
        s = jnp.where(mask, -jnp.inf, s)
        w = jax.nn.softmax(s, axis=-1)
        o = jnp.matmul(_q(w), _q(v), precision=hp)
        o = o.transpose(0, 2, 1, 3).reshape(B, T, D)
        o = jnp.matmul(_q(o), _q(p['wo']), precision=hp) + p['bo']
        x = o + res
        res = x
        h = _ln_ref(x, p['ln2_g'], p['ln2_b'])
        h = jnp.matmul(_q(h), _q(p['w1']), precision=hp) + p['b1']
        h = h * jax.nn.sigmoid(1.702 * h)
        h = jnp.matmul(_q(h), _q(p['w2']), precision=hp) + p['b2']
        x = h + res
    return _ln_ref(x, params['ln_f_g'], params['ln_f_b'])


# ----------------------------- parameter init --------------------------------
def init_params(key):
    def normal(k, shape, scale=0.02):
        return scale * jax.random.normal(k, shape, jnp.float32)

    keys = jax.random.split(key, 4 + N_LAYERS)
    params = {
        'tok_emb': normal(keys[0], (N_VOCAB, N_EMBD)),
        'pos_emb': normal(keys[1], (N_TOKEN, N_EMBD)),
        'ln_f_g': 1.0 + normal(keys[2], (1, N_EMBD)),
        'ln_f_b': normal(keys[3], (1, N_EMBD)),
        'layers': [],
    }
    for i in range(N_LAYERS):
        lk = jax.random.split(keys[4 + i], 12)
        params['layers'].append({
            'ln1_g': 1.0 + normal(lk[0], (1, N_EMBD)),
            'ln1_b': normal(lk[1], (1, N_EMBD)),
            'wqkv': normal(lk[2], (N_EMBD, 3 * N_EMBD)),
            'bqkv': normal(lk[3], (1, 3 * N_EMBD)),
            'wo': normal(lk[4], (N_EMBD, N_EMBD)),
            'bo': normal(lk[5], (1, N_EMBD)),
            'ln2_g': 1.0 + normal(lk[6], (1, N_EMBD)),
            'ln2_b': normal(lk[7], (1, N_EMBD)),
            'w1': normal(lk[8], (N_EMBD, 4 * N_EMBD)),
            'b1': normal(lk[9], (1, 4 * N_EMBD)),
            'w2': normal(lk[10], (4 * N_EMBD, N_EMBD)),
            'b2': normal(lk[11], (1, N_EMBD)),
        })
    return params


# ---------------------------------- main -------------------------------------
if __name__ == "__main__":
    key = jax.random.PRNGKey(0)
    pkey, tkey = jax.random.split(key)
    params = init_params(pkey)
    kparams = jax.block_until_ready(prepare_params(params))   # one-time prep

    B = 2
    tokens = jax.random.randint(tkey, (B, N_TOKEN), 0, N_VOCAB, dtype=jnp.int32)

    fwd = jax.jit(clip_forward)
    out = jax.block_until_ready(fwd(tokens, kparams))

    ref = clip_reference(tokens, params)
    # Tolerance covers bf16 matmul operands, scale-folded weights, and the
    # approx-reciprocal softmax normalization.
    np.testing.assert_allclose(np.asarray(out), np.asarray(ref),
                               rtol=1e-2, atol=2e-2)

    print("KERNEL_OK")
</pallas_src>

<mosaic_0001>
module attributes {stable_mosaic.version = 11 : i64} {
  func.func @clip_stack_kernel(%arg0: i32, %arg1: i32, %arg2: memref<1x16x64xf32, #tpu.memory_space<vmem>>, %arg3: memref<1x1x64xf32, #tpu.memory_space<vmem>>, %arg4: memref<1x1x64xf32, #tpu.memory_space<vmem>>, %arg5: memref<1x64x192xbf16, #tpu.memory_space<vmem>>, %arg6: memref<1x1x192xf32, #tpu.memory_space<vmem>>, %arg7: memref<1x64x64xbf16, #tpu.memory_space<vmem>>, %arg8: memref<1x1x64xf32, #tpu.memory_space<vmem>>, %arg9: memref<1x1x64xf32, #tpu.memory_space<vmem>>, %arg10: memref<1x1x64xf32, #tpu.memory_space<vmem>>, %arg11: memref<1x64x256xbf16, #tpu.memory_space<vmem>>, %arg12: memref<1x1x256xf32, #tpu.memory_space<vmem>>, %arg13: memref<1x256x64xbf16, #tpu.memory_space<vmem>>, %arg14: memref<1x1x64xf32, #tpu.memory_space<vmem>>, %arg15: memref<1x64xf32, #tpu.memory_space<vmem>>, %arg16: memref<1x64xf32, #tpu.memory_space<vmem>>, %arg17: memref<1x16x64xf32, #tpu.memory_space<vmem>>) attributes {dimension_semantics = [#tpu.dimension_semantics<parallel>, #tpu.dimension_semantics<arbitrary>], iteration_bounds = array<i64: 2, 2>, scalar_prefetch = 0 : i64, scratch_operands = 0 : i64, tpu.core_type = #tpu.core_type<tc>, window_params = [{transform_indices = @transform_0, window_bounds = array<i64: 1, 16, 64>}, {transform_indices = @transform_1, window_bounds = array<i64: 1, 1, 64>}, {transform_indices = @transform_2, window_bounds = array<i64: 1, 1, 64>}, {transform_indices = @transform_3, window_bounds = array<i64: 1, 64, 192>}, {transform_indices = @transform_4, window_bounds = array<i64: 1, 1, 192>}, {transform_indices = @transform_5, window_bounds = array<i64: 1, 64, 64>}, {transform_indices = @transform_6, window_bounds = array<i64: 1, 1, 64>}, {transform_indices = @transform_7, window_bounds = array<i64: 1, 1, 64>}, {transform_indices = @transform_8, window_bounds = array<i64: 1, 1, 64>}, {transform_indices = @transform_9, window_bounds = array<i64: 1, 64, 256>}, {transform_indices = @transform_10, window_bounds = array<i64: 1, 1, 256>}, {transform_indices = @transform_11, window_bounds = array<i64: 1, 256, 64>}, {transform_indices = @transform_12, window_bounds = array<i64: 1, 1, 64>}, {pipeline_mode = #tpu.pipeline_mode<synchronous>, transform_indices = @transform_13, window_bounds = array<i64: 1, 64>}, {pipeline_mode = #tpu.pipeline_mode<synchronous>, transform_indices = @transform_14, window_bounds = array<i64: 1, 64>}, {transform_indices = @transform_15, window_bounds = array<i64: 1, 16, 64>}]} {
    %c0_i32 = arith.constant 0 : i32
    %0 = arith.cmpi eq, %arg1, %c0_i32 : i32
    %1 = arith.extui %0 : i1 to i32
    %c0_i32_0 = arith.constant 0 : i32
    %2 = arith.cmpi ne, %1, %c0_i32_0 : i32
    scf.if %2 {
      %c0_63 = arith.constant 0 : index
      %c0_64 = arith.constant 0 : index
      %c0_65 = arith.constant 0 : index
      %139 = vector.load %arg2[%c0_63, %c0_64, %c0_65] : memref<1x16x64xf32, #tpu.memory_space<vmem>>, vector<1x16x64xf32>
      %c0_66 = arith.constant 0 : index
      %c0_67 = arith.constant 0 : index
      %c0_68 = arith.constant 0 : index
      %140 = vector.load %arg17[%c0_66, %c0_67, %c0_68] : memref<1x16x64xf32, #tpu.memory_space<vmem>>, vector<1x16x64xf32>
      tpu.vector_store %arg17[%c0_66, %c0_67, %c0_68], %139 {strides = array<i32>} : memref<1x16x64xf32, #tpu.memory_space<vmem>>, vector<1x16x64xf32>,
    } else {
    }
    %c0 = arith.constant 0 : index
    %c0_1 = arith.constant 0 : index
    %c0_2 = arith.constant 0 : index
    %3 = vector.load %arg17[%c0, %c0_1, %c0_2] : memref<1x16x64xf32, #tpu.memory_space<vmem>>, vector<1x16x64xf32>
    %4 = vector.shape_cast %3 : vector<1x16x64xf32> to vector<16x64xf32>
    %c0_3 = arith.constant 0 : index
    %c0_4 = arith.constant 0 : index
    %c0_5 = arith.constant 0 : index
    %5 = vector.load %arg3[%c0_3, %c0_4, %c0_5] : memref<1x1x64xf32, #tpu.memory_space<vmem>>, vector<1x1x64xf32>
    %6 = vector.shape_cast %5 : vector<1x1x64xf32> to vector<1x64xf32>
    %c0_6 = arith.constant 0 : index
    %c0_7 = arith.constant 0 : index
    %c0_8 = arith.constant 0 : index
    %7 = vector.load %arg4[%c0_6, %c0_7, %c0_8] : memref<1x1x64xf32, #tpu.memory_space<vmem>>, vector<1x1x64xf32>
    %8 = vector.shape_cast %7 : vector<1x1x64xf32> to vector<1x64xf32>
    %cst = arith.constant dense<0.000000e+00> : vector<16xf32>
    %9 = vector.multi_reduction <add>, %4, %cst [1] : vector<16x64xf32> to vector<16xf32>
    %10 = vector.shape_cast %9 : vector<16xf32> to vector<16x1xf32>
    %cst_9 = arith.constant 6.400000e+01 : f32
    %11 = vector.broadcast %cst_9 : f32 to vector<16x1xf32>
    %12 = arith.divf %10, %11 : vector<16x1xf32>
    %13 = arith.mulf %4, %4 : vector<16x64xf32>
    %cst_10 = arith.constant dense<0.000000e+00> : vector<16xf32>
    %14 = vector.multi_reduction <add>, %13, %cst_10 [1] : vector<16x64xf32> to vector<16xf32>
    %15 = vector.shape_cast %14 : vector<16xf32> to vector<16x1xf32>
    %cst_11 = arith.constant 6.400000e+01 : f32
    %16 = vector.broadcast %cst_11 : f32 to vector<16x1xf32>
    %17 = arith.divf %15, %16 : vector<16x1xf32>
    %18 = arith.mulf %12, %12 : vector<16x1xf32>
    %19 = arith.subf %17, %18 : vector<16x1xf32>
    %cst_12 = arith.constant 9.99999974E-6 : f32
    %20 = vector.broadcast %cst_12 : f32 to vector<16x1xf32>
    %21 = arith.addf %19, %20 : vector<16x1xf32>
    %22 = math.rsqrt %21 : vector<16x1xf32>
    %23 = vector.broadcast %12 : vector<16x1xf32> to vector<16x64xf32>
    %24 = arith.subf %4, %23 : vector<16x64xf32>
    %25 = vector.broadcast %22 : vector<16x1xf32> to vector<16x64xf32>
    %26 = arith.mulf %24, %25 : vector<16x64xf32>
    %27 = vector.broadcast %6 : vector<1x64xf32> to vector<16x64xf32>
    %28 = arith.mulf %26, %27 : vector<16x64xf32>
    %29 = vector.broadcast %8 : vector<1x64xf32> to vector<16x64xf32>
    %30 = arith.addf %28, %29 : vector<16x64xf32>
    %31 = arith.truncf %30 : vector<16x64xf32> to vector<16x64xbf16>
    %c0_13 = arith.constant 0 : index
    %c0_14 = arith.constant 0 : index
    %c0_15 = arith.constant 0 : index
    %32 = vector.load %arg5[%c0_13, %c0_14, %c0_15] : memref<1x64x192xbf16, #tpu.memory_space<vmem>>, vector<1x64x192xbf16>
    %33 = vector.shape_cast %32 : vector<1x64x192xbf16> to vector<64x192xbf16>
    %cst_16 = arith.constant dense<0.000000e+00> : vector<16x192xf32>
    %34 = tpu.matmul %31, %33, %cst_16 {dimension_numbers = #tpu.dot_dimension_numbers<[1], [0], [0], [1], [0, 0, 1, 1], [], []>} : vector<16x64xbf16>, vector<64x192xbf16>, vector<16x192xf32> -> vector<16x192xf32>
    %c0_17 = arith.constant 0 : index
    %c0_18 = arith.constant 0 : index
    %c0_19 = arith.constant 0 : index
    %35 = vector.load %arg6[%c0_17, %c0_18, %c0_19] : memref<1x1x192xf32, #tpu.memory_space<vmem>>, vector<1x1x192xf32>
    %36 = vector.shape_cast %35 : vector<1x1x192xf32> to vector<1x192xf32>
    %37 = vector.broadcast %36 : vector<1x192xf32> to vector<16x192xf32>
    %38 = arith.addf %34, %37 : vector<16x192xf32>
    %39 = arith.truncf %38 : vector<16x192xf32> to vector<16x192xbf16>
    %40 = vector.extract_strided_slice %39 {offsets = [0, 0], sizes = [16, 64], strides = [1, 1]} : vector<16x192xbf16> to vector<16x64xbf16>
    %41 = vector.shape_cast %40 : vector<16x64xbf16> to vector<16x4x16xbf16>
    %42 = tpu.transpose %41, [1, 0, 2] : vector<16x4x16xbf16> -> vector<4x16x16xbf16>
    %43 = vector.extract_strided_slice %39 {offsets = [0, 64], sizes = [16, 64], strides = [1, 1]} : vector<16x192xbf16> to vector<16x64xbf16>
    %44 = vector.shape_cast %43 : vector<16x64xbf16> to vector<16x4x16xbf16>
    %45 = tpu.transpose %44, [1, 0, 2] : vector<16x4x16xbf16> -> vector<4x16x16xbf16>
    %46 = vector.extract_strided_slice %39 {offsets = [0, 128], sizes = [16, 64], strides = [1, 1]} : vector<16x192xbf16> to vector<16x64xbf16>
    %47 = vector.shape_cast %46 : vector<16x64xbf16> to vector<16x4x16xbf16>
    %48 = tpu.transpose %47, [1, 0, 2] : vector<16x4x16xbf16> -> vector<4x16x16xbf16>
    %49 = tpu.iota {dimensions = array<i32: 0>} : vector<16x16xi32>
    %50 = tpu.iota {dimensions = array<i32: 1>} : vector<16x16xi32>
    %51 = arith.cmpi sgt, %50, %49 : vector<16x16xi32>
    %cst_20 = arith.constant -1.000000e+30 : f32
    %cst_21 = arith.constant 0.000000e+00 : f32
    %52 = vector.broadcast %cst_20 : f32 to vector<16x16xf32>
    %53 = vector.broadcast %cst_21 : f32 to vector<16x16xf32>
    %54 = arith.select %51, %52, %53 : vector<16x16xi1>, vector<16x16xf32>
    "tpu.trace_start"() <{level = 10 : i32, message = "htd,hsd->hts"}> : () -> ()
    %cst_22 = arith.constant dense<0.000000e+00> : vector<4x16x16xf32>
    %55 = tpu.matmul %42, %45, %cst_22 {dimension_numbers = #tpu.dot_dimension_numbers<[2], [2], [1], [1], [0, 0, 0, 1, 1, 1], [0], [0]>} : vector<4x16x16xbf16>, vector<4x16x16xbf16>, vector<4x16x16xf32> -> vector<4x16x16xf32>
    "tpu.trace_stop"() : () -> ()
    %56 = vector.shape_cast %54 : vector<16x16xf32> to vector<1x16x16xf32>
    %57 = vector.broadcast %56 : vector<1x16x16xf32> to vector<4x16x16xf32>
    %58 = arith.addf %55, %57 : vector<4x16x16xf32>
    %cst_23 = arith.constant dense<0xFF800000> : vector<4x16xf32>
    %59 = vector.multi_reduction <maximumf>, %58, %cst_23 [2] : vector<4x16x16xf32> to vector<4x16xf32>
    %60 = vector.shape_cast %59 : vector<4x16xf32> to vector<4x16x1xf32>
    %61 = vector.broadcast %60 : vector<4x16x1xf32> to vector<4x16x16xf32>
    %62 = arith.subf %58, %61 : vector<4x16x16xf32>
    %63 = math.exp %62 : vector<4x16x16xf32>
    %cst_24 = arith.constant dense<0.000000e+00> : vector<4x16xf32>
    %64 = vector.multi_reduction <add>, %63, %cst_24 [2] : vector<4x16x16xf32> to vector<4x16xf32>
    %65 = vector.shape_cast %64 : vector<4x16xf32> to vector<4x16x1xf32>
    %66 = tpu.reciprocal %65 {approx = true} : vector<4x16x1xf32> -> vector<4x16x1xf32>
    %67 = vector.broadcast %66 : vector<4x16x1xf32> to vector<4x16x16xf32>
    %68 = arith.mulf %63, %67 : vector<4x16x16xf32>
    %69 = arith.truncf %68 : vector<4x16x16xf32> to vector<4x16x16xbf16>
    "tpu.trace_start"() <{level = 10 : i32, message = "hts,hsd->htd"}> : () -> ()
    %cst_25 = arith.constant dense<0.000000e+00> : vector<4x16x16xf32>
    %70 = tpu.matmul %69, %48, %cst_25 {dimension_numbers = #tpu.dot_dimension_numbers<[2], [1], [1], [2], [0, 0, 0, 1, 1, 2], [0], [0]>} : vector<4x16x16xbf16>, vector<4x16x16xbf16>, vector<4x16x16xf32> -> vector<4x16x16xf32>
    "tpu.trace_stop"() : () -> ()
    %71 = tpu.transpose %70, [1, 0, 2] : vector<4x16x16xf32> -> vector<16x4x16xf32>
    %72 = vector.shape_cast %71 : vector<16x4x16xf32> to vector<16x64xf32>
    %73 = arith.truncf %72 : vector<16x64xf32> to vector<16x64xbf16>
    %c0_26 = arith.constant 0 : index
    %c0_27 = arith.constant 0 : index
    %c0_28 = arith.constant 0 : index
    %74 = vector.load %arg7[%c0_26, %c0_27, %c0_28] : memref<1x64x64xbf16, #tpu.memory_space<vmem>>, vector<1x64x64xbf16>
    %75 = vector.shape_cast %74 : vector<1x64x64xbf16> to vector<64x64xbf16>
    %cst_29 = arith.constant dense<0.000000e+00> : vector<16x64xf32>
    %76 = tpu.matmul %73, %75, %cst_29 {dimension_numbers = #tpu.dot_dimension_numbers<[1], [0], [0], [1], [0, 0, 1, 1], [], []>} : vector<16x64xbf16>, vector<64x64xbf16>, vector<16x64xf32> -> vector<16x64xf32>
    %c0_30 = arith.constant 0 : index
    %c0_31 = arith.constant 0 : index
    %c0_32 = arith.constant 0 : index
    %77 = vector.load %arg8[%c0_30, %c0_31, %c0_32] : memref<1x1x64xf32, #tpu.memory_space<vmem>>, vector<1x1x64xf32>
    %78 = vector.shape_cast %77 : vector<1x1x64xf32> to vector<1x64xf32>
    %79 = vector.broadcast %78 : vector<1x64xf32> to vector<16x64xf32>
    %80 = arith.addf %76, %79 : vector<16x64xf32>
    %81 = arith.addf %80, %4 : vector<16x64xf32>
    %c0_33 = arith.constant 0 : index
    %c0_34 = arith.constant 0 : index
    %c0_35 = arith.constant 0 : index
    %82 = vector.load %arg9[%c0_33, %c0_34, %c0_35] : memref<1x1x64xf32, #tpu.memory_space<vmem>>, vector<1x1x64xf32>
    %83 = vector.shape_cast %82 : vector<1x1x64xf32> to vector<1x64xf32>
    %c0_36 = arith.constant 0 : index
    %c0_37 = arith.constant 0 : index
    %c0_38 = arith.constant 0 : index
    %84 = vector.load %arg10[%c0_36, %c0_37, %c0_38] : memref<1x1x64xf32, #tpu.memory_space<vmem>>, vector<1x1x64xf32>
    %85 = vector.shape_cast %84 : vector<1x1x64xf32> to vector<1x64xf32>
    %cst_39 = arith.constant dense<0.000000e+00> : vector<16xf32>
    %86 = vector.multi_reduction <add>, %81, %cst_39 [1] : vector<16x64xf32> to vector<16xf32>
    %87 = vector.shape_cast %86 : vector<16xf32> to vector<16x1xf32>
    %cst_40 = arith.constant 6.400000e+01 : f32
    %88 = vector.broadcast %cst_40 : f32 to vector<16x1xf32>
    %89 = arith.divf %87, %88 : vector<16x1xf32>
    %90 = arith.mulf %81, %81 : vector<16x64xf32>
    %cst_41 = arith.constant dense<0.000000e+00> : vector<16xf32>
    %91 = vector.multi_reduction <add>, %90, %cst_41 [1] : vector<16x64xf32> to vector<16xf32>
    %92 = vector.shape_cast %91 : vector<16xf32> to vector<16x1xf32>
    %cst_42 = arith.constant 6.400000e+01 : f32
    %93 = vector.broadcast %cst_42 : f32 to vector<16x1xf32>
    %94 = arith.divf %92, %93 : vector<16x1xf32>
    %95 = arith.mulf %89, %89 : vector<16x1xf32>
    %96 = arith.subf %94, %95 : vector<16x1xf32>
    %cst_43 = arith.constant 9.99999974E-6 : f32
    %97 = vector.broadcast %cst_43 : f32 to vector<16x1xf32>
    %98 = arith.addf %96, %97 : vector<16x1xf32>
    %99 = math.rsqrt %98 : vector<16x1xf32>
    %100 = vector.broadcast %89 : vector<16x1xf32> to vector<16x64xf32>
    %101 = arith.subf %81, %100 : vector<16x64xf32>
    %102 = vector.broadcast %99 : vector<16x1xf32> to vector<16x64xf32>
    %103 = arith.mulf %101, %102 : vector<16x64xf32>
    %104 = vector.broadcast %83 : vector<1x64xf32> to vector<16x64xf32>
    %105 = arith.mulf %103, %104 : vector<16x64xf32>
    %106 = vector.broadcast %85 : vector<1x64xf32> to vector<16x64xf32>
    %107 = arith.addf %105, %106 : vector<16x64xf32>
    %108 = arith.truncf %107 : vector<16x64xf32> to vector<16x64xbf16>
    %c0_44 = arith.constant 0 : index
    %c0_45 = arith.constant 0 : index
    %c0_46 = arith.constant 0 : index
    %109 = vector.load %arg11[%c0_44, %c0_45, %c0_46] : memref<1x64x256xbf16, #tpu.memory_space<vmem>>, vector<1x64x256xbf16>
    %110 = vector.shape_cast %109 : vector<1x64x256xbf16> to vector<64x256xbf16>
    %cst_47 = arith.constant dense<0.000000e+00> : vector<16x256xf32>
    %111 = tpu.matmul %108, %110, %cst_47 {dimension_numbers = #tpu.dot_dimension_numbers<[1], [0], [0], [1], [0, 0, 1, 1], [], []>} : vector<16x64xbf16>, vector<64x256xbf16>, vector<16x256xf32> -> vector<16x256xf32>
    %c0_48 = arith.constant 0 : index
    %c0_49 = arith.constant 0 : index
    %c0_50 = arith.constant 0 : index
    %112 = vector.load %arg12[%c0_48, %c0_49, %c0_50] : memref<1x1x256xf32, #tpu.memory_space<vmem>>, vector<1x1x256xf32>
    %113 = vector.shape_cast %112 : vector<1x1x256xf32> to vector<1x256xf32>
    %114 = vector.broadcast %113 : vector<1x256xf32> to vector<16x256xf32>
    %115 = arith.addf %111, %114 : vector<16x256xf32>
    %cst_51 = arith.constant 1.702000e+00 : f32
    %116 = vector.broadcast %cst_51 : f32 to vector<16x256xf32>
    %117 = arith.mulf %116, %115 : vector<16x256xf32>
    %118 = arith.negf %117 : vector<16x256xf32>
    %119 = math.exp %118 : vector<16x256xf32>
    %cst_52 = arith.constant 1.000000e+00 : f32
    %120 = vector.broadcast %cst_52 : f32 to vector<16x256xf32>
    %121 = arith.addf %120, %119 : vector<16x256xf32>
    %122 = arith.divf %120, %121 : vector<16x256xf32>
    %123 = arith.mulf %115, %122 : vector<16x256xf32>
    %124 = arith.truncf %123 : vector<16x256xf32> to vector<16x256xbf16>
    %c0_53 = arith.constant 0 : index
    %c0_54 = arith.constant 0 : index
    %c0_55 = arith.constant 0 : index
    %125 = vector.load %arg13[%c0_53, %c0_54, %c0_55] : memref<1x256x64xbf16, #tpu.memory_space<vmem>>, vector<1x256x64xbf16>
    %126 = vector.shape_cast %125 : vector<1x256x64xbf16> to vector<256x64xbf16>
    %cst_56 = arith.constant dense<0.000000e+00> : vector<16x64xf32>
    %127 = tpu.matmul %124, %126, %cst_56 {dimension_numbers = #tpu.dot_dimension_numbers<[1], [0], [0], [1], [0, 0, 1, 1], [], []>} : vector<16x256xbf16>, vector<256x64xbf16>, vector<16x64xf32> -> vector<16x64xf32>
    %c0_57 = arith.constant 0 : index
    %c0_58 = arith.constant 0 : index
    %c0_59 = arith.constant 0 : index
    %128 = vector.load %arg14[%c0_57, %c0_58, %c0_59] : memref<1x1x64xf32, #tpu.memory_space<vmem>>, vector<1x1x64xf32>
    %129 = vector.shape_cast %128 : vector<1x1x64xf32> to vector<1x64xf32>
    %130 = vector.broadcast %129 : vector<1x64xf32> to vector<16x64xf32>
    %131 = arith.addf %127, %130 : vector<16x64xf32>
    %132 = arith.addf %81, %131 : vector<16x64xf32>
    %c1_i32 = arith.constant 1 : i32
    %133 = arith.cmpi slt, %arg1, %c1_i32 : i32
    %134 = arith.extui %133 : i1 to i32
    %c0_i32_60 = arith.constant 0 : i32
    %135 = arith.cmpi ne, %134, %c0_i32_60 : i32
    scf.if %135 {
      %139 = vector.shape_cast %132 : vector<16x64xf32> to vector<1x16x64xf32>
      %c0_63 = arith.constant 0 : index
      %c0_64 = arith.constant 0 : index
      %c0_65 = arith.constant 0 : index
      %140 = vector.load %arg17[%c0_63, %c0_64, %c0_65] : memref<1x16x64xf32, #tpu.memory_space<vmem>>, vector<1x16x64xf32>
      tpu.vector_store %arg17[%c0_63, %c0_64, %c0_65], %139 {strides = array<i32>} : memref<1x16x64xf32, #tpu.memory_space<vmem>>, vector<1x16x64xf32>,
    } else {
    }
    %c1_i32_61 = arith.constant 1 : i32
    %136 = arith.cmpi eq, %arg1, %c1_i32_61 : i32
    %137 = arith.extui %136 : i1 to i32
    %c0_i32_62 = arith.constant 0 : i32
    %138 = arith.cmpi ne, %137, %c0_i32_62 : i32
    scf.if %138 {
      %c0_63 = arith.constant 0 : index
      %c0_64 = arith.constant 0 : index
      %139 = vector.load %arg15[%c0_63, %c0_64] : memref<1x64xf32, #tpu.memory_space<vmem>>, vector<1x64xf32>
      %c0_65 = arith.constant 0 : index
      %c0_66 = arith.constant 0 : index
      %140 = vector.load %arg16[%c0_65, %c0_66] : memref<1x64xf32, #tpu.memory_space<vmem>>, vector<1x64xf32>
      %cst_67 = arith.constant dense<0.000000e+00> : vector<16xf32>
      %141 = vector.multi_reduction <add>, %132, %cst_67 [1] : vector<16x64xf32> to vector<16xf32>
      %142 = vector.shape_cast %141 : vector<16xf32> to vector<16x1xf32>
      %cst_68 = arith.constant 6.400000e+01 : f32
      %143 = vector.broadcast %cst_68 : f32 to vector<16x1xf32>
      %144 = arith.divf %142, %143 : vector<16x1xf32>
      %145 = arith.mulf %132, %132 : vector<16x64xf32>
      %cst_69 = arith.constant dense<0.000000e+00> : vector<16xf32>
      %146 = vector.multi_reduction <add>, %145, %cst_69 [1] : vector<16x64xf32> to vector<16xf32>
      %147 = vector.shape_cast %146 : vector<16xf32> to vector<16x1xf32>
      %cst_70 = arith.constant 6.400000e+01 : f32
      %148 = vector.broadcast %cst_70 : f32 to vector<16x1xf32>
      %149 = arith.divf %147, %148 : vector<16x1xf32>
      %150 = arith.mulf %144, %144 : vector<16x1xf32>
      %151 = arith.subf %149, %150 : vector<16x1xf32>
      %cst_71 = arith.constant 9.99999974E-6 : f32
      %152 = vector.broadcast %cst_71 : f32 to vector<16x1xf32>
      %153 = arith.addf %151, %152 : vector<16x1xf32>
      %154 = math.rsqrt %153 : vector<16x1xf32>
      %155 = vector.broadcast %144 : vector<16x1xf32> to vector<16x64xf32>
      %156 = arith.subf %132, %155 : vector<16x64xf32>
      %157 = vector.broadcast %154 : vector<16x1xf32> to vector<16x64xf32>
      %158 = arith.mulf %156, %157 : vector<16x64xf32>
      %159 = vector.broadcast %139 : vector<1x64xf32> to vector<16x64xf32>
      %160 = arith.mulf %158, %159 : vector<16x64xf32>
      %161 = vector.broadcast %140 : vector<1x64xf32> to vector<16x64xf32>
      %162 = arith.addf %160, %161 : vector<16x64xf32>
      %163 = vector.shape_cast %162 : vector<16x64xf32> to vector<1x16x64xf32>
      %c0_72 = arith.constant 0 : index
      %c0_73 = arith.constant 0 : index
      %c0_74 = arith.constant 0 : index
      %164 = vector.load %arg17[%c0_72, %c0_73, %c0_74] : memref<1x16x64xf32, #tpu.memory_space<vmem>>, vector<1x16x64xf32>
      tpu.vector_store %arg17[%c0_72, %c0_73, %c0_74], %163 {strides = array<i32>} : memref<1x16x64xf32, #tpu.memory_space<vmem>>, vector<1x16x64xf32>,
    } else {
    }
    return
  }
  func.func @transform_0(%arg0: i32, %arg1: i32) -> (i32, i32, i32) {
    %c0_i32 = arith.constant 0 : i32
    %c0_i32_0 = arith.constant 0 : i32
    %c0_i32_1 = arith.constant 0 : i32
    return %arg0, %c0_i32, %c0_i32_0 : i32, i32, i32
  }
  func.func @transform_1(%arg0: i32, %arg1: i32) -> (i32, i32, i32) {
    %c0_i32 = arith.constant 0 : i32
    %c0_i32_0 = arith.constant 0 : i32
    %c0_i32_1 = arith.constant 0 : i32
    return %arg1, %c0_i32, %c0_i32_0 : i32, i32, i32
  }
  func.func @transform_2(%arg0: i32, %arg1: i32) -> (i32, i32, i32) {
    %c0_i32 = arith.constant 0 : i32
    %c0_i32_0 = arith.constant 0 : i32
    %c0_i32_1 = arith.constant 0 : i32
    return %arg1, %c0_i32, %c0_i32_0 : i32, i32, i32
  }
  func.func @transform_3(%arg0: i32, %arg1: i32) -> (i32, i32, i32) {
    %c0_i32 = arith.constant 0 : i32
    %c0_i32_0 = arith.constant 0 : i32
    %c0_i32_1 = arith.constant 0 : i32
    return %arg1, %c0_i32, %c0_i32_0 : i32, i32, i32
  }
  func.func @transform_4(%arg0: i32, %arg1: i32) -> (i32, i32, i32) {
    %c0_i32 = arith.constant 0 : i32
    %c0_i32_0 = arith.constant 0 : i32
    %c0_i32_1 = arith.constant 0 : i32
    return %arg1, %c0_i32, %c0_i32_0 : i32, i32, i32
  }
  func.func @transform_5(%arg0: i32, %arg1: i32) -> (i32, i32, i32) {
    %c0_i32 = arith.constant 0 : i32
    %c0_i32_0 = arith.constant 0 : i32
    %c0_i32_1 = arith.constant 0 : i32
    return %arg1, %c0_i32, %c0_i32_0 : i32, i32, i32
  }
  func.func @transform_6(%arg0: i32, %arg1: i32) -> (i32, i32, i32) {
    %c0_i32 = arith.constant 0 : i32
    %c0_i32_0 = arith.constant 0 : i32
    %c0_i32_1 = arith.constant 0 : i32
    return %arg1, %c0_i32, %c0_i32_0 : i32, i32, i32
  }
  func.func @transform_7(%arg0: i32, %arg1: i32) -> (i32, i32, i32) {
    %c0_i32 = arith.constant 0 : i32
    %c0_i32_0 = arith.constant 0 : i32
    %c0_i32_1 = arith.constant 0 : i32
    return %arg1, %c0_i32, %c0_i32_0 : i32, i32, i32
  }
  func.func @transform_8(%arg0: i32, %arg1: i32) -> (i32, i32, i32) {
    %c0_i32 = arith.constant 0 : i32
    %c0_i32_0 = arith.constant 0 : i32
    %c0_i32_1 = arith.constant 0 : i32
    return %arg1, %c0_i32, %c0_i32_0 : i32, i32, i32
  }
  func.func @transform_9(%arg0: i32, %arg1: i32) -> (i32, i32, i32) {
    %c0_i32 = arith.constant 0 : i32
    %c0_i32_0 = arith.constant 0 : i32
    %c0_i32_1 = arith.constant 0 : i32
    return %arg1, %c0_i32, %c0_i32_0 : i32, i32, i32
  }
  func.func @transform_10(%arg0: i32, %arg1: i32) -> (i32, i32, i32) {
    %c0_i32 = arith.constant 0 : i32
    %c0_i32_0 = arith.constant 0 : i32
    %c0_i32_1 = arith.constant 0 : i32
    return %arg1, %c0_i32, %c0_i32_0 : i32, i32, i32
  }
  func.func @transform_11(%arg0: i32, %arg1: i32) -> (i32, i32, i32) {
    %c0_i32 = arith.constant 0 : i32
    %c0_i32_0 = arith.constant 0 : i32
    %c0_i32_1 = arith.constant 0 : i32
    return %arg1, %c0_i32, %c0_i32_0 : i32, i32, i32
  }
  func.func @transform_12(%arg0: i32, %arg1: i32) -> (i32, i32, i32) {
    %c0_i32 = arith.constant 0 : i32
    %c0_i32_0 = arith.constant 0 : i32
    %c0_i32_1 = arith.constant 0 : i32
    return %arg1, %c0_i32, %c0_i32_0 : i32, i32, i32
  }
  func.func @transform_13(%arg0: i32, %arg1: i32) -> (i32, i32) {
    %c0_i32 = arith.constant 0 : i32
    %c0_i32_0 = arith.constant 0 : i32
    %c0_i32_1 = arith.constant 0 : i32
    return %c0_i32, %c0_i32_0 : i32, i32
  }
  func.func @transform_14(%arg0: i32, %arg1: i32) -> (i32, i32) {
    %c0_i32 = arith.constant 0 : i32
    %c0_i32_0 = arith.constant 0 : i32
    %c0_i32_1 = arith.constant 0 : i32
    return %c0_i32, %c0_i32_0 : i32, i32
  }
  func.func @transform_15(%arg0: i32, %arg1: i32) -> (i32, i32, i32) {
    %c0_i32 = arith.constant 0 : i32
    %c0_i32_0 = arith.constant 0 : i32
    %c0_i32_1 = arith.constant 0 : i32
    return %arg0, %c0_i32, %c0_i32_0 : i32, i32, i32
  }
}

</mosaic_0001>

<llo_original>
// kernel: clip_forward.1
$region0: #{clip_forward.1}
  #allocation0 [shape = 'u32[]', space=smem, size = 0x4, offset = 0x4, fixed_abs, tag = 'smem constant byte address 0x4 - core index']
  #allocation1 [shape = 'u32[144,128]{1,0:T(1,128)}', space=vmem, size = 0x12000, scoped, tag = 'internal scratch']
  %s0 = inlined_call_operand.hbm [shape: f32[2,16,64], index: 0, kind: input, shape index: {}]
  %s1 = inlined_call_operand.hbm [shape: f32[2,1,64], index: 1, kind: input, shape index: {}]
  %s2 = inlined_call_operand.hbm [shape: f32[2,1,64], index: 2, kind: input, shape index: {}]
  %s3 = inlined_call_operand.hbm [shape: bf16[2,64,192], index: 3, kind: input, shape index: {}]
  %s4 = inlined_call_operand.hbm [shape: f32[2,1,192], index: 4, kind: input, shape index: {}]
  %s5 = inlined_call_operand.hbm [shape: bf16[2,64,64], index: 5, kind: input, shape index: {}]
  %s6 = inlined_call_operand.hbm [shape: f32[2,1,64], index: 6, kind: input, shape index: {}]
  %s7 = inlined_call_operand.hbm [shape: f32[2,1,64], index: 7, kind: input, shape index: {}]
  %s8 = inlined_call_operand.hbm [shape: f32[2,1,64], index: 8, kind: input, shape index: {}]
  %s9 = inlined_call_operand.hbm [shape: bf16[2,64,256], index: 9, kind: input, shape index: {}]
  %s10 = inlined_call_operand.hbm [shape: f32[2,1,256], index: 10, kind: input, shape index: {}]
  %s11 = inlined_call_operand.hbm [shape: bf16[2,256,64], index: 11, kind: input, shape index: {}]
  %s12 = inlined_call_operand.hbm [shape: f32[2,1,64], index: 12, kind: input, shape index: {}]
  %s13 = inlined_call_operand.hbm [shape: f32[1,64], index: 13, kind: input, shape index: {}]
  %s14 = inlined_call_operand.hbm [shape: f32[1,64], index: 14, kind: input, shape index: {}]
  %s15 = inlined_call_operand.hbm [shape: f32[2,16,64], index: 15, kind: output, shape index: {}]
  %s16 = sld [smem:[#allocation0]]
  $region165: #{clip_forward.1} parent=0
    _
  %s18 = ssub.s32 1, %s16
  %s19 = scalar_select 0, %s18, %s16
  $region1: #{clip_forward.1} parent=0
    #allocation2 [shape = 'u8[16384]{0}', space=vmem, size = 0x4000, scoped, tag = 'input window, operand 0']
    #allocation3 [shape = 's32[2]{0}', space=sflag, size = 0x8, scoped, tag = 'scoped memory for clip_forward.1']
    #allocation4 [shape = 's32[2]{0}', space=sflag, size = 0x8, scoped, tag = 'scoped memory for clip_forward.1']
    #allocation5 [shape = 'u8[1024]{0}', space=vmem, size = 0x400, scoped, tag = 'input window, operand 1']
    #allocation6 [shape = 's32[2]{0}', space=sflag, size = 0x8, scoped, tag = 'scoped memory for clip_forward.1']
    #allocation7 [shape = 'u8[1024]{0}', space=vmem, size = 0x400, scoped, tag = 'input window, operand 2']
    #allocation8 [shape = 'u8[65536]{0}', space=vmem, size = 0x10000, scoped, tag = 'input window, operand 3']
    #allocation9 [shape = 's32[2]{0}', space=sflag, size = 0x8, scoped, tag = 'scoped memory for clip_forward.1']
    #allocation10 [shape = 'u8[2048]{0}', space=vmem, size = 0x800, scoped, tag = 'input window, operand 4']
    #allocation11 [shape = 'u8[32768]{0}', space=vmem, size = 0x8000, scoped, tag = 'input window, operand 5']
    #allocation12 [shape = 's32[2]{0}', space=sflag, size = 0x8, scoped, tag = 'scoped memory for clip_forward.1']
    #allocation13 [shape = 'u8[1024]{0}', space=vmem, size = 0x400, scoped, tag = 'input window, operand 6']
    #allocation14 [shape = 'u8[1024]{0}', space=vmem, size = 0x400, scoped, tag = 'input window, operand 7']
    #allocation15 [shape = 's32[2]{0}', space=sflag, size = 0x8, scoped, tag = 'scoped memory for clip_forward.1']
    #allocation16 [shape = 'u8[1024]{0}', space=vmem, size = 0x400, scoped, tag = 'input window, operand 8']
    #allocation17 [shape = 'u8[65536]{0}', space=vmem, size = 0x10000, scoped, tag = 'input window, operand 9']
    #allocation18 [shape = 's32[2]{0}', space=sflag, size = 0x8, scoped, tag = 'scoped memory for clip_forward.1']
    #allocation19 [shape = 'u8[2048]{0}', space=vmem, size = 0x800, scoped, tag = 'input window, operand 10']
    #allocation20 [shape = 'u8[131072]{0}', space=vmem, size = 0x20000, scoped, tag = 'input window, operand 11']
    #allocation21 [shape = 's32[2]{0}', space=sflag, size = 0x8, scoped, tag = 'scoped memory for clip_forward.1']
    #allocation22 [shape = 'u8[1024]{0}', space=vmem, size = 0x400, scoped, tag = 'input window, operand 12']
    #allocation23 [shape = 'u8[512]{0}', space=vmem, size = 0x400, scoped, tag = 'input window, operand 13, single buffered']
    #allocation24 [shape = 's32[1]{0}', space=sflag, size = 0x4, scoped, tag = 'scoped memory for clip_forward.1']
    #allocation25 [shape = 'u8[512]{0}', space=vmem, size = 0x400, scoped, tag = 'input window, operand 14, single buffered']
    #allocation26 [shape = 'u8[16384]{0}', space=vmem, size = 0x4000, scoped, tag = 'output window, operand 0']
    %20 = vsyncpa [#allocation3], 0
    %s21 = scalar_lea.sflag [#allocation3], 1
    %22 = vsyncpa %s21, 0
    %23 = vsyncpa [#allocation6], 0
    %s24 = scalar_lea.sflag [#allocation6], 1
    %25 = vsyncpa %s24, 0
    %26 = vsyncpa [#allocation9], 0
    %s27 = scalar_lea.sflag [#allocation9], 1
    %28 = vsyncpa %s27, 0
    %29 = vsyncpa [#allocation12], 0
    %s30 = scalar_lea.sflag [#allocation12], 1
    %31 = vsyncpa %s30, 0
    %32 = vsyncpa [#allocation15], 0
    %s33 = scalar_lea.sflag [#allocation15], 1
    %34 = vsyncpa %s33, 0
    %35 = vsyncpa [#allocation18], 0
    %s36 = scalar_lea.sflag [#allocation18], 1
    %37 = vsyncpa %s36, 0
    %38 = vsyncpa [#allocation21], 0
    %s39 = scalar_lea.sflag [#allocation21], 1
    %40 = vsyncpa %s39, 0
    %41 = vsyncpa [#allocation24], 0
    %42 = vsyncpa [#allocation4], 0
    %s43 = scalar_lea.sflag [#allocation4], 1
    %44 = vsyncpa %s43, 0
    loop: start=0, step=1, limit=6
    $region2: #{clip_forward.1} parent=1 // loop_pre_header
      _
    $region3: #{clip_forward.1} parent=1 // loop_header
      %s46 = sphi 0, %s50
      %p47 = scmp.ge.s32.totalorder %s46, 6
      %s53 = sphi 0, %s65
      %s54 = sphi 0, %s61
      %s55 = sphi 0, %s53
      %s56 = sphi 0, %s54
      %s57 = sphi 0, %s55
      %s58 = sphi 0, %s56
      %s68 = sphi 0, %s70
      %s71 = sphi 0, %s68
      %s72 = sphi 0, %s71
      %s88 = sphi 0, %s72
      %s94 = sphi 0, %s96
      %s97 = sphi 0, %s94
      %s98 = sphi 0, %s97
      %s114 = sphi 0, %s98
      %s120 = sphi 0, %s122
      %s123 = sphi 0, %s120
      %s124 = sphi 0, %s123
      %s140 = sphi 0, %s124
      %s146 = sphi 0, %s148
      %s149 = sphi 0, %s146
      %s150 = sphi 0, %s149
      %s166 = sphi 0, %s150
      %s172 = sphi 0, %s174
      %s175 = sphi 0, %s172
      %s176 = sphi 0, %s175
      %s192 = sphi 0, %s176
      %s198 = sphi 0, %s200
      %s201 = sphi 0, %s198
      %s202 = sphi 0, %s201
      %s218 = sphi 0, %s202
      %s224 = sphi 0, %s226
      %s227 = sphi 0, %s224
      %s228 = sphi 0, %s227
      %s244 = sphi 0, %s228
      %s250 = sphi 0, %s252
      %s253 = sphi 0, %s250
      %s254 = sphi 0, %s253
      %s270 = sphi 0, %s254
      %s276 = sphi 0, %s278
      %s279 = sphi 0, %s276
      %s280 = sphi 0, %s279
      %s296 = sphi 0, %s280
      %s302 = sphi 0, %s304
      %s305 = sphi 0, %s302
      %s306 = sphi 0, %s305
      %s322 = sphi 0, %s306
      %s328 = sphi 0, %s330
      %s331 = sphi 0, %s328
      %s332 = sphi 0, %s331
      %s348 = sphi 0, %s332
      %s354 = sphi 0, %s356
      %s357 = sphi 0, %s354
      %s358 = sphi 0, %s357
      %s374 = sphi 0, %s358
      %s380 = sphi 0, %s382
      %s383 = sphi 0, %s380
      %s384 = sphi 0, %s383
      %s400 = sphi 0, %s384
      %s404 = sphi 0, %s404
      %s406 = sphi 0, %s404
      %s407 = sphi 0, %s406
      %s421 = sphi 0, %s407
      %s425 = sphi 0, %s425
      %s427 = sphi 0, %s425
      %s428 = sphi 0, %s427
      %s442 = sphi 0, %s428
      %s448 = sphi 0, %s450
      %s451 = sphi 0, %s448
      %s452 = sphi 0, %s451
      %s468 = sphi 0, %s452
    $region4: #{clip_forward.1} parent=1 // loop_header_branch
      %49 = sbr.rel (%p47) target = $region8
    $region5: #{clip_forward.1} parent=1 // loop_body
      %s51 = ssub.s32 %s46, 1
      %s52 = ssub.s32 %s46, 2
      %s59 = sadd.s32 1, %s54
      %p60 = scmp.ge.s32.totalorder %s59, 2
      %s61 = scalar_select %p60, 0, %s59
      %s62 = sadd.s32 1, %s53
      %s63 = scalar_select %p60, %s62, %s53
      %p64 = scmp.ge.s32.totalorder %s63, 2
      %s65 = scalar_select %p64, 0, %s63
      %s66 = ssub.s32 %s53, %s65
      %p67 = scmp.eq.s32.totalorder %s66, 0
      %s69 = sadd.s32 %s68, 1
      %s70 = scalar_select %p67, %s68, %s69
      %p73 = pneg %p67
      %p74 = scmp.eq.s32.totalorder %s46, 3
      %p75 = por %p73, %p74
      %p76 = scmp.ne.s32.totalorder %s68, %s71
      %p77 = scmp.eq.s32.totalorder %s46, 0
      %p78 = por %p76, %p77
      %p79 = scmp.ne.s32.totalorder %s68, %s71
      %p80 = scmp.eq.s32.totalorder %s51, 3
      %p81 = por %p79, %p80
      %p82 = scmp.ne.s32.totalorder %s71, %s72
      %p83 = scmp.eq.s32.totalorder %s51, 0
      %p84 = por %p82, %p83
      %p85 = scmp.ne.s32.totalorder %s71, %s72
      %p86 = scmp.eq.s32.totalorder %s52, 3
      %p87 = por %p85, %p86
      %p89 = scmp.ne.s32.totalorder %s72, %s88
      %p90 = scmp.eq.s32.totalorder %s52, 0
      %p91 = por %p89, %p90
      %s92 = ssub.s32 %s54, %s61
      %p93 = scmp.eq.s32.totalorder %s92, 0
      %s95 = sadd.s32 %s94, 1
      %s96 = scalar_select %p93, %s94, %s95
      %p99 = pneg %p93
      %p100 = scmp.eq.s32.totalorder %s46, 3
      %p101 = por %p99, %p100
      %p102 = scmp.ne.s32.totalorder %s94, %s97
      %p103 = scmp.eq.s32.totalorder %s46, 0
      %p104 = por %p102, %p103
      %p105 = scmp.ne.s32.totalorder %s94, %s97
      %p106 = scmp.eq.s32.totalorder %s51, 3
      %p107 = por %p105, %p106
      %p108 = scmp.ne.s32.totalorder %s97, %s98
      %p109 = scmp.eq.s32.totalorder %s51, 0
      %p110 = por %p108, %p109
      %p111 = scmp.ne.s32.totalorder %s97, %s98
      %p112 = scmp.eq.s32.totalorder %s52, 3
      %p113 = por %p111, %p112
      %p115 = scmp.ne.s32.totalorder %s98, %s114
      %p116 = scmp.eq.s32.totalorder %s52, 0
      %p117 = por %p115, %p116
      %s118 = ssub.s32 %s54, %s61
      %p119 = scmp.eq.s32.totalorder %s118, 0
      %s121 = sadd.s32 %s120, 1
      %s122 = scalar_select %p119, %s120, %s121
      %p125 = pneg %p119
      %p126 = scmp.eq.s32.totalorder %s46, 3
      %p127 = por %p125, %p126
      %p128 = scmp.ne.s32.totalorder %s120, %s123
      %p129 = scmp.eq.s32.totalorder %s46, 0
      %p130 = por %p128, %p129
      %p131 = scmp.ne.s32.totalorder %s120, %s123
      %p132 = scmp.eq.s32.totalorder %s51, 3
      %p133 = por %p131, %p132
      %p134 = scmp.ne.s32.totalorder %s123, %s124
      %p135 = scmp.eq.s32.totalorder %s51, 0
      %p136 = por %p134, %p135
      %p137 = scmp.ne.s32.totalorder %s123, %s124
      %p138 = scmp.eq.s32.totalorder %s52, 3
      %p139 = por %p137, %p138
      %p141 = scmp.ne.s32.totalorder %s124, %s140
      %p142 = scmp.eq.s32.totalorder %s52, 0
      %p143 = por %p141, %p142
      %s144 = ssub.s32 %s54, %s61
      %p145 = scmp.eq.s32.totalorder %s144, 0
      %s147 = sadd.s32 %s146, 1
      %s148 = scalar_select %p145, %s146, %s147
      %p151 = pneg %p145
      %p152 = scmp.eq.s32.totalorder %s46, 3
      %p153 = por %p151, %p152
      %p154 = scmp.ne.s32.totalorder %s146, %s149
      %p155 = scmp.eq.s32.totalorder %s46, 0
      %p156 = por %p154, %p155
      %p157 = scmp.ne.s32.totalorder %s146, %s149
      %p158 = scmp.eq.s32.totalorder %s51, 3
      %p159 = por %p157, %p158
      %p160 = scmp.ne.s32.totalorder %s149, %s150
      %p161 = scmp.eq.s32.totalorder %s51, 0
      %p162 = por %p160, %p161
      %p163 = scmp.ne.s32.totalorder %s149, %s150
      %p164 = scmp.eq.s32.totalorder %s52, 3
      %p165 = por %p163, %p164
      %p167 = scmp.ne.s32.totalorder %s150, %s166
      %p168 = scmp.eq.s32.totalorder %s52, 0
      %p169 = por %p167, %p168
      %s170 = ssub.s32 %s54, %s61
      %p171 = scmp.eq.s32.totalorder %s170, 0
      %s173 = sadd.s32 %s172, 1
      %s174 = scalar_select %p171, %s172, %s173
      %p177 = pneg %p171
      %p178 = scmp.eq.s32.totalorder %s46, 3
      %p179 = por %p177, %p178
      %p180 = scmp.ne.s32.totalorder %s172, %s175
      %p181 = scmp.eq.s32.totalorder %s46, 0
      %p182 = por %p180, %p181
      %p183 = scmp.ne.s32.totalorder %s172, %s175
      %p184 = scmp.eq.s32.totalorder %s51, 3
      %p185 = por %p183, %p184
      %p186 = scmp.ne.s32.totalorder %s175, %s176
      %p187 = scmp.eq.s32.totalorder %s51, 0
      %p188 = por %p186, %p187
      %p189 = scmp.ne.s32.totalorder %s175, %s176
      %p190 = scmp.eq.s32.totalorder %s52, 3
      %p191 = por %p189, %p190
      %p193 = scmp.ne.s32.totalorder %s176, %s192
      %p194 = scmp.eq.s32.totalorder %s52, 0
      %p195 = por %p193, %p194
      %s196 = ssub.s32 %s54, %s61
      %p197 = scmp.eq.s32.totalorder %s196, 0
      %s199 = sadd.s32 %s198, 1
      %s200 = scalar_select %p197, %s198, %s199
      %p203 = pneg %p197
      %p204 = scmp.eq.s32.totalorder %s46, 3
      %p205 = por %p203, %p204
      %p206 = scmp.ne.s32.totalorder %s198, %s201
      %p207 = scmp.eq.s32.totalorder %s46, 0
      %p208 = por %p206, %p207
      %p209 = scmp.ne.s32.totalorder %s198, %s201
      %p210 = scmp.eq.s32.totalorder %s51, 3
      %p211 = por %p209, %p210
      %p212 = scmp.ne.s32.totalorder %s201, %s202
      %p213 = scmp.eq.s32.totalorder %s51, 0
      %p214 = por %p212, %p213
      %p215 = scmp.ne.s32.totalorder %s201, %s202
      %p216 = scmp.eq.s32.totalorder %s52, 3
      %p217 = por %p215, %p216
      %p219 = scmp.ne.s32.totalorder %s202, %s218
      %p220 = scmp.eq.s32.totalorder %s52, 0
      %p221 = por %p219, %p220
      %s222 = ssub.s32 %s54, %s61
      %p223 = scmp.eq.s32.totalorder %s222, 0
      %s225 = sadd.s32 %s224, 1
      %s226 = scalar_select %p223, %s224, %s225
      %p229 = pneg %p223
      %p230 = scmp.eq.s32.totalorder %s46, 3
      %p231 = por %p229, %p230
      %p232 = scmp.ne.s32.totalorder %s224, %s227
      %p233 = scmp.eq.s32.totalorder %s46, 0
      %p234 = por %p232, %p233
      %p235 = scmp.ne.s32.totalorder %s224, %s227
      %p236 = scmp.eq.s32.totalorder %s51, 3
      %p237 = por %p235, %p236
      %p238 = scmp.ne.s32.totalorder %s227, %s228
      %p239 = scmp.eq.s32.totalorder %s51, 0
      %p240 = por %p238, %p239
      %p241 = scmp.ne.s32.totalorder %s227, %s228
      %p242 = scmp.eq.s32.totalorder %s52, 3
      %p243 = por %p241, %p242
      %p245 = scmp.ne.s32.totalorder %s228, %s244
      %p246 = scmp.eq.s32.totalorder %s52, 0
      %p247 = por %p245, %p246
      %s248 = ssub.s32 %s54, %s61
      %p249 = scmp.eq.s32.totalorder %s248, 0
      %s251 = sadd.s32 %s250, 1
      %s252 = scalar_select %p249, %s250, %s251
      %p255 = pneg %p249
      %p256 = scmp.eq.s32.totalorder %s46, 3
      %p257 = por %p255, %p256
      %p258 = scmp.ne.s32.totalorder %s250, %s253
      %p259 = scmp.eq.s32.totalorder %s46, 0
      %p260 = por %p258, %p259
      %p261 = scmp.ne.s32.totalorder %s250, %s253
      %p262 = scmp.eq.s32.totalorder %s51, 3
      %p263 = por %p261, %p262
      %p264 = scmp.ne.s32.totalorder %s253, %s254
      %p265 = scmp.eq.s32.totalorder %s51, 0
      %p266 = por %p264, %p265
      %p267 = scmp.ne.s32.totalorder %s253, %s254
      %p268 = scmp.eq.s32.totalorder %s52, 3
      %p269 = por %p267, %p268
      %p271 = scmp.ne.s32.totalorder %s254, %s270
      %p272 = scmp.eq.s32.totalorder %s52, 0
      %p273 = por %p271, %p272
      %s274 = ssub.s32 %s54, %s61
      %p275 = scmp.eq.s32.totalorder %s274, 0
      %s277 = sadd.s32 %s276, 1
      %s278 = scalar_select %p275, %s276, %s277
      %p281 = pneg %p275
      %p282 = scmp.eq.s32.totalorder %s46, 3
      %p283 = por %p281, %p282
      %p284 = scmp.ne.s32.totalorder %s276, %s279
      %p285 = scmp.eq.s32.totalorder %s46, 0
      %p286 = por %p284, %p285
      %p287 = scmp.ne.s32.totalorder %s276, %s279
      %p288 = scmp.eq.s32.totalorder %s51, 3
      %p289 = por %p287, %p288
      %p290 = scmp.ne.s32.totalorder %s279, %s280
      %p291 = scmp.eq.s32.totalorder %s51, 0
      %p292 = por %p290, %p291
      %p293 = scmp.ne.s32.totalorder %s279, %s280
      %p294 = scmp.eq.s32.totalorder %s52, 3
      %p295 = por %p293, %p294
      %p297 = scmp.ne.s32.totalorder %s280, %s296
      %p298 = scmp.eq.s32.totalorder %s52, 0
      %p299 = por %p297, %p298
      %s300 = ssub.s32 %s54, %s61
      %p301 = scmp.eq.s32.totalorder %s300, 0
      %s303 = sadd.s32 %s302, 1
      %s304 = scalar_select %p301, %s302, %s303
      %p307 = pneg %p301
      %p308 = scmp.eq.s32.totalorder %s46, 3
      %p309 = por %p307, %p308
      %p310 = scmp.ne.s32.totalorder %s302, %s305
      %p311 = scmp.eq.s32.totalorder %s46, 0
      %p312 = por %p310, %p311
      %p313 = scmp.ne.s32.totalorder %s302, %s305
      %p314 = scmp.eq.s32.totalorder %s51, 3
      %p315 = por %p313, %p314
      %p316 = scmp.ne.s32.totalorder %s305, %s306
      %p317 = scmp.eq.s32.totalorder %s51, 0
      %p318 = por %p316, %p317
      %p319 = scmp.ne.s32.totalorder %s305, %s306
      %p320 = scmp.eq.s32.totalorder %s52, 3
      %p321 = por %p319, %p320
      %p323 = scmp.ne.s32.totalorder %s306, %s322
      %p324 = scmp.eq.s32.totalorder %s52, 0
      %p325 = por %p323, %p324
      %s326 = ssub.s32 %s54, %s61
      %p327 = scmp.eq.s32.totalorder %s326, 0
      %s329 = sadd.s32 %s328, 1
      %s330 = scalar_select %p327, %s328, %s329
      %p333 = pneg %p327
      %p334 = scmp.eq.s32.totalorder %s46, 3
      %p335 = por %p333, %p334
      %p336 = scmp.ne.s32.totalorder %s328, %s331
      %p337 = scmp.eq.s32.totalorder %s46, 0
      %p338 = por %p336, %p337
      %p339 = scmp.ne.s32.totalorder %s328, %s331
      %p340 = scmp.eq.s32.totalorder %s51, 3
      %p341 = por %p339, %p340
      %p342 = scmp.ne.s32.totalorder %s331, %s332
      %p343 = scmp.eq.s32.totalorder %s51, 0
      %p344 = por %p342, %p343
      %p345 = scmp.ne.s32.totalorder %s331, %s332
      %p346 = scmp.eq.s32.totalorder %s52, 3
      %p347 = por %p345, %p346
      %p349 = scmp.ne.s32.totalorder %s332, %s348
      %p350 = scmp.eq.s32.totalorder %s52, 0
      %p351 = por %p349, %p350
      %s352 = ssub.s32 %s54, %s61
      %p353 = scmp.eq.s32.totalorder %s352, 0
      %s355 = sadd.s32 %s354, 1
      %s356 = scalar_select %p353, %s354, %s355
      %p359 = pneg %p353
      %p360 = scmp.eq.s32.totalorder %s46, 3
      %p361 = por %p359, %p360
      %p362 = scmp.ne.s32.totalorder %s354, %s357
      %p363 = scmp.eq.s32.totalorder %s46, 0
      %p364 = por %p362, %p363
      %p365 = scmp.ne.s32.totalorder %s354, %s357
      %p366 = scmp.eq.s32.totalorder %s51, 3
      %p367 = por %p365, %p366
      %p368 = scmp.ne.s32.totalorder %s357, %s358
      %p369 = scmp.eq.s32.totalorder %s51, 0
      %p370 = por %p368, %p369
      %p371 = scmp.ne.s32.totalorder %s357, %s358
      %p372 = scmp.eq.s32.totalorder %s52, 3
      %p373 = por %p371, %p372
      %p375 = scmp.ne.s32.totalorder %s358, %s374
      %p376 = scmp.eq.s32.totalorder %s52, 0
      %p377 = por %p375, %p376
      %s378 = ssub.s32 %s54, %s61
      %p379 = scmp.eq.s32.totalorder %s378, 0
      %s381 = sadd.s32 %s380, 1
      %s382 = scalar_select %p379, %s380, %s381
      %p385 = pneg %p379
      %p386 = scmp.eq.s32.totalorder %s46, 3
      %p387 = por %p385, %p386
      %p388 = scmp.ne.s32.totalorder %s380, %s383
      %p389 = scmp.eq.s32.totalorder %s46, 0
      %p390 = por %p388, %p389
      %p391 = scmp.ne.s32.totalorder %s380, %s383
      %p392 = scmp.eq.s32.totalorder %s51, 3
      %p393 = por %p391, %p392
      %p394 = scmp.ne.s32.totalorder %s383, %s384
      %p395 = scmp.eq.s32.totalorder %s51, 0
      %p396 = por %p394, %p395
      %p397 = scmp.ne.s32.totalorder %s383, %s384
      %p398 = scmp.eq.s32.totalorder %s52, 3
      %p399 = por %p397, %p398
      %p401 = scmp.ne.s32.totalorder %s384, %s400
      %p402 = scmp.eq.s32.totalorder %s52, 0
      %p403 = por %p401, %p402
      %s405 = sadd.s32 %s404, 1
      %p408 = scmp.eq.s32.totalorder %s46, 3
      %p409 = scmp.ne.s32.totalorder %s404, %s406
      %p410 = scmp.eq.s32.totalorder %s46, 0
      %p411 = por %p409, %p410
      %p412 = scmp.ne.s32.totalorder %s404, %s406
      %p413 = scmp.eq.s32.totalorder %s51, 3
      %p414 = por %p412, %p413
      %p415 = scmp.ne.s32.totalorder %s406, %s407
      %p416 = scmp.eq.s32.totalorder %s51, 0
      %p417 = por %p415, %p416
      %p418 = scmp.ne.s32.totalorder %s406, %s407
      %p419 = scmp.eq.s32.totalorder %s52, 3
      %p420 = por %p418, %p419
      %p422 = scmp.ne.s32.totalorder %s407, %s421
      %p423 = scmp.eq.s32.totalorder %s52, 0
      %p424 = por %p422, %p423
      %s426 = sadd.s32 %s425, 1
      %p429 = scmp.eq.s32.totalorder %s46, 3
      %p430 = scmp.ne.s32.totalorder %s425, %s427
      %p431 = scmp.eq.s32.totalorder %s46, 0
      %p432 = por %p430, %p431
      %p433 = scmp.ne.s32.totalorder %s425, %s427
      %p434 = scmp.eq.s32.totalorder %s51, 3
      %p435 = por %p433, %p434
      %p436 = scmp.ne.s32.totalorder %s427, %s428
      %p437 = scmp.eq.s32.totalorder %s51, 0
      %p438 = por %p436, %p437
      %p439 = scmp.ne.s32.totalorder %s427, %s428
      %p440 = scmp.eq.s32.totalorder %s52, 3
      %p441 = por %p439, %p440
      %p443 = scmp.ne.s32.totalorder %s428, %s442
      %p444 = scmp.eq.s32.totalorder %s52, 0
      %p445 = por %p443, %p444
      %s446 = ssub.s32 %s53, %s65
      %p447 = scmp.eq.s32.totalorder %s446, 0
      %s449 = sadd.s32 %s448, 1
      %s450 = scalar_select %p447, %s448, %s449
      %p453 = pneg %p447
      %p454 = scmp.eq.s32.totalorder %s46, 3
      %p455 = por %p453, %p454
      %p456 = scmp.ne.s32.totalorder %s448, %s451
      %p457 = scmp.eq.s32.totalorder %s46, 0
      %p458 = por %p456, %p457
      %p459 = scmp.ne.s32.totalorder %s448, %s451
      %p460 = scmp.eq.s32.totalorder %s51, 3
      %p461 = por %p459, %p460
      %p462 = scmp.ne.s32.totalorder %s451, %s452
      %p463 = scmp.eq.s32.totalorder %s51, 0
      %p464 = por %p462, %p463
      %p465 = scmp.ne.s32.totalorder %s451, %s452
      %p466 = scmp.eq.s32.totalorder %s52, 3
      %p467 = por %p465, %p466
      %p469 = scmp.ne.s32.totalorder %s452, %s468
      %p470 = scmp.eq.s32.totalorder %s52, 0
      %p471 = por %p469, %p470
      %p472 = scmp.le.s32.totalorder 1, %s46
      %p473 = scmp.lt.s32.totalorder %s46, 5
      %p474 = pnand %p472, %p473
      %p475 = pneg %p474
      // Predicated region
      $region9: #{clip_forward.1} parent=5 // pred_check
        _
      $region10: #{clip_forward.1} parent=5 // pred_check_branch
        %477 = sbr.rel (%p474) target = $region12
      $region11: #{clip_forward.1} parent=5 // pred_region
        %s478 = ssub.s32 %s46, 1
        // Predicated region
        $region13: #{clip_forward.1} parent=11 // pred_check
          %p479 = pneg %p417
        $region14: #{clip_forward.1} parent=11 // pred_check_branch
          %481 = sbr.rel (%p479) target = $region16
        $region15: #{clip_forward.1} parent=11 // pred_region
          %s483 = ssub.s32 16, 16
          %484 = vsyncadd [#allocation24], %s483
          %s486 = sshll.u32 [#allocation23], 4
          %s487 = int_to_ptr.vmem [resolvable:$true] %s486
          %489 = dma.hbm_to_vmem [thread:$0]  %s13, 16, %s487, [#allocation24]
        $region16: #{clip_forward.1} parent=11 // pred_fallthru
          _
        // Predicated region
        $region17: #{clip_forward.1} parent=11 // pred_check
          %p490 = pneg %p438
        $region18: #{clip_forward.1} parent=11 // pred_check_branch
          %492 = sbr.rel (%p490) target = $region20
        $region19: #{clip_forward.1} parent=11 // pred_region
          %s494 = ssub.s32 16, 16
          %495 = vsyncadd [#allocation24], %s494
          %s497 = sshll.u32 [#allocation25], 4
          %s498 = int_to_ptr.vmem [resolvable:$true] %s497
          %500 = dma.hbm_to_vmem [thread:$0]  %s14, 16, %s498, [#allocation24]
        $region20: #{clip_forward.1} parent=11 // pred_fallthru
          _
      $region12: #{clip_forward.1} parent=5 // pred_fallthru
        _
      %p501 = scmp.lt.s32.totalorder %s46, 4
      // Predicated region
      $region21: #{clip_forward.1} parent=5 // pred_check
        %p502 = pneg %p501
      $region22: #{clip_forward.1} parent=5 // pred_check_branch
        %504 = sbr.rel (%p502) target = $region24
      $region23: #{clip_forward.1} parent=5 // pred_region
        // Predicated region
        $region25: #{clip_forward.1} parent=23 // pred_check
          %p505 = pneg %p78
        $region26: #{clip_forward.1} parent=23 // pred_check_branch
          %507 = sbr.rel (%p505) target = $region28
        $region27: #{clip_forward.1} parent=23 // pred_region
          %s508 = sand.u32 %s68, 1
          %s509 = scalar_lea.sflag [#allocation3], %s508
          %s510 = sand.u32 %s68, 1
          %s511 = smul.addr %s510, 16
          %s512 = scalar_lea.vmem [#allocation2], %s511
          %s514 = ssub.s32 256, 256
          %515 = vsyncadd %s509, %s514
          %s516 = smul.addr %s53, 2
          %s517 = smul.addr %s516, 128
          %s518 = scalar_lea.hbm %s0, %s517
          %s519 = sshll.u32 %s512, 4
          %s520 = int_to_ptr.vmem [resolvable:$true] %s519
          %525 = dma.hbm_to_vmem [thread:$0]  %s518, 256, %s520, %s509, 128, 128, 8
        $region28: #{clip_forward.1} parent=23 // pred_fallthru
          _
        // Predicated region
        $region29: #{clip_forward.1} parent=23 // pred_check
          %p526 = pneg %p104
        $region30: #{clip_forward.1} parent=23 // pred_check_branch
          %528 = sbr.rel (%p526) target = $region32
        $region31: #{clip_forward.1} parent=23 // pred_region
          %s529 = sand.u32 %s46, 1
          %s530 = scalar_lea.sflag [#allocation6], %s529
          %s531 = sand.u32 %s94, 1
          %s532 = scalar_lea.vmem [#allocation5], %s531
          %s534 = ssub.s32 16, 16
          %535 = vsyncadd %s530, %s534
          %s536 = smul.addr %s54, 16
          %s537 = scalar_lea.hbm %s1, %s536
          %s539 = sshll.u32 %s532, 4
          %s540 = int_to_ptr.vmem [resolvable:$true] %s539
          %542 = dma.hbm_to_vmem [thread:$0]  %s537, 16, %s540, %s530
        $region32: #{clip_forward.1} parent=23 // pred_fallthru
          _
        // Predicated region
        $region33: #{clip_forward.1} parent=23 // pred_check
          %p543 = pneg %p130
        $region34: #{clip_forward.1} parent=23 // pred_check_branch
          %545 = sbr.rel (%p543) target = $region36
        $region35: #{clip_forward.1} parent=23 // pred_region
          %s546 = sand.u32 %s46, 1
          %s547 = scalar_lea.sflag [#allocation6], %s546
          %s548 = sand.u32 %s120, 1
          %s549 = scalar_lea.vmem [#allocation7], %s548
          %s551 = ssub.s32 16, 16
          %552 = vsyncadd %s547, %s551
          %s553 = smul.addr %s54, 16
          %s554 = scalar_lea.hbm %s2, %s553
          %s556 = sshll.u32 %s549, 4
          %s557 = int_to_ptr.vmem [resolvable:$true] %s556
          %559 = dma.hbm_to_vmem [thread:$0]  %s554, 16, %s557, %s547
        $region36: #{clip_forward.1} parent=23 // pred_fallthru
          _
        // Predicated region
        $region37: #{clip_forward.1} parent=23 // pred_check
          %p560 = pneg %p156
        $region38: #{clip_forward.1} parent=23 // pred_check_branch
          %562 = sbr.rel (%p560) target = $region40
        $region39: #{clip_forward.1} parent=23 // pred_region
          %s563 = sand.u32 %s46, 1
          %s564 = scalar_lea.sflag [#allocation9], %s563
          %s565 = sand.u32 %s146, 1
          %s566 = smul.addr %s565, 64
          %s567 = scalar_lea.vmem [#allocation8], %s566
          %s569 = ssub.s32 1024, 1024
          %570 = vsyncadd %s564, %s569
          %s571 = smul.addr %s54, 16
          %s572 = smul.addr %s571, 64
          %s573 = scalar_lea.hbm %s3, %s572
          %s574 = sshll.u32 %s567, 4
          %s575 = int_to_ptr.vmem [resolvable:$true] %s574
          %580 = dma.hbm_to_vmem [thread:$0]  %s573, 1024, %s575, %s564, 128, 128, 8
        $region40: #{clip_forward.1} parent=23 // pred_fallthru
          _
        // Predicated region
        $region41: #{clip_forward.1} parent=23 // pred_check
          %p581 = pneg %p182
        $region42: #{clip_forward.1} parent=23 // pred_check_branch
          %583 = sbr.rel (%p581) target = $region44
        $region43: #{clip_forward.1} parent=23 // pred_region
          %s584 = sand.u32 %s46, 1
          %s585 = scalar_lea.sflag [#allocation9], %s584
          %s586 = sand.u32 %s172, 1
          %s587 = smul.addr %s586, 2
          %s588 = scalar_lea.vmem [#allocation10], %s587
          %s590 = ssub.s32 32, 32
          %591 = vsyncadd %s585, %s590
          %s592 = smul.addr %s54, 2
          %s593 = smul.addr %s592, 16
          %s594 = scalar_lea.hbm %s4, %s593
          %s596 = sshll.u32 %s588, 4
          %s597 = int_to_ptr.vmem [resolvable:$true] %s596
          %599 = dma.hbm_to_vmem [thread:$0]  %s594, 32, %s597, %s585
        $region44: #{clip_forward.1} parent=23 // pred_fallthru
          _
        // Predicated region
        $region45: #{clip_forward.1} parent=23 // pred_check
          %p600 = pneg %p208
        $region46: #{clip_forward.1} parent=23 // pred_check_branch
          %602 = sbr.rel (%p600) target = $region48
        $region47: #{clip_forward.1} parent=23 // pred_region
          %s603 = sand.u32 %s46, 1
          %s604 = scalar_lea.sflag [#allocation12], %s603
          %s605 = sand.u32 %s198, 1
          %s606 = smul.addr %s605, 32
          %s607 = scalar_lea.vmem [#allocation11], %s606
          %s609 = ssub.s32 512, 512
          %610 = vsyncadd %s604, %s609
          %s611 = smul.addr %s54, 8
          %s612 = smul.addr %s611, 64
          %s613 = scalar_lea.hbm %s5, %s612
          %s614 = sshll.u32 %s607, 4
          %s615 = int_to_ptr.vmem [resolvable:$true] %s614
          %620 = dma.hbm_to_vmem [thread:$0]  %s613, 512, %s615, %s604, 64, 64, 4
        $region48: #{clip_forward.1} parent=23 // pred_fallthru
          _
        // Predicated region
        $region49: #{clip_forward.1} parent=23 // pred_check
          %p621 = pneg %p234
        $region50: #{clip_forward.1} parent=23 // pred_check_branch
          %623 = sbr.rel (%p621) target = $region52
        $region51: #{clip_forward.1} parent=23 // pred_region
          %s624 = sand.u32 %s46, 1
          %s625 = scalar_lea.sflag [#allocation12], %s624
          %s626 = sand.u32 %s224, 1
          %s627 = scalar_lea.vmem [#allocation13], %s626
          %s629 = ssub.s32 16, 16
          %630 = vsyncadd %s625, %s629
          %s631 = smul.addr %s54, 16
          %s632 = scalar_lea.hbm %s6, %s631
          %s634 = sshll.u32 %s627, 4
          %s635 = int_to_ptr.vmem [resolvable:$true] %s634
          %637 = dma.hbm_to_vmem [thread:$0]  %s632, 16, %s635, %s625
        $region52: #{clip_forward.1} parent=23 // pred_fallthru
          _
        // Predicated region
        $region53: #{clip_forward.1} parent=23 // pred_check
          %p638 = pneg %p260
        $region54: #{clip_forward.1} parent=23 // pred_check_branch
          %640 = sbr.rel (%p638) target = $region56
        $region55: #{clip_forward.1} parent=23 // pred_region
          %s641 = sand.u32 %s46, 1
          %s642 = scalar_lea.sflag [#allocation15], %s641
          %s643 = sand.u32 %s250, 1
          %s644 = scalar_lea.vmem [#allocation14], %s643
          %s646 = ssub.s32 16, 16
          %647 = vsyncadd %s642, %s646
          %s648 = smul.addr %s54, 16
          %s649 = scalar_lea.hbm %s7, %s648
          %s651 = sshll.u32 %s644, 4
          %s652 = int_to_ptr.vmem [resolvable:$true] %s651
          %654 = dma.hbm_to_vmem [thread:$0]  %s649, 16, %s652, %s642
        $region56: #{clip_forward.1} parent=23 // pred_fallthru
          _
        // Predicated region
        $region57: #{clip_forward.1} parent=23 // pred_check
          %p655 = pneg %p286
        $region58: #{clip_forward.1} parent=23 // pred_check_branch
          %657 = sbr.rel (%p655) target = $region60
        $region59: #{clip_forward.1} parent=23 // pred_region
          %s658 = sand.u32 %s46, 1
          %s659 = scalar_lea.sflag [#allocation15], %s658
          %s660 = sand.u32 %s276, 1
          %s661 = scalar_lea.vmem [#allocation16], %s660
          %s663 = ssub.s32 16, 16
          %664 = vsyncadd %s659, %s663
          %s665 = smul.addr %s54, 16
          %s666 = scalar_lea.hbm %s8, %s665
          %s668 = sshll.u32 %s661, 4
          %s669 = int_to_ptr.vmem [resolvable:$true] %s668
          %671 = dma.hbm_to_vmem [thread:$0]  %s666, 16, %s669, %s659
        $region60: #{clip_forward.1} parent=23 // pred_fallthru
          _
        // Predicated region
        $region61: #{clip_forward.1} parent=23 // pred_check
          %p672 = pneg %p312
        $region62: #{clip_forward.1} parent=23 // pred_check_branch
          %674 = sbr.rel (%p672) target = $region64
        $region63: #{clip_forward.1} parent=23 // pred_region
          %s675 = sand.u32 %s46, 1
          %s676 = scalar_lea.sflag [#allocation18], %s675
          %s677 = sand.u32 %s302, 1
          %s678 = smul.addr %s677, 64
          %s679 = scalar_lea.vmem [#allocation17], %s678
          %s681 = ssub.s32 1024, 1024
          %682 = vsyncadd %s676, %s681
          %s683 = smul.addr %s54, 16
          %s684 = smul.addr %s683, 64
          %s685 = scalar_lea.hbm %s9, %s684
          %s686 = sshll.u32 %s679, 4
          %s687 = int_to_ptr.vmem [resolvable:$true] %s686
          %692 = dma.hbm_to_vmem [thread:$0]  %s685, 1024, %s687, %s676, 128, 128, 8
        $region64: #{clip_forward.1} parent=23 // pred_fallthru
          _
        // Predicated region
        $region65: #{clip_forward.1} parent=23 // pred_check
          %p693 = pneg %p338
        $region66: #{clip_forward.1} parent=23 // pred_check_branch
          %695 = sbr.rel (%p693) target = $region68
        $region67: #{clip_forward.1} parent=23 // pred_region
          %s696 = sand.u32 %s46, 1
          %s697 = scalar_lea.sflag [#allocation18], %s696
          %s698 = sand.u32 %s328, 1
          %s699 = smul.addr %s698, 2
          %s700 = scalar_lea.vmem [#allocation19], %s699
          %s702 = ssub.s32 32, 32
          %703 = vsyncadd %s697, %s702
          %s704 = smul.addr %s54, 2
          %s705 = smul.addr %s704, 16
          %s706 = scalar_lea.hbm %s10, %s705
          %s708 = sshll.u32 %s700, 4
          %s709 = int_to_ptr.vmem [resolvable:$true] %s708
          %711 = dma.hbm_to_vmem [thread:$0]  %s706, 32, %s709, %s697
        $region68: #{clip_forward.1} parent=23 // pred_fallthru
          _
        // Predicated region
        $region69: #{clip_forward.1} parent=23 // pred_check
          %p712 = pneg %p364
        $region70: #{clip_forward.1} parent=23 // pred_check_branch
          %714 = sbr.rel (%p712) target = $region72
        $region71: #{clip_forward.1} parent=23 // pred_region
          %s715 = sand.u32 %s46, 1
          %s716 = scalar_lea.sflag [#allocation21], %s715
          %s717 = sand.u32 %s354, 1
          %s718 = smul.addr %s717, 128
          %s719 = scalar_lea.vmem [#allocation20], %s718
          %s721 = ssub.s32 2048, 2048
          %722 = vsyncadd %s716, %s721
          %s723 = smul.addr %s54, 32
          %s724 = smul.addr %s723, 64
          %s725 = scalar_lea.hbm %s11, %s724
          %s726 = sshll.u32 %s719, 4
          %s727 = int_to_ptr.vmem [resolvable:$true] %s726
          %732 = dma.hbm_to_vmem [thread:$0]  %s725, 2048, %s727, %s716, 64, 64, 4
        $region72: #{clip_forward.1} parent=23 // pred_fallthru
          _
        // Predicated region
        $region73: #{clip_forward.1} parent=23 // pred_check
          %p733 = pneg %p390
        $region74: #{clip_forward.1} parent=23 // pred_check_branch
          %735 = sbr.rel (%p733) target = $region76
        $region75: #{clip_forward.1} parent=23 // pred_region
          %s736 = sand.u32 %s46, 1
          %s737 = scalar_lea.sflag [#allocation21], %s736
          %s738 = sand.u32 %s380, 1
          %s739 = scalar_lea.vmem [#allocation22], %s738
          %s741 = ssub.s32 16, 16
          %742 = vsyncadd %s737, %s741
          %s743 = smul.addr %s54, 16
          %s744 = scalar_lea.hbm %s12, %s743
          %s746 = sshll.u32 %s739, 4
          %s747 = int_to_ptr.vmem [resolvable:$true] %s746
          %749 = dma.hbm_to_vmem [thread:$0]  %s744, 16, %s747, %s737
        $region76: #{clip_forward.1} parent=23 // pred_fallthru
          _
      $region24: #{clip_forward.1} parent=5 // pred_fallthru
        _
      %p750 = scmp.le.s32.totalorder 1, %s46
      %p751 = scmp.lt.s32.totalorder %s46, 5
      %p752 = pnand %p750, %p751
      %p753 = pneg %p752
      // Predicated region
      $region77: #{clip_forward.1} parent=5 // pred_check
        _
      $region78: #{clip_forward.1} parent=5 // pred_check_branch
        %755 = sbr.rel (%p752) target = $region80
      $region79: #{clip_forward.1} parent=5 // pred_region
        %s756 = ssub.s32 %s46, 1
        %s757 = sand.u32 %s71, 1
        %s758 = scalar_lea.sflag [#allocation3], %s757
        %s759 = sand.u32 %s71, 1
        %s760 = smul.addr %s759, 16
        %s761 = scalar_lea.vmem [#allocation2], %s760
        // Predicated region
        $region81: #{clip_forward.1} parent=79 // pred_check
          %p762 = pneg %p84
        $region82: #{clip_forward.1} parent=79 // pred_check_branch
          %764 = sbr.rel (%p762) target = $region84
        $region83: #{clip_forward.1} parent=79 // pred_region
          %765 = dma.done %s758, 256
        $region84: #{clip_forward.1} parent=79 // pred_fallthru
          _
        %s766 = sand.u32 %s51, 1
        %s767 = scalar_lea.sflag [#allocation6], %s766
        %s768 = sand.u32 %s97, 1
        %s769 = scalar_lea.vmem [#allocation5], %s768
        // Predicated region
        $region85: #{clip_forward.1} parent=79 // pred_check
          %p770 = pneg %p110
        $region86: #{clip_forward.1} parent=79 // pred_check_branch
          %772 = sbr.rel (%p770) target = $region88
        $region87: #{clip_forward.1} parent=79 // pred_region
          %773 = dma.done %s767, 16
        $region88: #{clip_forward.1} parent=79 // pred_fallthru
          _
        %s774 = sand.u32 %s51, 1
        %s775 = scalar_lea.sflag [#allocation6], %s774
        %s776 = sand.u32 %s123, 1
        %s777 = scalar_lea.vmem [#allocation7], %s776
        // Predicated region
        $region89: #{clip_forward.1} parent=79 // pred_check
          %p778 = pneg %p136
        $region90: #{clip_forward.1} parent=79 // pred_check_branch
          %780 = sbr.rel (%p778) target = $region92
        $region91: #{clip_forward.1} parent=79 // pred_region
          %781 = dma.done %s775, 16
        $region92: #{clip_forward.1} parent=79 // pred_fallthru
          _
        %s782 = sand.u32 %s51, 1
        %s783 = scalar_lea.sflag [#allocation9], %s782
        %s784 = sand.u32 %s149, 1
        %s785 = smul.addr %s784, 64
        %s786 = scalar_lea.vmem [#allocation8], %s785
        // Predicated region
        $region93: #{clip_forward.1} parent=79 // pred_check
          %p787 = pneg %p162
        $region94: #{clip_forward.1} parent=79 // pred_check_branch
          %789 = sbr.rel (%p787) target = $region96
        $region95: #{clip_forward.1} parent=79 // pred_region
          %790 = dma.done %s783, 1024
        $region96: #{clip_forward.1} parent=79 // pred_fallthru
          _
        %s791 = sand.u32 %s51, 1
        %s792 = scalar_lea.sflag [#allocation9], %s791
        %s793 = sand.u32 %s175, 1
        %s794 = smul.addr %s793, 2
        %s795 = scalar_lea.vmem [#allocation10], %s794
        // Predicated region
        $region97: #{clip_forward.1} parent=79 // pred_check
          %p796 = pneg %p188
        $region98: #{clip_forward.1} parent=79 // pred_check_branch
          %798 = sbr.rel (%p796) target = $region100
        $region99: #{clip_forward.1} parent=79 // pred_region
          %799 = dma.done %s792, 32
        $region100: #{clip_forward.1} parent=79 // pred_fallthru
          _
        %s800 = sand.u32 %s51, 1
        %s801 = scalar_lea.sflag [#allocation12], %s800
        %s802 = sand.u32 %s201, 1
        %s803 = smul.addr %s802, 32
        %s804 = scalar_lea.vmem [#allocation11], %s803
        // Predicated region
        $region101: #{clip_forward.1} parent=79 // pred_check
          %p805 = pneg %p214
        $region102: #{clip_forward.1} parent=79 // pred_check_branch
          %807 = sbr.rel (%p805) target = $region104
        $region103: #{clip_forward.1} parent=79 // pred_region
          %808 = dma.done %s801, 512
        $region104: #{clip_forward.1} parent=79 // pred_fallthru
          _
        %s809 = sand.u32 %s51, 1
        %s810 = scalar_lea.sflag [#allocation12], %s809
        %s811 = sand.u32 %s227, 1
        %s812 = scalar_lea.vmem [#allocation13], %s811
        // Predicated region
        $region105: #{clip_forward.1} parent=79 // pred_check
          %p813 = pneg %p240
        $region106: #{clip_forward.1} parent=79 // pred_check_branch
          %815 = sbr.rel (%p813) target = $region108
        $region107: #{clip_forward.1} parent=79 // pred_region
          %816 = dma.done %s810, 16
        $region108: #{clip_forward.1} parent=79 // pred_fallthru
          _
        %s817 = sand.u32 %s51, 1
        %s818 = scalar_lea.sflag [#allocation15], %s817
        %s819 = sand.u32 %s253, 1
        %s820 = scalar_lea.vmem [#allocation14], %s819
        // Predicated region
        $region109: #{clip_forward.1} parent=79 // pred_check
          %p821 = pneg %p266
        $region110: #{clip_forward.1} parent=79 // pred_check_branch
          %823 = sbr.rel (%p821) target = $region112
        $region111: #{clip_forward.1} parent=79 // pred_region
          %824 = dma.done %s818, 16
        $region112: #{clip_forward.1} parent=79 // pred_fallthru
          _
        %s825 = sand.u32 %s51, 1
        %s826 = scalar_lea.sflag [#allocation15], %s825
        %s827 = sand.u32 %s279, 1
        %s828 = scalar_lea.vmem [#allocation16], %s827
        // Predicated region
        $region113: #{clip_forward.1} parent=79 // pred_check
          %p829 = pneg %p292
        $region114: #{clip_forward.1} parent=79 // pred_check_branch
          %831 = sbr.rel (%p829) target = $region116
        $region115: #{clip_forward.1} parent=79 // pred_region
          %832 = dma.done %s826, 16
        $region116: #{clip_forward.1} parent=79 // pred_fallthru
          _
        %s833 = sand.u32 %s51, 1
        %s834 = scalar_lea.sflag [#allocation18], %s833
        %s835 = sand.u32 %s305, 1
        %s836 = smul.addr %s835, 64
        %s837 = scalar_lea.vmem [#allocation17], %s836
        // Predicated region
        $region117: #{clip_forward.1} parent=79 // pred_check
          %p838 = pneg %p318
        $region118: #{clip_forward.1} parent=79 // pred_check_branch
          %840 = sbr.rel (%p838) target = $region120
        $region119: #{clip_forward.1} parent=79 // pred_region
          %841 = dma.done %s834, 1024
        $region120: #{clip_forward.1} parent=79 // pred_fallthru
          _
        %s842 = sand.u32 %s51, 1
        %s843 = scalar_lea.sflag [#allocation18], %s842
        %s844 = sand.u32 %s331, 1
        %s845 = smul.addr %s844, 2
        %s846 = scalar_lea.vmem [#allocation19], %s845
        // Predicated region
        $region121: #{clip_forward.1} parent=79 // pred_check
          %p847 = pneg %p344
        $region122: #{clip_forward.1} parent=79 // pred_check_branch
          %849 = sbr.rel (%p847) target = $region124
        $region123: #{clip_forward.1} parent=79 // pred_region
          %850 = dma.done %s843, 32
        $region124: #{clip_forward.1} parent=79 // pred_fallthru
          _
        %s851 = sand.u32 %s51, 1
        %s852 = scalar_lea.sflag [#allocation21], %s851
        %s853 = sand.u32 %s357, 1
        %s854 = smul.addr %s853, 128
        %s855 = scalar_lea.vmem [#allocation20], %s854
        // Predicated region
        $region125: #{clip_forward.1} parent=79 // pred_check
          %p856 = pneg %p370
        $region126: #{clip_forward.1} parent=79 // pred_check_branch
          %858 = sbr.rel (%p856) target = $region128
        $region127: #{clip_forward.1} parent=79 // pred_region
          %859 = dma.done %s852, 2048
        $region128: #{clip_forward.1} parent=79 // pred_fallthru
          _
        %s860 = sand.u32 %s51, 1
        %s861 = scalar_lea.sflag [#allocation21], %s860
        %s862 = sand.u32 %s383, 1
        %s863 = scalar_lea.vmem [#allocation22], %s862
        // Predicated region
        $region129: #{clip_forward.1} parent=79 // pred_check
          %p864 = pneg %p396
        $region130: #{clip_forward.1} parent=79 // pred_check_branch
          %866 = sbr.rel (%p864) target = $region132
        $region131: #{clip_forward.1} parent=79 // pred_region
          %867 = dma.done %s861, 16
        $region132: #{clip_forward.1} parent=79 // pred_fallthru
          _
        // Predicated region
        $region133: #{clip_forward.1} parent=79 // pred_check
          %p868 = pneg %p417
        $region134: #{clip_forward.1} parent=79 // pred_check_branch
          %870 = sbr.rel (%p868) target = $region136
        $region135: #{clip_forward.1} parent=79 // pred_region
          %871 = dma.done [#allocation24], 16
        $region136: #{clip_forward.1} parent=79 // pred_fallthru
          _
        // Predicated region
        $region137: #{clip_forward.1} parent=79 // pred_check
          %p872 = pneg %p438
        $region138: #{clip_forward.1} parent=79 // pred_check_branch
          %874 = sbr.rel (%p872) target = $region140
        $region139: #{clip_forward.1} parent=79 // pred_region
          %875 = dma.done [#allocation24], 16
        $region140: #{clip_forward.1} parent=79 // pred_fallthru
          _
        %s876 = sand.u32 %s71, 1
        %s877 = scalar_lea.sflag [#allocation3], %s876
        %s878 = sand.u32 %s71, 1
        %s879 = smul.addr %s878, 16
        %s880 = scalar_lea.vmem [#allocation2], %s879
        %p881 = pneg %p84
        %p882 = pneg %p81
        %s883 = sand.u32 %s51, 1
        %s884 = scalar_lea.sflag [#allocation6], %s883
        %s885 = sand.u32 %s97, 1
        %s886 = scalar_lea.vmem [#allocation5], %s885
        %p887 = pneg %p110
        %p888 = pneg %p107
        %s889 = sand.u32 %s51, 1
        %s890 = scalar_lea.sflag [#allocation6], %s889
        %s891 = sand.u32 %s123, 1
        %s892 = scalar_lea.vmem [#allocation7], %s891
        %p893 = pneg %p136
        %p894 = pneg %p133
        %s895 = sand.u32 %s51, 1
        %s896 = scalar_lea.sflag [#allocation9], %s895
        %s897 = sand.u32 %s149, 1
        %s898 = smul.addr %s897, 64
        %s899 = scalar_lea.vmem [#allocation8], %s898
        %p900 = pneg %p162
        %p901 = pneg %p159
        %s902 = sand.u32 %s51, 1
        %s903 = scalar_lea.sflag [#allocation9], %s902
        %s904 = sand.u32 %s175, 1
        %s905 = smul.addr %s904, 2
        %s906 = scalar_lea.vmem [#allocation10], %s905
        %p907 = pneg %p188
        %p908 = pneg %p185
        %s909 = sand.u32 %s51, 1
        %s910 = scalar_lea.sflag [#allocation12], %s909
        %s911 = sand.u32 %s201, 1
        %s912 = smul.addr %s911, 32
        %s913 = scalar_lea.vmem [#allocation11], %s912
        %p914 = pneg %p214
        %p915 = pneg %p211
        %s916 = sand.u32 %s51, 1
        %s917 = scalar_lea.sflag [#allocation12], %s916
        %s918 = sand.u32 %s227, 1
        %s919 = scalar_lea.vmem [#allocation13], %s918
        %p920 = pneg %p240
        %p921 = pneg %p237
        %s922 = sand.u32 %s51, 1
        %s923 = scalar_lea.sflag [#allocation15], %s922
        %s924 = sand.u32 %s253, 1
        %s925 = scalar_lea.vmem [#allocation14], %s924
        %p926 = pneg %p266
        %p927 = pneg %p263
        %s928 = sand.u32 %s51, 1
        %s929 = scalar_lea.sflag [#allocation15], %s928
        %s930 = sand.u32 %s279, 1
        %s931 = scalar_lea.vmem [#allocation16], %s930
        %p932 = pneg %p292
        %p933 = pneg %p289
        %s934 = sand.u32 %s51, 1
        %s935 = scalar_lea.sflag [#allocation18], %s934
        %s936 = sand.u32 %s305, 1
        %s937 = smul.addr %s936, 64
        %s938 = scalar_lea.vmem [#allocation17], %s937
        %p939 = pneg %p318
        %p940 = pneg %p315
        %s941 = sand.u32 %s51, 1
        %s942 = scalar_lea.sflag [#allocation18], %s941
        %s943 = sand.u32 %s331, 1
        %s944 = smul.addr %s943, 2
        %s945 = scalar_lea.vmem [#allocation19], %s944
        %p946 = pneg %p344
        %p947 = pneg %p341
        %s948 = sand.u32 %s51, 1
        %s949 = scalar_lea.sflag [#allocation21], %s948
        %s950 = sand.u32 %s357, 1
        %s951 = smul.addr %s950, 128
        %s952 = scalar_lea.vmem [#allocation20], %s951
        %p953 = pneg %p370
        %p954 = pneg %p367
        %s955 = sand.u32 %s51, 1
        %s956 = scalar_lea.sflag [#allocation21], %s955
        %s957 = sand.u32 %s383, 1
        %s958 = scalar_lea.vmem [#allocation22], %s957
        %p959 = pneg %p396
        %p960 = pneg %p393
        %p961 = pneg %p417
        %p962 = pneg %p414
        %p963 = pneg %p438
        %p964 = pneg %p435
        %p965 = pneg %p464
        %p966 = pneg %p461
        %s967 = sand.u32 %s451, 1
        %s968 = scalar_lea.sflag [#allocation4], %s967
        %s969 = sand.u32 %s451, 1
        %s970 = smul.addr %s969, 16
        %s971 = scalar_lea.vmem [#allocation26], %s970
        %p973 = scmp.eq.s32.totalorder %s56, 0
        // Predicated region
        $region141: #{clip_forward.1} parent=79 // pred_check
          %p974 = pneg %p973
        $region142: #{clip_forward.1} parent=79 // pred_check_branch
          %976 = sbr.rel (%p974) target = $region144
        $region143: #{clip_forward.1} parent=79 // pred_region
          %v977 = vld [vmem:[%s761] sm:$0xff]
          %v978 = vld [vmem:[%s761 + $0x8] sm:$0xff]
          %vm979 = vcmask 523264
          %980 = vst.msk [vmem:[%s971] sm:$0xff] %vm979, %v977
          %981 = vst.msk [vmem:[%s971 + $0x8] sm:$0xff] %vm979, %v978
        $region144: #{clip_forward.1} parent=79 // pred_fallthru
          _
        %v982 = vld [vmem:[%s971] sm:$0xff]
        %v983 = vld [vmem:[%s971 + $0x8] sm:$0xff]
        %v984 = vld [vmem:[%s769] sm:$0x1]
        %v985 = vld [vmem:[%s777] sm:$0x1]
        %vm986 = vcmask 523264
        %v987 = vsel %vm986, %v982, 0.0
        %988 = vadd.xlane.f32.xlu0 %v987
        %v989 = vpop.xlane.xlu0 %988
        %v990 = vsel %vm986, %v983, 0.0
        %991 = vadd.xlane.f32.xlu0 %v990
        %v992 = vpop.xlane.xlu0 %991
        %v993 = vrcp.pop 64.0
        %v994 = vmul.f32 %v989, %v993
        %v995 = vmul.f32 %v992, %v993
        %v996 = vmul.f32 %v982, %v982
        %v997 = vmul.f32 %v983, %v983
        %v998 = vsel %vm986, %v996, 0.0
        %999 = vadd.xlane.f32.xlu0 %v998
        %v1000 = vpop.xlane.xlu0 %999
        %v1001 = vsel %vm986, %v997, 0.0
        %1002 = vadd.xlane.f32.xlu0 %v1001
        %v1003 = vpop.xlane.xlu0 %1002
        %v1004 = vmul.f32 %v1000, %v993
        %v1005 = vmul.f32 %v1003, %v993
        %v1006 = vmul.f32 %v994, %v994
        %v1007 = vmul.f32 %v995, %v995
        %v1008 = vsub.f32 %v1004, %v1006
        %v1009 = vsub.f32 %v1005, %v1007
        %v1010 = vadd.f32 %v1008, 1e-05
        %v1011 = vadd.f32 %v1009, 1e-05
        %v1012 = vrsqrt.pop %v1010
        %v1013 = vrsqrt.pop %v1011
        %v1014 = vsub.f32 %v982, %v994
        %v1015 = vsub.f32 %v983, %v995
        %v1016 = vmul.f32 %v1014, %v1012
        %v1017 = vmul.f32 %v1015, %v1013
        %v1019 = vlaneseq
        %v1020 = vshrl.u32 %v1019, 7
        %v1021 = vsub.s32 0, %v1020
        %v1022 = vrot.slane %v984, %v1021
        %v1024 = vmul.f32 %v1016, %v1022
        %v1025 = vmul.f32 %v1017, %v1022
        %v1027 = vlaneseq
        %v1028 = vshrl.u32 %v1027, 7
        %v1029 = vsub.s32 0, %v1028
        %v1030 = vrot.slane %v985, %v1029
        %v1032 = vadd.f32 %v1024, %v1030
        %v1033 = vadd.f32 %v1025, %v1030
        %v1034 = vpack.c.bf16 %v1033, %v1032
        %v1035 = vld [vmem:[%s786] sm:$0xff]
        %v1036 = vld [vmem:[%s786 + $0x8] sm:$0xff]
        %v1037 = vld [vmem:[%s786 + $0x10] sm:$0xff]
        %v1038 = vld [vmem:[%s786 + $0x18] sm:$0xff]
        %v1039 = vld [vmem:[%s786 + $0x20] sm:$0xff]
        %v1040 = vld [vmem:[%s786 + $0x28] sm:$0xff]
        %v1041 = vld [vmem:[%s786 + $0x30] sm:$0xff]
        %v1042 = vld [vmem:[%s786 + $0x38] sm:$0xff]
        %v1043 = vld [vmem:[%s795] sm:$0x3]
        %v1045 = vlaneseq
        %v1046 = vshrl.u32 %v1045, 7
        %v1047 = vsub.s32 0, %v1046
        %v1048 = vrot.slane %v1043, %v1047
        %v1049 = vlaneseq
        %v1050 = vshrl.u32 %v1049, 7
        %v1051 = vsub.s32 1, %v1050
        %v1052 = vrot.slane %v1043, %v1051
        %v1063 = vunpack.c.l.b16 %v1035
        %v1064 = vunpack.c.h.b16 %v1035
        %v1065 = vunpack.c.l.b16 %v1036
        %v1066 = vunpack.c.h.b16 %v1036
        %v1067 = vunpack.c.l.b16 %v1037
        %v1068 = vunpack.c.h.b16 %v1037
        %v1069 = vunpack.c.l.b16 %v1038
        %v1070 = vunpack.c.h.b16 %v1038
        %v1071 = vunpack.c.l.b16 %v1039
        %v1072 = vunpack.c.h.b16 %v1039
        %v1073 = vunpack.c.l.b16 %v1040
        %v1074 = vunpack.c.h.b16 %v1040
        %v1075 = vunpack.c.l.b16 %v1041
        %v1076 = vunpack.c.h.b16 %v1041
        %v1077 = vunpack.c.l.b16 %v1042
        %v1078 = vunpack.c.h.b16 %v1042
        %v1079 = vpack.c.b16 %v1065, %v1063
        %v1080 = vpack.c.b16 %v1066, %v1064
        %v1081 = vpack.c.b16 %v1069, %v1067
        %v1082 = vpack.c.b16 %v1070, %v1068
        %v1083 = vpack.c.b16 %v1073, %v1071
        %v1084 = vpack.c.b16 %v1074, %v1072
        %v1085 = vpack.c.b16 %v1077, %v1075
        %v1086 = vpack.c.b16 %v1078, %v1076
        %v1096 = vsel %vm986, %v1034, 0
        %1098 = vmatprep.subr.bf16.mxu0 %v1080
        %1099 = vmatpush1.bf16.msra.mxu0 %v1079
        %1100 = vmatprep.subr.bf16.mxu0 %v1082
        %1101 = vmatpush1.bf16.msra.mxu0 %v1081
        %1102 = vmatprep.subr.bf16.mxu0 %v1084
        %1103 = vmatpush1.bf16.msra.mxu0 %v1083
        %1104 = vmatprep.subr.bf16.mxu0 %v1086
        %1105 = vmatpush1.bf16.msra.mxu0 %v1085
        %1106 = vmatprep.subr.bf16.mxu0 0
        %1107 = vmatpush1.bf16.msra.mxu0 0
        %1108 = vmatprep.subr.bf16.mxu0 0
        %1109 = vmatpush1.bf16.msra.mxu0 0
        %1110 = vmatprep.subr.bf16.mxu0 0
        %1111 = vmatpush1.bf16.msra.mxu0 0
        %1112 = vmatprep.subr.bf16.mxu0 0
        %1113 = vmatpush1.bf16.msra.mxu0 0
        %1114 = vmatprep.subr.bf16.mxu0 0
        %1115 = vmatpush1.bf16.msra.mxu0 0
        %1116 = vmatprep.subr.bf16.mxu0 0
        %1117 = vmatpush1.bf16.msra.mxu0 0
        %1118 = vmatprep.subr.bf16.mxu0 0
        %1119 = vmatpush1.bf16.msra.mxu0 0
        %1120 = vmatprep.subr.bf16.mxu0 0
        %1121 = vmatpush1.bf16.msra.mxu0 0
        %1122 = vmatprep.subr.bf16.mxu0 0
        %1123 = vmatpush1.bf16.msra.mxu0 0
        %1124 = vmatprep.subr.bf16.mxu0 0
        %1125 = vmatpush1.bf16.msra.mxu0 0
        %1126 = vmatprep.subr.bf16.mxu0 0
        %1127 = vmatpush1.bf16.msra.mxu0 0
        %1128 = vmatprep.subr.bf16.mxu0 0
        %1129 = vmatpush1.bf16.msra.mxu0 0
        %1130 = vmatprep.mubr.bf16.mxu0 0
        %1131 = vmatmul.mubr.bf16.gmra.mrb[0].mxu0 %v1096
        %v1132 = vpop.f32.mrb[0].mxu0
        %v1133 = vadd.f32 %v1048, %v1132
        %v1134 = vpop.f32.mrb[0].mxu0
        %v1135 = vadd.f32 %v1052, %v1134
        %v1136 = vpop.f32.mrb[0].mxu0
        %v1137 = vadd.f32 %v1048, %v1136
        %v1138 = vpop.f32.mrb[0].mxu0
        %v1139 = vadd.f32 %v1052, %v1138
        %1140 = vdwg.mxu0
        %v1141 = vpack.c.bf16 %v1137, %v1133
        %v1142 = vpack.c.bf16 %v1139, %v1135
        %1144 = vrot.lane.b32.xlu0 %v1141, 112
        %v1145 = vpop.permute.xlu0 %1144
        %1146 = vrot.lane.b32.xlu0 %v1141, 96
        %v1147 = vpop.permute.xlu0 %1146
        %1148 = vrot.lane.b32.xlu0 %v1141, 80
        %v1149 = vpop.permute.xlu0 %1148
        %v1152 = vpack.i.b16 %v1145, %v1141
        %v1154 = vshrl.u32 %v1141, 16
        %v1155 = vshrl.u32 %v1145, 16
        %v1156 = vpack.i.b16 %v1155, %v1154
        %v1160 = vpack.i.b16 %v1149, %v1147
        %v1162 = vshrl.u32 %v1147, 16
        %v1163 = vshrl.u32 %v1149, 16
        %v1164 = vpack.i.b16 %v1163, %v1162
        %v1167 = vpack.i.b16 0, 0
        %v1169 = vshrl.u32 0, 16
        %v1170 = vpack.i.b16 %v1169, %v1169
        %v1172 = vcombine.high %v1152, %v1167
        %v1174 = vunpack.c.l.s4 1983009808
        %v1175 = vunpack.c.0.s8 %v1174
        %v1176 = vlaneseq
        %v1177 = vshrl.u32 %v1176, 7
        %v1178 = vsub.s32 %v1175, %v1177
        %v1179 = vrot.slane %v1152, %v1178
        %v1181 = vunpack.c.l.s4 1983009808
        %v1182 = vunpack.c.0.s8 %v1181
        %v1183 = vlaneseq
        %v1184 = vshrl.u32 %v1183, 7
        %v1185 = vsub.s32 %v1182, %v1184
        %v1186 = vrot.slane %v1172, %v1185
        %v1187 = vcombine.high %v1160, %v1167
        %v1189 = vunpack.c.l.s4 1983009808
        %v1190 = vunpack.c.0.s8 %v1189
        %v1191 = vlaneseq
        %v1192 = vshrl.u32 %v1191, 7
        %v1193 = vsub.s32 %v1190, %v1192
        %v1194 = vrot.slane %v1160, %v1193
        %v1196 = vunpack.c.l.s4 1983009808
        %v1197 = vunpack.c.0.s8 %v1196
        %v1198 = vlaneseq
        %v1199 = vshrl.u32 %v1198, 7
        %v1200 = vsub.s32 %v1197, %v1199
        %v1201 = vrot.slane %v1187, %v1200
        %v1202 = vcombine.low %v1179, %v1194
        %v1203 = vcombine.high %v1179, %v1194
        %v1205 = vunpack.c.l.s4 1934713408
        %v1206 = vunpack.c.0.s8 %v1205
        %v1207 = vlaneseq
        %v1208 = vshrl.u32 %v1207, 7
        %v1209 = vsub.s32 %v1206, %v1208
        %v1210 = vrot.slane %v1202, %v1209
        %v1212 = vunpack.c.l.s4 1934713408
        %v1213 = vunpack.c.0.s8 %v1212
        %v1214 = vlaneseq
        %v1215 = vshrl.u32 %v1214, 7
        %v1216 = vsub.s32 %v1213, %v1215
        %v1217 = vrot.slane %v1203, %v1216
        %v1218 = vcombine.low %v1186, %v1201
        %v1219 = vcombine.high %v1186, %v1201
        %v1221 = vunpack.c.l.s4 1934713408
        %v1222 = vunpack.c.0.s8 %v1221
        %v1223 = vlaneseq
        %v1224 = vshrl.u32 %v1223, 7
        %v1225 = vsub.s32 %v1222, %v1224
        %v1226 = vrot.slane %v1218, %v1225
        %v1228 = vunpack.c.l.s4 1934713408
        %v1229 = vunpack.c.0.s8 %v1228
        %v1230 = vlaneseq
        %v1231 = vshrl.u32 %v1230, 7
        %v1232 = vsub.s32 %v1229, %v1231
        %v1233 = vrot.slane %v1219, %v1232
        %v1234 = vcombine.high %v1210, 0
        %v1235 = vcombine.high %v1217, 0
        %v1236 = vcombine.high %v1226, 0
        %v1237 = vcombine.high %v1233, 0
        %v1238 = vcombine.high %v1156, %v1170
        %v1240 = vunpack.c.l.s4 1983009808
        %v1241 = vunpack.c.0.s8 %v1240
        %v1242 = vlaneseq
        %v1243 = vshrl.u32 %v1242, 7
        %v1244 = vsub.s32 %v1241, %v1243
        %v1245 = vrot.slane %v1156, %v1244
        %v1247 = vunpack.c.l.s4 1983009808
        %v1248 = vunpack.c.0.s8 %v1247
        %v1249 = vlaneseq
        %v1250 = vshrl.u32 %v1249, 7
        %v1251 = vsub.s32 %v1248, %v1250
        %v1252 = vrot.slane %v1238, %v1251
        %v1253 = vcombine.high %v1164, %v1170
        %v1255 = vunpack.c.l.s4 1983009808
        %v1256 = vunpack.c.0.s8 %v1255
        %v1257 = vlaneseq
        %v1258 = vshrl.u32 %v1257, 7
        %v1259 = vsub.s32 %v1256, %v1258
        %v1260 = vrot.slane %v1164, %v1259
        %v1262 = vunpack.c.l.s4 1983009808
        %v1263 = vunpack.c.0.s8 %v1262
        %v1264 = vlaneseq
        %v1265 = vshrl.u32 %v1264, 7
        %v1266 = vsub.s32 %v1263, %v1265
        %v1267 = vrot.slane %v1253, %v1266
        %v1268 = vcombine.low %v1245, %v1260
        %v1269 = vcombine.high %v1245, %v1260
        %v1271 = vunpack.c.l.s4 1934713408
        %v1272 = vunpack.c.0.s8 %v1271
        %v1273 = vlaneseq
        %v1274 = vshrl.u32 %v1273, 7
        %v1275 = vsub.s32 %v1272, %v1274
        %v1276 = vrot.slane %v1268, %v1275
        %v1278 = vunpack.c.l.s4 1934713408
        %v1279 = vunpack.c.0.s8 %v1278
        %v1280 = vlaneseq
        %v1281 = vshrl.u32 %v1280, 7
        %v1282 = vsub.s32 %v1279, %v1281
        %v1283 = vrot.slane %v1269, %v1282
        %v1284 = vcombine.low %v1252, %v1267
        %v1285 = vcombine.high %v1252, %v1267
        %v1287 = vunpack.c.l.s4 1934713408
        %v1288 = vunpack.c.0.s8 %v1287
        %v1289 = vlaneseq
        %v1290 = vshrl.u32 %v1289, 7
        %v1291 = vsub.s32 %v1288, %v1290
        %v1292 = vrot.slane %v1284, %v1291
        %v1294 = vunpack.c.l.s4 1934713408
        %v1295 = vunpack.c.0.s8 %v1294
        %v1296 = vlaneseq
        %v1297 = vshrl.u32 %v1296, 7
        %v1298 = vsub.s32 %v1295, %v1297
        %v1299 = vrot.slane %v1285, %v1298
        %v1300 = vcombine.high %v1276, 0
        %v1301 = vcombine.high %v1283, 0
        %v1302 = vcombine.high %v1292, 0
        %v1303 = vcombine.high %v1299, 0
        %v1304 = vcombine.low %v1210, %v1217
        %v1306 = vunpack.c.l.s4 1983009808
        %v1307 = vunpack.c.0.s8 %v1306
        %v1308 = vlaneseq
        %v1309 = vshrl.u32 %v1308, 7
        %v1310 = vsub.s32 %v1307, %v1309
        %v1311 = vrot.slane %v1304, %v1310
        %v1312 = vcombine.low %v1234, %v1235
        %v1314 = vunpack.c.l.s4 1983009808
        %v1315 = vunpack.c.0.s8 %v1314
        %v1316 = vlaneseq
        %v1317 = vshrl.u32 %v1316, 7
        %v1318 = vsub.s32 %v1315, %v1317
        %v1319 = vrot.slane %v1312, %v1318
        %v1320 = vcombine.low %v1226, %v1233
        %v1322 = vunpack.c.l.s4 1983009808
        %v1323 = vunpack.c.0.s8 %v1322
        %v1324 = vlaneseq
        %v1325 = vshrl.u32 %v1324, 7
        %v1326 = vsub.s32 %v1323, %v1325
        %v1327 = vrot.slane %v1320, %v1326
        %v1328 = vcombine.low %v1236, %v1237
        %v1330 = vunpack.c.l.s4 1983009808
        %v1331 = vunpack.c.0.s8 %v1330
        %v1332 = vlaneseq
        %v1333 = vshrl.u32 %v1332, 7
        %v1334 = vsub.s32 %v1331, %v1333
        %v1335 = vrot.slane %v1328, %v1334
        %v1336 = vcombine.low %v1311, %v1319
        %v1338 = vunpack.c.l.s4 1934713408
        %v1339 = vunpack.c.0.s8 %v1338
        %v1340 = vlaneseq
        %v1341 = vshrl.u32 %v1340, 7
        %v1342 = vsub.s32 %v1339, %v1341
        %v1343 = vrot.slane %v1336, %v1342
        %v1344 = vcombine.low %v1327, %v1335
        %v1346 = vunpack.c.l.s4 1934713408
        %v1347 = vunpack.c.0.s8 %v1346
        %v1348 = vlaneseq
        %v1349 = vshrl.u32 %v1348, 7
        %v1350 = vsub.s32 %v1347, %v1349
        %v1351 = vrot.slane %v1344, %v1350
        %v1352 = vcombine.low %v1343, %v1351
        %v1353 = vcombine.high %v1343, %v1351
        %v1354 = vcombine.low %v1276, %v1283
        %v1356 = vunpack.c.l.s4 1983009808
        %v1357 = vunpack.c.0.s8 %v1356
        %v1358 = vlaneseq
        %v1359 = vshrl.u32 %v1358, 7
        %v1360 = vsub.s32 %v1357, %v1359
        %v1361 = vrot.slane %v1354, %v1360
        %v1362 = vcombine.low %v1300, %v1301
        %v1364 = vunpack.c.l.s4 1983009808
        %v1365 = vunpack.c.0.s8 %v1364
        %v1366 = vlaneseq
        %v1367 = vshrl.u32 %v1366, 7
        %v1368 = vsub.s32 %v1365, %v1367
        %v1369 = vrot.slane %v1362, %v1368
        %v1370 = vcombine.low %v1292, %v1299
        %v1372 = vunpack.c.l.s4 1983009808
        %v1373 = vunpack.c.0.s8 %v1372
        %v1374 = vlaneseq
        %v1375 = vshrl.u32 %v1374, 7
        %v1376 = vsub.s32 %v1373, %v1375
        %v1377 = vrot.slane %v1370, %v1376
        %v1378 = vcombine.low %v1302, %v1303
        %v1380 = vunpack.c.l.s4 1983009808
        %v1381 = vunpack.c.0.s8 %v1380
        %v1382 = vlaneseq
        %v1383 = vshrl.u32 %v1382, 7
        %v1384 = vsub.s32 %v1381, %v1383
        %v1385 = vrot.slane %v1378, %v1384
        %v1386 = vcombine.low %v1361, %v1369
        %v1388 = vunpack.c.l.s4 1934713408
        %v1389 = vunpack.c.0.s8 %v1388
        %v1390 = vlaneseq
        %v1391 = vshrl.u32 %v1390, 7
        %v1392 = vsub.s32 %v1389, %v1391
        %v1393 = vrot.slane %v1386, %v1392
        %v1394 = vcombine.low %v1377, %v1385
        %v1396 = vunpack.c.l.s4 1934713408
        %v1397 = vunpack.c.0.s8 %v1396
        %v1398 = vlaneseq
        %v1399 = vshrl.u32 %v1398, 7
        %v1400 = vsub.s32 %v1397, %v1399
        %v1401 = vrot.slane %v1394, %v1400
        %v1402 = vcombine.low %v1393, %v1401
        %v1403 = vcombine.high %v1393, %v1401
        %v1406 = vpack.i.b16 %v1402, %v1352
        %v1407 = vshrl.u32 %v1352, 16
        %v1408 = vshrl.u32 %v1402, 16
        %v1409 = vpack.i.b16 %v1408, %v1407
        %v1412 = vpack.i.b16 %v1403, %v1353
        %v1413 = vshrl.u32 %v1353, 16
        %v1414 = vshrl.u32 %v1403, 16
        %v1415 = vpack.i.b16 %v1414, %v1413
        %1416 = vrot.lane.b32.xlu0 %v1141, 64
        %v1417 = vpop.permute.xlu0 %1416
        %1418 = vrot.lane.b32.xlu0 %v1145, 64
        %v1419 = vpop.permute.xlu0 %1418
        %1420 = vrot.lane.b32.xlu0 %v1147, 64
        %v1421 = vpop.permute.xlu0 %1420
        %1422 = vrot.lane.b32.xlu0 %v1149, 64
        %v1423 = vpop.permute.xlu0 %1422
        %v1426 = vpack.i.b16 %v1419, %v1417
        %v1428 = vshrl.u32 %v1417, 16
        %v1429 = vshrl.u32 %v1419, 16
        %v1430 = vpack.i.b16 %v1429, %v1428
        %v1434 = vpack.i.b16 %v1423, %v1421
        %v1436 = vshrl.u32 %v1421, 16
        %v1437 = vshrl.u32 %v1423, 16
        %v1438 = vpack.i.b16 %v1437, %v1436
        %v1440 = vcombine.high %v1426, %v1167
        %v1442 = vunpack.c.l.s4 1983009808
        %v1443 = vunpack.c.0.s8 %v1442
        %v1444 = vlaneseq
        %v1445 = vshrl.u32 %v1444, 7
        %v1446 = vsub.s32 %v1443, %v1445
        %v1447 = vrot.slane %v1426, %v1446
        %v1449 = vunpack.c.l.s4 1983009808
        %v1450 = vunpack.c.0.s8 %v1449
        %v1451 = vlaneseq
        %v1452 = vshrl.u32 %v1451, 7
        %v1453 = vsub.s32 %v1450, %v1452
        %v1454 = vrot.slane %v1440, %v1453
        %v1455 = vcombine.high %v1434, %v1167
        %v1457 = vunpack.c.l.s4 1983009808
        %v1458 = vunpack.c.0.s8 %v1457
        %v1459 = vlaneseq
        %v1460 = vshrl.u32 %v1459, 7
        %v1461 = vsub.s32 %v1458, %v1460
        %v1462 = vrot.slane %v1434, %v1461
        %v1464 = vunpack.c.l.s4 1983009808
        %v1465 = vunpack.c.0.s8 %v1464
        %v1466 = vlaneseq
        %v1467 = vshrl.u32 %v1466, 7
        %v1468 = vsub.s32 %v1465, %v1467
        %v1469 = vrot.slane %v1455, %v1468
        %v1470 = vcombine.low %v1447, %v1462
        %v1471 = vcombine.high %v1447, %v1462
        %v1473 = vunpack.c.l.s4 1934713408
        %v1474 = vunpack.c.0.s8 %v1473
        %v1475 = vlaneseq
        %v1476 = vshrl.u32 %v1475, 7
        %v1477 = vsub.s32 %v1474, %v1476
        %v1478 = vrot.slane %v1470, %v1477
        %v1480 = vunpack.c.l.s4 1934713408
        %v1481 = vunpack.c.0.s8 %v1480
        %v1482 = vlaneseq
        %v1483 = vshrl.u32 %v1482, 7
        %v1484 = vsub.s32 %v1481, %v1483
        %v1485 = vrot.slane %v1471, %v1484
        %v1486 = vcombine.low %v1454, %v1469
        %v1487 = vcombine.high %v1454, %v1469
        %v1489 = vunpack.c.l.s4 1934713408
        %v1490 = vunpack.c.0.s8 %v1489
        %v1491 = vlaneseq
        %v1492 = vshrl.u32 %v1491, 7
        %v1493 = vsub.s32 %v1490, %v1492
        %v1494 = vrot.slane %v1486, %v1493
        %v1496 = vunpack.c.l.s4 1934713408
        %v1497 = vunpack.c.0.s8 %v1496
        %v1498 = vlaneseq
        %v1499 = vshrl.u32 %v1498, 7
        %v1500 = vsub.s32 %v1497, %v1499
        %v1501 = vrot.slane %v1487, %v1500
        %v1502 = vcombine.high %v1478, 0
        %v1503 = vcombine.high %v1485, 0
        %v1504 = vcombine.high %v1494, 0
        %v1505 = vcombine.high %v1501, 0
        %v1506 = vcombine.high %v1430, %v1170
        %v1508 = vunpack.c.l.s4 1983009808
        %v1509 = vunpack.c.0.s8 %v1508
        %v1510 = vlaneseq
        %v1511 = vshrl.u32 %v1510, 7
        %v1512 = vsub.s32 %v1509, %v1511
        %v1513 = vrot.slane %v1430, %v1512
        %v1515 = vunpack.c.l.s4 1983009808
        %v1516 = vunpack.c.0.s8 %v1515
        %v1517 = vlaneseq
        %v1518 = vshrl.u32 %v1517, 7
        %v1519 = vsub.s32 %v1516, %v1518
        %v1520 = vrot.slane %v1506, %v1519
        %v1521 = vcombine.high %v1438, %v1170
        %v1523 = vunpack.c.l.s4 1983009808
        %v1524 = vunpack.c.0.s8 %v1523
        %v1525 = vlaneseq
        %v1526 = vshrl.u32 %v1525, 7
        %v1527 = vsub.s32 %v1524, %v1526
        %v1528 = vrot.slane %v1438, %v1527
        %v1530 = vunpack.c.l.s4 1983009808
        %v1531 = vunpack.c.0.s8 %v1530
        %v1532 = vlaneseq
        %v1533 = vshrl.u32 %v1532, 7
        %v1534 = vsub.s32 %v1531, %v1533
        %v1535 = vrot.slane %v1521, %v1534
        %v1536 = vcombine.low %v1513, %v1528
        %v1537 = vcombine.high %v1513, %v1528
        %v1539 = vunpack.c.l.s4 1934713408
        %v1540 = vunpack.c.0.s8 %v1539
        %v1541 = vlaneseq
        %v1542 = vshrl.u32 %v1541, 7
        %v1543 = vsub.s32 %v1540, %v1542
        %v1544 = vrot.slane %v1536, %v1543
        %v1546 = vunpack.c.l.s4 1934713408
        %v1547 = vunpack.c.0.s8 %v1546
        %v1548 = vlaneseq
        %v1549 = vshrl.u32 %v1548, 7
        %v1550 = vsub.s32 %v1547, %v1549
        %v1551 = vrot.slane %v1537, %v1550
        %v1552 = vcombine.low %v1520, %v1535
        %v1553 = vcombine.high %v1520, %v1535
        %v1555 = vunpack.c.l.s4 1934713408
        %v1556 = vunpack.c.0.s8 %v1555
        %v1557 = vlaneseq
        %v1558 = vshrl.u32 %v1557, 7
        %v1559 = vsub.s32 %v1556, %v1558
        %v1560 = vrot.slane %v1552, %v1559
        %v1562 = vunpack.c.l.s4 1934713408
        %v1563 = vunpack.c.0.s8 %v1562
        %v1564 = vlaneseq
        %v1565 = vshrl.u32 %v1564, 7
        %v1566 = vsub.s32 %v1563, %v1565
        %v1567 = vrot.slane %v1553, %v1566
        %v1568 = vcombine.high %v1544, 0
        %v1569 = vcombine.high %v1551, 0
        %v1570 = vcombine.high %v1560, 0
        %v1571 = vcombine.high %v1567, 0
        %v1572 = vcombine.low %v1478, %v1485
        %v1574 = vunpack.c.l.s4 1983009808
        %v1575 = vunpack.c.0.s8 %v1574
        %v1576 = vlaneseq
        %v1577 = vshrl.u32 %v1576, 7
        %v1578 = vsub.s32 %v1575, %v1577
        %v1579 = vrot.slane %v1572, %v1578
        %v1580 = vcombine.low %v1502, %v1503
        %v1582 = vunpack.c.l.s4 1983009808
        %v1583 = vunpack.c.0.s8 %v1582
        %v1584 = vlaneseq
        %v1585 = vshrl.u32 %v1584, 7
        %v1586 = vsub.s32 %v1583, %v1585
        %v1587 = vrot.slane %v1580, %v1586
        %v1588 = vcombine.low %v1494, %v1501
        %v1590 = vunpack.c.l.s4 1983009808
        %v1591 = vunpack.c.0.s8 %v1590
        %v1592 = vlaneseq
        %v1593 = vshrl.u32 %v1592, 7
        %v1594 = vsub.s32 %v1591, %v1593
        %v1595 = vrot.slane %v1588, %v1594
        %v1596 = vcombine.low %v1504, %v1505
        %v1598 = vunpack.c.l.s4 1983009808
        %v1599 = vunpack.c.0.s8 %v1598
        %v1600 = vlaneseq
        %v1601 = vshrl.u32 %v1600, 7
        %v1602 = vsub.s32 %v1599, %v1601
        %v1603 = vrot.slane %v1596, %v1602
        %v1604 = vcombine.low %v1579, %v1587
        %v1606 = vunpack.c.l.s4 1934713408
        %v1607 = vunpack.c.0.s8 %v1606
        %v1608 = vlaneseq
        %v1609 = vshrl.u32 %v1608, 7
        %v1610 = vsub.s32 %v1607, %v1609
        %v1611 = vrot.slane %v1604, %v1610
        %v1612 = vcombine.low %v1595, %v1603
        %v1614 = vunpack.c.l.s4 1934713408
        %v1615 = vunpack.c.0.s8 %v1614
        %v1616 = vlaneseq
        %v1617 = vshrl.u32 %v1616, 7
        %v1618 = vsub.s32 %v1615, %v1617
        %v1619 = vrot.slane %v1612, %v1618
        %v1620 = vcombine.low %v1611, %v1619
        %v1621 = vcombine.high %v1611, %v1619
        %v1622 = vcombine.low %v1544, %v1551
        %v1624 = vunpack.c.l.s4 1983009808
        %v1625 = vunpack.c.0.s8 %v1624
        %v1626 = vlaneseq
        %v1627 = vshrl.u32 %v1626, 7
        %v1628 = vsub.s32 %v1625, %v1627
        %v1629 = vrot.slane %v1622, %v1628
        %v1630 = vcombine.low %v1568, %v1569
        %v1632 = vunpack.c.l.s4 1983009808
        %v1633 = vunpack.c.0.s8 %v1632
        %v1634 = vlaneseq
        %v1635 = vshrl.u32 %v1634, 7
        %v1636 = vsub.s32 %v1633, %v1635
        %v1637 = vrot.slane %v1630, %v1636
        %v1638 = vcombine.low %v1560, %v1567
        %v1640 = vunpack.c.l.s4 1983009808
        %v1641 = vunpack.c.0.s8 %v1640
        %v1642 = vlaneseq
        %v1643 = vshrl.u32 %v1642, 7
        %v1644 = vsub.s32 %v1641, %v1643
        %v1645 = vrot.slane %v1638, %v1644
        %v1646 = vcombine.low %v1570, %v1571
        %v1648 = vunpack.c.l.s4 1983009808
        %v1649 = vunpack.c.0.s8 %v1648
        %v1650 = vlaneseq
        %v1651 = vshrl.u32 %v1650, 7
        %v1652 = vsub.s32 %v1649, %v1651
        %v1653 = vrot.slane %v1646, %v1652
        %v1654 = vcombine.low %v1629, %v1637
        %v1656 = vunpack.c.l.s4 1934713408
        %v1657 = vunpack.c.0.s8 %v1656
        %v1658 = vlaneseq
        %v1659 = vshrl.u32 %v1658, 7
        %v1660 = vsub.s32 %v1657, %v1659
        %v1661 = vrot.slane %v1654, %v1660
        %v1662 = vcombine.low %v1645, %v1653
        %v1664 = vunpack.c.l.s4 1934713408
        %v1665 = vunpack.c.0.s8 %v1664
        %v1666 = vlaneseq
        %v1667 = vshrl.u32 %v1666, 7
        %v1668 = vsub.s32 %v1665, %v1667
        %v1669 = vrot.slane %v1662, %v1668
        %v1670 = vcombine.low %v1661, %v1669
        %v1671 = vcombine.high %v1661, %v1669
        %v1674 = vpack.i.b16 %v1670, %v1620
        %v1675 = vshrl.u32 %v1620, 16
        %v1676 = vshrl.u32 %v1670, 16
        %v1677 = vpack.i.b16 %v1676, %v1675
        %v1680 = vpack.i.b16 %v1671, %v1621
        %v1681 = vshrl.u32 %v1621, 16
        %v1682 = vshrl.u32 %v1671, 16
        %v1683 = vpack.i.b16 %v1682, %v1681
        %1685 = vrot.lane.b32.xlu0 %v1142, 112
        %v1686 = vpop.permute.xlu0 %1685
        %1687 = vrot.lane.b32.xlu0 %v1142, 96
        %v1688 = vpop.permute.xlu0 %1687
        %1689 = vrot.lane.b32.xlu0 %v1142, 80
        %v1690 = vpop.permute.xlu0 %1689
        %v1693 = vpack.i.b16 %v1686, %v1142
        %v1695 = vshrl.u32 %v1142, 16
        %v1696 = vshrl.u32 %v1686, 16
        %v1697 = vpack.i.b16 %v1696, %v1695
        %v1701 = vpack.i.b16 %v1690, %v1688
        %v1703 = vshrl.u32 %v1688, 16
        %v1704 = vshrl.u32 %v1690, 16
        %v1705 = vpack.i.b16 %v1704, %v1703
        %v1707 = vcombine.high %v1693, %v1167
        %v1709 = vunpack.c.l.s4 1983009808
        %v1710 = vunpack.c.0.s8 %v1709
        %v1711 = vlaneseq
        %v1712 = vshrl.u32 %v1711, 7
        %v1713 = vsub.s32 %v1710, %v1712
        %v1714 = vrot.slane %v1693, %v1713
        %v1716 = vunpack.c.l.s4 1983009808
        %v1717 = vunpack.c.0.s8 %v1716
        %v1718 = vlaneseq
        %v1719 = vshrl.u32 %v1718, 7
        %v1720 = vsub.s32 %v1717, %v1719
        %v1721 = vrot.slane %v1707, %v1720
        %v1722 = vcombine.high %v1701, %v1167
        %v1724 = vunpack.c.l.s4 1983009808
        %v1725 = vunpack.c.0.s8 %v1724
        %v1726 = vlaneseq
        %v1727 = vshrl.u32 %v1726, 7
        %v1728 = vsub.s32 %v1725, %v1727
        %v1729 = vrot.slane %v1701, %v1728
        %v1731 = vunpack.c.l.s4 1983009808
        %v1732 = vunpack.c.0.s8 %v1731
        %v1733 = vlaneseq
        %v1734 = vshrl.u32 %v1733, 7
        %v1735 = vsub.s32 %v1732, %v1734
        %v1736 = vrot.slane %v1722, %v1735
        %v1737 = vcombine.low %v1714, %v1729
        %v1738 = vcombine.high %v1714, %v1729
        %v1740 = vunpack.c.l.s4 1934713408
        %v1741 = vunpack.c.0.s8 %v1740
        %v1742 = vlaneseq
        %v1743 = vshrl.u32 %v1742, 7
        %v1744 = vsub.s32 %v1741, %v1743
        %v1745 = vrot.slane %v1737, %v1744
        %v1747 = vunpack.c.l.s4 1934713408
        %v1748 = vunpack.c.0.s8 %v1747
        %v1749 = vlaneseq
        %v1750 = vshrl.u32 %v1749, 7
        %v1751 = vsub.s32 %v1748, %v1750
        %v1752 = vrot.slane %v1738, %v1751
        %v1753 = vcombine.low %v1721, %v1736
        %v1754 = vcombine.high %v1721, %v1736
        %v1756 = vunpack.c.l.s4 1934713408
        %v1757 = vunpack.c.0.s8 %v1756
        %v1758 = vlaneseq
        %v1759 = vshrl.u32 %v1758, 7
        %v1760 = vsub.s32 %v1757, %v1759
        %v1761 = vrot.slane %v1753, %v1760
        %v1763 = vunpack.c.l.s4 1934713408
        %v1764 = vunpack.c.0.s8 %v1763
        %v1765 = vlaneseq
        %v1766 = vshrl.u32 %v1765, 7
        %v1767 = vsub.s32 %v1764, %v1766
        %v1768 = vrot.slane %v1754, %v1767
        %v1769 = vcombine.high %v1745, 0
        %v1770 = vcombine.high %v1752, 0
        %v1771 = vcombine.high %v1761, 0
        %v1772 = vcombine.high %v1768, 0
        %v1773 = vcombine.high %v1697, %v1170
        %v1775 = vunpack.c.l.s4 1983009808
        %v1776 = vunpack.c.0.s8 %v1775
        %v1777 = vlaneseq
        %v1778 = vshrl.u32 %v1777, 7
        %v1779 = vsub.s32 %v1776, %v1778
        %v1780 = vrot.slane %v1697, %v1779
        %v1782 = vunpack.c.l.s4 1983009808
        %v1783 = vunpack.c.0.s8 %v1782
        %v1784 = vlaneseq
        %v1785 = vshrl.u32 %v1784, 7
        %v1786 = vsub.s32 %v1783, %v1785
        %v1787 = vrot.slane %v1773, %v1786
        %v1788 = vcombine.high %v1705, %v1170
        %v1790 = vunpack.c.l.s4 1983009808
        %v1791 = vunpack.c.0.s8 %v1790
        %v1792 = vlaneseq
        %v1793 = vshrl.u32 %v1792, 7
        %v1794 = vsub.s32 %v1791, %v1793
        %v1795 = vrot.slane %v1705, %v1794
        %v1797 = vunpack.c.l.s4 1983009808
        %v1798 = vunpack.c.0.s8 %v1797
        %v1799 = vlaneseq
        %v1800 = vshrl.u32 %v1799, 7
        %v1801 = vsub.s32 %v1798, %v1800
        %v1802 = vrot.slane %v1788, %v1801
        %v1803 = vcombine.low %v1780, %v1795
        %v1804 = vcombine.high %v1780, %v1795
        %v1806 = vunpack.c.l.s4 1934713408
        %v1807 = vunpack.c.0.s8 %v1806
        %v1808 = vlaneseq
        %v1809 = vshrl.u32 %v1808, 7
        %v1810 = vsub.s32 %v1807, %v1809
        %v1811 = vrot.slane %v1803, %v1810
        %v1813 = vunpack.c.l.s4 1934713408
        %v1814 = vunpack.c.0.s8 %v1813
        %v1815 = vlaneseq
        %v1816 = vshrl.u32 %v1815, 7
        %v1817 = vsub.s32 %v1814, %v1816
        %v1818 = vrot.slane %v1804, %v1817
        %v1819 = vcombine.low %v1787, %v1802
        %v1820 = vcombine.high %v1787, %v1802
        %v1822 = vunpack.c.l.s4 1934713408
        %v1823 = vunpack.c.0.s8 %v1822
        %v1824 = vlaneseq
        %v1825 = vshrl.u32 %v1824, 7
        %v1826 = vsub.s32 %v1823, %v1825
        %v1827 = vrot.slane %v1819, %v1826
        %v1829 = vunpack.c.l.s4 1934713408
        %v1830 = vunpack.c.0.s8 %v1829
        %v1831 = vlaneseq
        %v1832 = vshrl.u32 %v1831, 7
        %v1833 = vsub.s32 %v1830, %v1832
        %v1834 = vrot.slane %v1820, %v1833
        %v1835 = vcombine.high %v1811, 0
        %v1836 = vcombine.high %v1818, 0
        %v1837 = vcombine.high %v1827, 0
        %v1838 = vcombine.high %v1834, 0
        %v1839 = vcombine.low %v1745, %v1752
        %v1841 = vunpack.c.l.s4 1983009808
        %v1842 = vunpack.c.0.s8 %v1841
        %v1843 = vlaneseq
        %v1844 = vshrl.u32 %v1843, 7
        %v1845 = vsub.s32 %v1842, %v1844
        %v1846 = vrot.slane %v1839, %v1845
        %v1847 = vcombine.low %v1769, %v1770
        %v1849 = vunpack.c.l.s4 1983009808
        %v1850 = vunpack.c.0.s8 %v1849
        %v1851 = vlaneseq
        %v1852 = vshrl.u32 %v1851, 7
        %v1853 = vsub.s32 %v1850, %v1852
        %v1854 = vrot.slane %v1847, %v1853
        %v1855 = vcombine.low %v1761, %v1768
        %v1857 = vunpack.c.l.s4 1983009808
        %v1858 = vunpack.c.0.s8 %v1857
        %v1859 = vlaneseq
        %v1860 = vshrl.u32 %v1859, 7
        %v1861 = vsub.s32 %v1858, %v1860
        %v1862 = vrot.slane %v1855, %v1861
        %v1863 = vcombine.low %v1771, %v1772
        %v1865 = vunpack.c.l.s4 1983009808
        %v1866 = vunpack.c.0.s8 %v1865
        %v1867 = vlaneseq
        %v1868 = vshrl.u32 %v1867, 7
        %v1869 = vsub.s32 %v1866, %v1868
        %v1870 = vrot.slane %v1863, %v1869
        %v1871 = vcombine.low %v1846, %v1854
        %v1873 = vunpack.c.l.s4 1934713408
        %v1874 = vunpack.c.0.s8 %v1873
        %v1875 = vlaneseq
        %v1876 = vshrl.u32 %v1875, 7
        %v1877 = vsub.s32 %v1874, %v1876
        %v1878 = vrot.slane %v1871, %v1877
        %v1879 = vcombine.low %v1862, %v1870
        %v1881 = vunpack.c.l.s4 1934713408
        %v1882 = vunpack.c.0.s8 %v1881
        %v1883 = vlaneseq
        %v1884 = vshrl.u32 %v1883, 7
        %v1885 = vsub.s32 %v1882, %v1884
        %v1886 = vrot.slane %v1879, %v1885
        %v1887 = vcombine.low %v1878, %v1886
        %v1888 = vcombine.high %v1878, %v1886
        %v1889 = vcombine.low %v1811, %v1818
        %v1891 = vunpack.c.l.s4 1983009808
        %v1892 = vunpack.c.0.s8 %v1891
        %v1893 = vlaneseq
        %v1894 = vshrl.u32 %v1893, 7
        %v1895 = vsub.s32 %v1892, %v1894
        %v1896 = vrot.slane %v1889, %v1895
        %v1897 = vcombine.low %v1835, %v1836
        %v1899 = vunpack.c.l.s4 1983009808
        %v1900 = vunpack.c.0.s8 %v1899
        %v1901 = vlaneseq
        %v1902 = vshrl.u32 %v1901, 7
        %v1903 = vsub.s32 %v1900, %v1902
        %v1904 = vrot.slane %v1897, %v1903
        %v1905 = vcombine.low %v1827, %v1834
        %v1907 = vunpack.c.l.s4 1983009808
        %v1908 = vunpack.c.0.s8 %v1907
        %v1909 = vlaneseq
        %v1910 = vshrl.u32 %v1909, 7
        %v1911 = vsub.s32 %v1908, %v1910
        %v1912 = vrot.slane %v1905, %v1911
        %v1913 = vcombine.low %v1837, %v1838
        %v1915 = vunpack.c.l.s4 1983009808
        %v1916 = vunpack.c.0.s8 %v1915
        %v1917 = vlaneseq
        %v1918 = vshrl.u32 %v1917, 7
        %v1919 = vsub.s32 %v1916, %v1918
        %v1920 = vrot.slane %v1913, %v1919
        %v1921 = vcombine.low %v1896, %v1904
        %v1923 = vunpack.c.l.s4 1934713408
        %v1924 = vunpack.c.0.s8 %v1923
        %v1925 = vlaneseq
        %v1926 = vshrl.u32 %v1925, 7
        %v1927 = vsub.s32 %v1924, %v1926
        %v1928 = vrot.slane %v1921, %v1927
        %v1929 = vcombine.low %v1912, %v1920
        %v1931 = vunpack.c.l.s4 1934713408
        %v1932 = vunpack.c.0.s8 %v1931
        %v1933 = vlaneseq
        %v1934 = vshrl.u32 %v1933, 7
        %v1935 = vsub.s32 %v1932, %v1934
        %v1936 = vrot.slane %v1929, %v1935
        %v1937 = vcombine.low %v1928, %v1936
        %v1938 = vcombine.high %v1928, %v1936
        %v1941 = vpack.i.b16 %v1937, %v1887
        %v1943 = vshrl.u32 %v1887, 16
        %v1944 = vshrl.u32 %v1937, 16
        %v1945 = vpack.i.b16 %v1944, %v1943
        %v1949 = vpack.i.b16 %v1938, %v1888
        %v1951 = vshrl.u32 %v1888, 16
        %v1952 = vshrl.u32 %v1938, 16
        %v1953 = vpack.i.b16 %v1952, %v1951
        %v1955 = vlaneseq
        %v1956 = vshrl.u32 %v1955, 7
        %v1957 = vadd.s32 %v1956, 8
        %v1958 = vlaneseq
        %v1959 = vand.u32 %v1958, 127
        %vm1960 = vcmp.gt.s32.totalorder %v1959, %v1956
        %vm1961 = vcmp.gt.s32.totalorder %v1959, %v1957
        %v1962 = vsel %vm1960, -1e+30, 0.0
        %v1963 = vsel %vm1961, -1e+30, 0.0
        %vm1964 = vcmask 130048
        %v1966 = vsel %vm1964, %v1406, 0
        %v1969 = vsel %vm1964, %v1674, 0
        %1971 = vmatprep.subr.bf16.mxu0 0
        %1972 = vmatpush1.bf16.xpose.msra.mxu0 %v1969
        %1973 = vmatprep.subr.bf16.mxu0 0
        %1974 = vmatpush1.bf16.xpose.msra.mxu0 0
        %1975 = vmatprep.subr.bf16.mxu0 0
        %1976 = vmatpush1.bf16.xpose.msra.mxu0 0
        %1977 = vmatprep.subr.bf16.mxu0 0
        %1978 = vmatpush1.bf16.xpose.msra.mxu0 0
        %1979 = vmatprep.subr.bf16.mxu0 0
        %1980 = vmatpush1.bf16.xpose.msra.mxu0 0
        %1981 = vmatprep.subr.bf16.mxu0 0
        %1982 = vmatpush1.bf16.xpose.msra.mxu0 0
        %1983 = vmatprep.subr.bf16.mxu0 0
        %1984 = vmatpush1.bf16.xpose.msra.mxu0 0
        %1985 = vmatprep.subr.bf16.mxu0 0
        %1986 = vmatpush1.bf16.xpose.msra.mxu0 0
        %1987 = vmatprep.subr.bf16.mxu0 0
        %1988 = vmatpush1.bf16.xpose.msra.mxu0 0
        %1989 = vmatprep.subr.bf16.mxu0 0
        %1990 = vmatpush1.bf16.xpose.msra.mxu0 0
        %1991 = vmatprep.subr.bf16.mxu0 0
        %1992 = vmatpush1.bf16.xpose.msra.mxu0 0
        %1993 = vmatprep.subr.bf16.mxu0 0
        %1994 = vmatpush1.bf16.xpose.msra.mxu0 0
        %1995 = vmatprep.subr.bf16.mxu0 0
        %1996 = vmatpush1.bf16.xpose.msra.mxu0 0
        %1997 = vmatprep.subr.bf16.mxu0 0
        %1998 = vmatpush1.bf16.xpose.msra.mxu0 0
        %1999 = vmatprep.subr.bf16.mxu0 0
        %2000 = vmatpush1.bf16.xpose.msra.mxu0 0
        %2001 = vmatprep.subr.bf16.mxu0 0
        %2002 = vmatpush1.bf16.xpose.msra.mxu0 0
        %2003 = vmatprep.mubr.bf16.mxu0 0
        %2004 = vmatmul.mubr.bf16.gmra.mrb[0].mxu0 %v1966
        %v2005 = vpop.f32.mrb[0].mxu0
        %v2006 = vadd.f32 %v1962, %v2005
        %v2007 = vpop.f32.mrb[0].mxu0
        %v2008 = vpop.f32.mrb[0].mxu0
        %v2009 = vadd.f32 %v1963, %v2008
        %v2010 = vpop.f32.mrb[0].mxu0
        %2011 = vdwg.mxu0
        %v2013 = vsel %vm1964, %v1409, 0
        %v2016 = vsel %vm1964, %v1677, 0
        %2018 = vmatprep.subr.bf16.mxu0 0
        %2019 = vmatpush1.bf16.xpose.msra.mxu0 %v2016
        %2020 = vmatprep.subr.bf16.mxu0 0
        %2021 = vmatpush1.bf16.xpose.msra.mxu0 0
        %2022 = vmatprep.subr.bf16.mxu0 0
        %2023 = vmatpush1.bf16.xpose.msra.mxu0 0
        %2024 = vmatprep.subr.bf16.mxu0 0
        %2025 = vmatpush1.bf16.xpose.msra.mxu0 0
        %2026 = vmatprep.subr.bf16.mxu0 0
        %2027 = vmatpush1.bf16.xpose.msra.mxu0 0
        %2028 = vmatprep.subr.bf16.mxu0 0
        %2029 = vmatpush1.bf16.xpose.msra.mxu0 0
        %2030 = vmatprep.subr.bf16.mxu0 0
        %2031 = vmatpush1.bf16.xpose.msra.mxu0 0
        %2032 = vmatprep.subr.bf16.mxu0 0
        %2033 = vmatpush1.bf16.xpose.msra.mxu0 0
        %2034 = vmatprep.subr.bf16.mxu0 0
        %2035 = vmatpush1.bf16.xpose.msra.mxu0 0
        %2036 = vmatprep.subr.bf16.mxu0 0
        %2037 = vmatpush1.bf16.xpose.msra.mxu0 0
        %2038 = vmatprep.subr.bf16.mxu0 0
        %2039 = vmatpush1.bf16.xpose.msra.mxu0 0
        %2040 = vmatprep.subr.bf16.mxu0 0
        %2041 = vmatpush1.bf16.xpose.msra.mxu0 0
        %2042 = vmatprep.subr.bf16.mxu0 0
        %2043 = vmatpush1.bf16.xpose.msra.mxu0 0
        %2044 = vmatprep.subr.bf16.mxu0 0
        %2045 = vmatpush1.bf16.xpose.msra.mxu0 0
        %2046 = vmatprep.subr.bf16.mxu0 0
        %2047 = vmatpush1.bf16.xpose.msra.mxu0 0
        %2048 = vmatprep.subr.bf16.mxu0 0
        %2049 = vmatpush1.bf16.xpose.msra.mxu0 0
        %2050 = vmatprep.mubr.bf16.mxu0 0
        %2051 = vmatmul.mubr.bf16.gmra.mrb[0].mxu0 %v2013
        %v2052 = vpop.f32.mrb[0].mxu0
        %v2053 = vadd.f32 %v1962, %v2052
        %v2054 = vpop.f32.mrb[0].mxu0
        %v2055 = vpop.f32.mrb[0].mxu0
        %v2056 = vadd.f32 %v1963, %v2055
        %v2057 = vpop.f32.mrb[0].mxu0
        %2058 = vdwg.mxu0
        %v2060 = vsel %vm1964, %v1412, 0
        %v2063 = vsel %vm1964, %v1680, 0
        %2065 = vmatprep.subr.bf16.mxu0 0
        %2066 = vmatpush1.bf16.xpose.msra.mxu0 %v2063
        %2067 = vmatprep.subr.bf16.mxu0 0
        %2068 = vmatpush1.bf16.xpose.msra.mxu0 0
        %2069 = vmatprep.subr.bf16.mxu0 0
        %2070 = vmatpush1.bf16.xpose.msra.mxu0 0
        %2071 = vmatprep.subr.bf16.mxu0 0
        %2072 = vmatpush1.bf16.xpose.msra.mxu0 0
        %2073 = vmatprep.subr.bf16.mxu0 0
        %2074 = vmatpush1.bf16.xpose.msra.mxu0 0
        %2075 = vmatprep.subr.bf16.mxu0 0
        %2076 = vmatpush1.bf16.xpose.msra.mxu0 0
        %2077 = vmatprep.subr.bf16.mxu0 0
        %2078 = vmatpush1.bf16.xpose.msra.mxu0 0
        %2079 = vmatprep.subr.bf16.mxu0 0
        %2080 = vmatpush1.bf16.xpose.msra.mxu0 0
        %2081 = vmatprep.subr.bf16.mxu0 0
        %2082 = vmatpush1.bf16.xpose.msra.mxu0 0
        %2083 = vmatprep.subr.bf16.mxu0 0
        %2084 = vmatpush1.bf16.xpose.msra.mxu0 0
        %2085 = vmatprep.subr.bf16.mxu0 0
        %2086 = vmatpush1.bf16.xpose.msra.mxu0 0
        %2087 = vmatprep.subr.bf16.mxu0 0
        %2088 = vmatpush1.bf16.xpose.msra.mxu0 0
        %2089 = vmatprep.subr.bf16.mxu0 0
        %2090 = vmatpush1.bf16.xpose.msra.mxu0 0
        %2091 = vmatprep.subr.bf16.mxu0 0
        %2092 = vmatpush1.bf16.xpose.msra.mxu0 0
        %2093 = vmatprep.subr.bf16.mxu0 0
        %2094 = vmatpush1.bf16.xpose.msra.mxu0 0
        %2095 = vmatprep.subr.bf16.mxu0 0
        %2096 = vmatpush1.bf16.xpose.msra.mxu0 0
        %2097 = vmatprep.mubr.bf16.mxu0 0
        %2098 = vmatmul.mubr.bf16.gmra.mrb[0].mxu0 %v2060
        %v2099 = vpop.f32.mrb[0].mxu0
        %v2100 = vadd.f32 %v1962, %v2099
        %v2101 = vpop.f32.mrb[0].mxu0
        %v2102 = vpop.f32.mrb[0].mxu0
        %v2103 = vadd.f32 %v1963, %v2102
        %v2104 = vpop.f32.mrb[0].mxu0
        %2105 = vdwg.mxu0
        %v2107 = vsel %vm1964, %v1415, 0
        %v2110 = vsel %vm1964, %v1683, 0
        %2112 = vmatprep.subr.bf16.mxu0 0
        %2113 = vmatpush1.bf16.xpose.msra.mxu0 %v2110
        %2114 = vmatprep.subr.bf16.mxu0 0
        %2115 = vmatpush1.bf16.xpose.msra.mxu0 0
        %2116 = vmatprep.subr.bf16.mxu0 0
        %2117 = vmatpush1.bf16.xpose.msra.mxu0 0
        %2118 = vmatprep.subr.bf16.mxu0 0
        %2119 = vmatpush1.bf16.xpose.msra.mxu0 0
        %2120 = vmatprep.subr.bf16.mxu0 0
        %2121 = vmatpush1.bf16.xpose.msra.mxu0 0
        %2122 = vmatprep.subr.bf16.mxu0 0
        %2123 = vmatpush1.bf16.xpose.msra.mxu0 0
        %2124 = vmatprep.subr.bf16.mxu0 0
        %2125 = vmatpush1.bf16.xpose.msra.mxu0 0
        %2126 = vmatprep.subr.bf16.mxu0 0
        %2127 = vmatpush1.bf16.xpose.msra.mxu0 0
        %2128 = vmatprep.subr.bf16.mxu0 0
        %2129 = vmatpush1.bf16.xpose.msra.mxu0 0
        %2130 = vmatprep.subr.bf16.mxu0 0
        %2131 = vmatpush1.bf16.xpose.msra.mxu0 0
        %2132 = vmatprep.subr.bf16.mxu0 0
        %2133 = vmatpush1.bf16.xpose.msra.mxu0 0
        %2134 = vmatprep.subr.bf16.mxu0 0
        %2135 = vmatpush1.bf16.xpose.msra.mxu0 0
        %2136 = vmatprep.subr.bf16.mxu0 0
        %2137 = vmatpush1.bf16.xpose.msra.mxu0 0
        %2138 = vmatprep.subr.bf16.mxu0 0
        %2139 = vmatpush1.bf16.xpose.msra.mxu0 0
        %2140 = vmatprep.subr.bf16.mxu0 0
        %2141 = vmatpush1.bf16.xpose.msra.mxu0 0
        %2142 = vmatprep.subr.bf16.mxu0 0
        %2143 = vmatpush1.bf16.xpose.msra.mxu0 0
        %2144 = vmatprep.mubr.bf16.mxu0 0
        %2145 = vmatmul.mubr.bf16.gmra.mrb[0].mxu0 %v2107
        %v2146 = vpop.f32.mrb[0].mxu0
        %v2147 = vadd.f32 %v1962, %v2146
        %v2148 = vpop.f32.mrb[0].mxu0
        %v2149 = vpop.f32.mrb[0].mxu0
        %v2150 = vadd.f32 %v1963, %v2149
        %v2151 = vpop.f32.mrb[0].mxu0
        %2152 = vdwg.mxu0
        %v2153 = vsel %vm1964, %v2006, -inf
        %2154 = vmax.xlane.f32.xlu0 %v2153
        %v2155 = vpop.xlane.xlu0 %2154
        %v2156 = vsel %vm1964, %v2009, -inf
        %2157 = vmax.xlane.f32.xlu0 %v2156
        %v2158 = vpop.xlane.xlu0 %2157
        %v2159 = vsel %vm1964, %v2053, -inf
        %2160 = vmax.xlane.f32.xlu0 %v2159
        %v2161 = vpop.xlane.xlu0 %2160
        %v2162 = vsel %vm1964, %v2056, -inf
        %2163 = vmax.xlane.f32.xlu0 %v2162
        %v2164 = vpop.xlane.xlu0 %2163
        %v2165 = vsel %vm1964, %v2100, -inf
        %2166 = vmax.xlane.f32.xlu0 %v2165
        %v2167 = vpop.xlane.xlu0 %2166
        %v2168 = vsel %vm1964, %v2103, -inf
        %2169 = vmax.xlane.f32.xlu0 %v2168
        %v2170 = vpop.xlane.xlu0 %2169
        %v2171 = vsel %vm1964, %v2147, -inf
        %2172 = vmax.xlane.f32.xlu0 %v2171
        %v2173 = vpop.xlane.xlu0 %2172
        %v2174 = vsel %vm1964, %v2150, -inf
        %2175 = vmax.xlane.f32.xlu0 %v2174
        %v2176 = vpop.xlane.xlu0 %2175
        %v2177 = vsub.f32 %v2006, %v2155
        %v2178 = vsub.f32 %v2009, %v2158
        %v2179 = vsub.f32 %v2053, %v2161
        %v2180 = vsub.f32 %v2056, %v2164
        %v2181 = vsub.f32 %v2100, %v2167
        %v2182 = vsub.f32 %v2103, %v2170
        %v2183 = vsub.f32 %v2147, %v2173
        %v2184 = vsub.f32 %v2150, %v2176
        %v2185 = vmul.f32 %v2177, 1.442695
        %v2186 = vpow.pop %v2185
        %v2187 = vmul.f32 %v2178, 1.442695
        %v2188 = vpow.pop %v2187
        %v2189 = vmul.f32 %v2179, 1.442695
        %v2190 = vpow.pop %v2189
        %v2191 = vmul.f32 %v2180, 1.442695
        %v2192 = vpow.pop %v2191
        %v2193 = vmul.f32 %v2181, 1.442695
        %v2194 = vpow.pop %v2193
        %v2195 = vmul.f32 %v2182, 1.442695
        %v2196 = vpow.pop %v2195
        %v2197 = vmul.f32 %v2183, 1.442695
        %v2198 = vpow.pop %v2197
        %v2199 = vmul.f32 %v2184, 1.442695
        %v2200 = vpow.pop %v2199
        %v2201 = vsel %vm1964, %v2186, 0.0
        %2202 = vadd.xlane.f32.xlu0 %v2201
        %v2203 = vpop.xlane.xlu0 %2202
        %v2204 = vsel %vm1964, %v2188, 0.0
        %2205 = vadd.xlane.f32.xlu0 %v2204
        %v2206 = vpop.xlane.xlu0 %2205
        %v2207 = vsel %vm1964, %v2190, 0.0
        %2208 = vadd.xlane.f32.xlu0 %v2207
        %v2209 = vpop.xlane.xlu0 %2208
        %v2210 = vsel %vm1964, %v2192, 0.0
        %2211 = vadd.xlane.f32.xlu0 %v2210
        %v2212 = vpop.xlane.xlu0 %2211
        %v2213 = vsel %vm1964, %v2194, 0.0
        %2214 = vadd.xlane.f32.xlu0 %v2213
        %v2215 = vpop.xlane.xlu0 %2214
        %v2216 = vsel %vm1964, %v2196, 0.0
        %2217 = vadd.xlane.f32.xlu0 %v2216
        %v2218 = vpop.xlane.xlu0 %2217
        %v2219 = vsel %vm1964, %v2198, 0.0
        %2220 = vadd.xlane.f32.xlu0 %v2219
        %v2221 = vpop.xlane.xlu0 %2220
        %v2222 = vsel %vm1964, %v2200, 0.0
        %2223 = vadd.xlane.f32.xlu0 %v2222
        %v2224 = vpop.xlane.xlu0 %2223
        %v2225 = vrcp.pop %v2203
        %v2226 = vrcp.pop %v2206
        %v2227 = vrcp.pop %v2209
        %v2228 = vrcp.pop %v2212
        %v2229 = vrcp.pop %v2215
        %v2230 = vrcp.pop %v2218
        %v2231 = vrcp.pop %v2221
        %v2232 = vrcp.pop %v2224
        %v2233 = vmul.f32 %v2186, %v2225
        %v2234 = vmul.f32 %v2188, %v2226
        %v2235 = vmul.f32 %v2190, %v2227
        %v2236 = vmul.f32 %v2192, %v2228
        %v2237 = vmul.f32 %v2194, %v2229
        %v2238 = vmul.f32 %v2196, %v2230
        %v2239 = vmul.f32 %v2198, %v2231
        %v2240 = vmul.f32 %v2200, %v2232
        %v2241 = vpack.c.bf16 %v2234, %v2233
        %v2242 = vpack.c.bf16 %v2236, %v2235
        %v2243 = vpack.c.bf16 %v2238, %v2237
        %v2244 = vpack.c.bf16 %v2240, %v2239
        %v2246 = vsel %vm1964, %v2241, 0
        %2248 = vmatprep.subr.bf16.mxu0 0
        %2249 = vmatpush1.bf16.msra.mxu0 %v1941
        %2250 = vmatprep.subr.bf16.mxu0 0
        %2251 = vmatpush1.bf16.msra.mxu0 0
        %2252 = vmatprep.subr.bf16.mxu0 0
        %2253 = vmatpush1.bf16.msra.mxu0 0
        %2254 = vmatprep.subr.bf16.mxu0 0
        %2255 = vmatpush1.bf16.msra.mxu0 0
        %2256 = vmatprep.subr.bf16.mxu0 0
        %2257 = vmatpush1.bf16.msra.mxu0 0
        %2258 = vmatprep.subr.bf16.mxu0 0
        %2259 = vmatpush1.bf16.msra.mxu0 0
        %2260 = vmatprep.subr.bf16.mxu0 0
        %2261 = vmatpush1.bf16.msra.mxu0 0
        %2262 = vmatprep.subr.bf16.mxu0 0
        %2263 = vmatpush1.bf16.msra.mxu0 0
        %2264 = vmatprep.subr.bf16.mxu0 0
        %2265 = vmatpush1.bf16.msra.mxu0 0
        %2266 = vmatprep.subr.bf16.mxu0 0
        %2267 = vmatpush1.bf16.msra.mxu0 0
        %2268 = vmatprep.subr.bf16.mxu0 0
        %2269 = vmatpush1.bf16.msra.mxu0 0
        %2270 = vmatprep.subr.bf16.mxu0 0
        %2271 = vmatpush1.bf16.msra.mxu0 0
        %2272 = vmatprep.subr.bf16.mxu0 0
        %2273 = vmatpush1.bf16.msra.mxu0 0
        %2274 = vmatprep.subr.bf16.mxu0 0
        %2275 = vmatpush1.bf16.msra.mxu0 0
        %2276 = vmatprep.subr.bf16.mxu0 0
        %2277 = vmatpush1.bf16.msra.mxu0 0
        %2278 = vmatprep.subr.bf16.mxu0 0
        %2279 = vmatpush1.bf16.msra.mxu0 0
        %2280 = vmatprep.mubr.bf16.mxu0 0
        %2281 = vmatmul.mubr.bf16.gmra.mrb[0].mxu0 %v2246
        %v2282 = vpop.f32.mrb[0].mxu0
        %v2283 = vadd.f32 0.0, %v2282
        %v2284 = vpop.f32.mrb[0].mxu0
        %v2285 = vpop.f32.mrb[0].mxu0
        %v2286 = vadd.f32 0.0, %v2285
        %v2287 = vpop.f32.mrb[0].mxu0
        %2288 = vdwg.mxu0
        %v2290 = vsel %vm1964, %v2242, 0
        %2292 = vmatprep.subr.bf16.mxu0 0
        %2293 = vmatpush1.bf16.msra.mxu0 %v1945
        %2294 = vmatprep.subr.bf16.mxu0 0
        %2295 = vmatpush1.bf16.msra.mxu0 0
        %2296 = vmatprep.subr.bf16.mxu0 0
        %2297 = vmatpush1.bf16.msra.mxu0 0
        %2298 = vmatprep.subr.bf16.mxu0 0
        %2299 = vmatpush1.bf16.msra.mxu0 0
        %2300 = vmatprep.subr.bf16.mxu0 0
        %2301 = vmatpush1.bf16.msra.mxu0 0
        %2302 = vmatprep.subr.bf16.mxu0 0
        %2303 = vmatpush1.bf16.msra.mxu0 0
        %2304 = vmatprep.subr.bf16.mxu0 0
        %2305 = vmatpush1.bf16.msra.mxu0 0
        %2306 = vmatprep.subr.bf16.mxu0 0
        %2307 = vmatpush1.bf16.msra.mxu0 0
        %2308 = vmatprep.subr.bf16.mxu0 0
        %2309 = vmatpush1.bf16.msra.mxu0 0
        %2310 = vmatprep.subr.bf16.mxu0 0
        %2311 = vmatpush1.bf16.msra.mxu0 0
        %2312 = vmatprep.subr.bf16.mxu0 0
        %2313 = vmatpush1.bf16.msra.mxu0 0
        %2314 = vmatprep.subr.bf16.mxu0 0
        %2315 = vmatpush1.bf16.msra.mxu0 0
        %2316 = vmatprep.subr.bf16.mxu0 0
        %2317 = vmatpush1.bf16.msra.mxu0 0
        %2318 = vmatprep.subr.bf16.mxu0 0
        %2319 = vmatpush1.bf16.msra.mxu0 0
        %2320 = vmatprep.subr.bf16.mxu0 0
        %2321 = vmatpush1.bf16.msra.mxu0 0
        %2322 = vmatprep.subr.bf16.mxu0 0
        %2323 = vmatpush1.bf16.msra.mxu0 0
        %2324 = vmatprep.mubr.bf16.mxu0 0
        %2325 = vmatmul.mubr.bf16.gmra.mrb[0].mxu0 %v2290
        %v2326 = vpop.f32.mrb[0].mxu0
        %v2327 = vadd.f32 0.0, %v2326
        %v2328 = vpop.f32.mrb[0].mxu0
        %v2329 = vpop.f32.mrb[0].mxu0
        %v2330 = vadd.f32 0.0, %v2329
        %v2331 = vpop.f32.mrb[0].mxu0
        %2332 = vdwg.mxu0
        %v2334 = vsel %vm1964, %v2243, 0
        %2336 = vmatprep.subr.bf16.mxu0 0
        %2337 = vmatpush1.bf16.msra.mxu0 %v1949
        %2338 = vmatprep.subr.bf16.mxu0 0
        %2339 = vmatpush1.bf16.msra.mxu0 0
        %2340 = vmatprep.subr.bf16.mxu0 0
        %2341 = vmatpush1.bf16.msra.mxu0 0
        %2342 = vmatprep.subr.bf16.mxu0 0
        %2343 = vmatpush1.bf16.msra.mxu0 0
        %2344 = vmatprep.subr.bf16.mxu0 0
        %2345 = vmatpush1.bf16.msra.mxu0 0
        %2346 = vmatprep.subr.bf16.mxu0 0
        %2347 = vmatpush1.bf16.msra.mxu0 0
        %2348 = vmatprep.subr.bf16.mxu0 0
        %2349 = vmatpush1.bf16.msra.mxu0 0
        %2350 = vmatprep.subr.bf16.mxu0 0
        %2351 = vmatpush1.bf16.msra.mxu0 0
        %2352 = vmatprep.subr.bf16.mxu0 0
        %2353 = vmatpush1.bf16.msra.mxu0 0
        %2354 = vmatprep.subr.bf16.mxu0 0
        %2355 = vmatpush1.bf16.msra.mxu0 0
        %2356 = vmatprep.subr.bf16.mxu0 0
        %2357 = vmatpush1.bf16.msra.mxu0 0
        %2358 = vmatprep.subr.bf16.mxu0 0
        %2359 = vmatpush1.bf16.msra.mxu0 0
        %2360 = vmatprep.subr.bf16.mxu0 0
        %2361 = vmatpush1.bf16.msra.mxu0 0
        %2362 = vmatprep.subr.bf16.mxu0 0
        %2363 = vmatpush1.bf16.msra.mxu0 0
        %2364 = vmatprep.subr.bf16.mxu0 0
        %2365 = vmatpush1.bf16.msra.mxu0 0
        %2366 = vmatprep.subr.bf16.mxu0 0
        %2367 = vmatpush1.bf16.msra.mxu0 0
        %2368 = vmatprep.mubr.bf16.mxu0 0
        %2369 = vmatmul.mubr.bf16.gmra.mrb[0].mxu0 %v2334
        %v2370 = vpop.f32.mrb[0].mxu0
        %v2371 = vadd.f32 0.0, %v2370
        %v2372 = vpop.f32.mrb[0].mxu0
        %v2373 = vpop.f32.mrb[0].mxu0
        %v2374 = vadd.f32 0.0, %v2373
        %v2375 = vpop.f32.mrb[0].mxu0
        %2376 = vdwg.mxu0
        %v2378 = vsel %vm1964, %v2244, 0
        %2380 = vmatprep.subr.bf16.mxu0 0
        %2381 = vmatpush1.bf16.msra.mxu0 %v1953
        %2382 = vmatprep.subr.bf16.mxu0 0
        %2383 = vmatpush1.bf16.msra.mxu0 0
        %2384 = vmatprep.subr.bf16.mxu0 0
        %2385 = vmatpush1.bf16.msra.mxu0 0
        %2386 = vmatprep.subr.bf16.mxu0 0
        %2387 = vmatpush1.bf16.msra.mxu0 0
        %2388 = vmatprep.subr.bf16.mxu0 0
        %2389 = vmatpush1.bf16.msra.mxu0 0
        %2390 = vmatprep.subr.bf16.mxu0 0
        %2391 = vmatpush1.bf16.msra.mxu0 0
        %2392 = vmatprep.subr.bf16.mxu0 0
        %2393 = vmatpush1.bf16.msra.mxu0 0
        %2394 = vmatprep.subr.bf16.mxu0 0
        %2395 = vmatpush1.bf16.msra.mxu0 0
        %2396 = vmatprep.subr.bf16.mxu0 0
        %2397 = vmatpush1.bf16.msra.mxu0 0
        %2398 = vmatprep.subr.bf16.mxu0 0
        %2399 = vmatpush1.bf16.msra.mxu0 0
        %2400 = vmatprep.subr.bf16.mxu0 0
        %2401 = vmatpush1.bf16.msra.mxu0 0
        %2402 = vmatprep.subr.bf16.mxu0 0
        %2403 = vmatpush1.bf16.msra.mxu0 0
        %2404 = vmatprep.subr.bf16.mxu0 0
        %2405 = vmatpush1.bf16.msra.mxu0 0
        %2406 = vmatprep.subr.bf16.mxu0 0
        %2407 = vmatpush1.bf16.msra.mxu0 0
        %2408 = vmatprep.subr.bf16.mxu0 0
        %2409 = vmatpush1.bf16.msra.mxu0 0
        %2410 = vmatprep.subr.bf16.mxu0 0
        %2411 = vmatpush1.bf16.msra.mxu0 0
        %2412 = vmatprep.mubr.bf16.mxu0 0
        %2413 = vmatmul.mubr.bf16.gmra.mrb[0].mxu0 %v2378
        %v2414 = vpop.f32.mrb[0].mxu0
        %v2415 = vadd.f32 0.0, %v2414
        %v2416 = vpop.f32.mrb[0].mxu0
        %v2417 = vpop.f32.mrb[0].mxu0
        %v2418 = vadd.f32 0.0, %v2417
        %v2419 = vpop.f32.mrb[0].mxu0
        %2420 = vdwg.mxu0
        %v2421 = vcombine.low %v2283, %v2371
        %v2422 = vcombine.high %v2283, %v2371
        %v2424 = vunpack.c.l.s4 1983009808
        %v2425 = vunpack.c.0.s8 %v2424
        %v2426 = vlaneseq
        %v2427 = vshrl.u32 %v2426, 7
        %v2428 = vsub.s32 %v2425, %v2427
        %v2429 = vrot.slane %v2421, %v2428
        %v2431 = vunpack.c.l.s4 1983009808
        %v2432 = vunpack.c.0.s8 %v2431
        %v2433 = vlaneseq
        %v2434 = vshrl.u32 %v2433, 7
        %v2435 = vsub.s32 %v2432, %v2434
        %v2436 = vrot.slane %v2422, %v2435
        %v2437 = vcombine.low %v2327, %v2415
        %v2438 = vcombine.high %v2327, %v2415
        %v2440 = vunpack.c.l.s4 1983009808
        %v2441 = vunpack.c.0.s8 %v2440
        %v2442 = vlaneseq
        %v2443 = vshrl.u32 %v2442, 7
        %v2444 = vsub.s32 %v2441, %v2443
        %v2445 = vrot.slane %v2437, %v2444
        %v2447 = vunpack.c.l.s4 1983009808
        %v2448 = vunpack.c.0.s8 %v2447
        %v2449 = vlaneseq
        %v2450 = vshrl.u32 %v2449, 7
        %v2451 = vsub.s32 %v2448, %v2450
        %v2452 = vrot.slane %v2438, %v2451
        %v2453 = vcombine.low %v2429, %v2445
        %v2454 = vcombine.high %v2429, %v2445
        %v2456 = vunpack.c.l.s4 1934713408
        %v2457 = vunpack.c.0.s8 %v2456
        %v2458 = vlaneseq
        %v2459 = vshrl.u32 %v2458, 7
        %v2460 = vsub.s32 %v2457, %v2459
        %v2461 = vrot.slane %v2453, %v2460
        %v2463 = vunpack.c.l.s4 1934713408
        %v2464 = vunpack.c.0.s8 %v2463
        %v2465 = vlaneseq
        %v2466 = vshrl.u32 %v2465, 7
        %v2467 = vsub.s32 %v2464, %v2466
        %v2468 = vrot.slane %v2454, %v2467
        %v2469 = vcombine.low %v2436, %v2452
        %v2470 = vcombine.high %v2436, %v2452
        %v2472 = vunpack.c.l.s4 1934713408
        %v2473 = vunpack.c.0.s8 %v2472
        %v2474 = vlaneseq
        %v2475 = vshrl.u32 %v2474, 7
        %v2476 = vsub.s32 %v2473, %v2475
        %v2477 = vrot.slane %v2469, %v2476
        %v2479 = vunpack.c.l.s4 1934713408
        %v2480 = vunpack.c.0.s8 %v2479
        %v2481 = vlaneseq
        %v2482 = vshrl.u32 %v2481, 7
        %v2483 = vsub.s32 %v2480, %v2482
        %v2484 = vrot.slane %v2470, %v2483
        %v2485 = vcombine.high %v2461, 0.0
        %v2486 = vcombine.high %v2468, 0.0
        %v2487 = vcombine.high %v2477, 0.0
        %v2488 = vcombine.high %v2484, 0.0
        %v2489 = vcombine.low %v2286, %v2374
        %v2490 = vcombine.high %v2286, %v2374
        %v2492 = vunpack.c.l.s4 1983009808
        %v2493 = vunpack.c.0.s8 %v2492
        %v2494 = vlaneseq
        %v2495 = vshrl.u32 %v2494, 7
        %v2496 = vsub.s32 %v2493, %v2495
        %v2497 = vrot.slane %v2489, %v2496
        %v2499 = vunpack.c.l.s4 1983009808
        %v2500 = vunpack.c.0.s8 %v2499
        %v2501 = vlaneseq
        %v2502 = vshrl.u32 %v2501, 7
        %v2503 = vsub.s32 %v2500, %v2502
        %v2504 = vrot.slane %v2490, %v2503
        %v2505 = vcombine.low %v2330, %v2418
        %v2506 = vcombine.high %v2330, %v2418
        %v2508 = vunpack.c.l.s4 1983009808
        %v2509 = vunpack.c.0.s8 %v2508
        %v2510 = vlaneseq
        %v2511 = vshrl.u32 %v2510, 7
        %v2512 = vsub.s32 %v2509, %v2511
        %v2513 = vrot.slane %v2505, %v2512
        %v2515 = vunpack.c.l.s4 1983009808
        %v2516 = vunpack.c.0.s8 %v2515
        %v2517 = vlaneseq
        %v2518 = vshrl.u32 %v2517, 7
        %v2519 = vsub.s32 %v2516, %v2518
        %v2520 = vrot.slane %v2506, %v2519
        %v2521 = vcombine.low %v2497, %v2513
        %v2522 = vcombine.high %v2497, %v2513
        %v2524 = vunpack.c.l.s4 1934713408
        %v2525 = vunpack.c.0.s8 %v2524
        %v2526 = vlaneseq
        %v2527 = vshrl.u32 %v2526, 7
        %v2528 = vsub.s32 %v2525, %v2527
        %v2529 = vrot.slane %v2521, %v2528
        %v2531 = vunpack.c.l.s4 1934713408
        %v2532 = vunpack.c.0.s8 %v2531
        %v2533 = vlaneseq
        %v2534 = vshrl.u32 %v2533, 7
        %v2535 = vsub.s32 %v2532, %v2534
        %v2536 = vrot.slane %v2522, %v2535
        %v2537 = vcombine.low %v2504, %v2520
        %v2538 = vcombine.high %v2504, %v2520
        %v2540 = vunpack.c.l.s4 1934713408
        %v2541 = vunpack.c.0.s8 %v2540
        %v2542 = vlaneseq
        %v2543 = vshrl.u32 %v2542, 7
        %v2544 = vsub.s32 %v2541, %v2543
        %v2545 = vrot.slane %v2537, %v2544
        %v2547 = vunpack.c.l.s4 1934713408
        %v2548 = vunpack.c.0.s8 %v2547
        %v2549 = vlaneseq
        %v2550 = vshrl.u32 %v2549, 7
        %v2551 = vsub.s32 %v2548, %v2550
        %v2552 = vrot.slane %v2538, %v2551
        %v2553 = vcombine.high %v2529, 0.0
        %v2554 = vcombine.high %v2536, 0.0
        %v2555 = vcombine.high %v2545, 0.0
        %v2556 = vcombine.high %v2552, 0.0
        %v2557 = vcombine.low %v2461, %v2468
        %v2559 = vunpack.c.l.s4 1983009808
        %v2560 = vunpack.c.0.s8 %v2559
        %v2561 = vlaneseq
        %v2562 = vshrl.u32 %v2561, 7
        %v2563 = vsub.s32 %v2560, %v2562
        %v2564 = vrot.slane %v2557, %v2563
        %v2565 = vcombine.low %v2485, %v2486
        %v2567 = vunpack.c.l.s4 1983009808
        %v2568 = vunpack.c.0.s8 %v2567
        %v2569 = vlaneseq
        %v2570 = vshrl.u32 %v2569, 7
        %v2571 = vsub.s32 %v2568, %v2570
        %v2572 = vrot.slane %v2565, %v2571
        %v2573 = vcombine.low %v2477, %v2484
        %v2575 = vunpack.c.l.s4 1983009808
        %v2576 = vunpack.c.0.s8 %v2575
        %v2577 = vlaneseq
        %v2578 = vshrl.u32 %v2577, 7
        %v2579 = vsub.s32 %v2576, %v2578
        %v2580 = vrot.slane %v2573, %v2579
        %v2581 = vcombine.low %v2487, %v2488
        %v2583 = vunpack.c.l.s4 1983009808
        %v2584 = vunpack.c.0.s8 %v2583
        %v2585 = vlaneseq
        %v2586 = vshrl.u32 %v2585, 7
        %v2587 = vsub.s32 %v2584, %v2586
        %v2588 = vrot.slane %v2581, %v2587
        %v2589 = vcombine.low %v2564, %v2572
        %v2590 = vcombine.high %v2564, %v2572
        %v2592 = vunpack.c.l.s4 1934713408
        %v2593 = vunpack.c.0.s8 %v2592
        %v2594 = vlaneseq
        %v2595 = vshrl.u32 %v2594, 7
        %v2596 = vsub.s32 %v2593, %v2595
        %v2597 = vrot.slane %v2589, %v2596
        %v2599 = vunpack.c.l.s4 1934713408
        %v2600 = vunpack.c.0.s8 %v2599
        %v2601 = vlaneseq
        %v2602 = vshrl.u32 %v2601, 7
        %v2603 = vsub.s32 %v2600, %v2602
        %v2604 = vrot.slane %v2590, %v2603
        %v2605 = vcombine.low %v2580, %v2588
        %v2606 = vcombine.high %v2580, %v2588
        %v2608 = vunpack.c.l.s4 1934713408
        %v2609 = vunpack.c.0.s8 %v2608
        %v2610 = vlaneseq
        %v2611 = vshrl.u32 %v2610, 7
        %v2612 = vsub.s32 %v2609, %v2611
        %v2613 = vrot.slane %v2605, %v2612
        %v2615 = vunpack.c.l.s4 1934713408
        %v2616 = vunpack.c.0.s8 %v2615
        %v2617 = vlaneseq
        %v2618 = vshrl.u32 %v2617, 7
        %v2619 = vsub.s32 %v2616, %v2618
        %v2620 = vrot.slane %v2606, %v2619
        %v2621 = vcombine.low %v2597, %v2613
        %v2622 = vcombine.high %v2597, %v2613
        %v2623 = vcombine.low %v2604, %v2620
        %v2624 = vcombine.high %v2604, %v2620
        %v2625 = vcombine.low %v2529, %v2536
        %v2627 = vunpack.c.l.s4 1983009808
        %v2628 = vunpack.c.0.s8 %v2627
        %v2629 = vlaneseq
        %v2630 = vshrl.u32 %v2629, 7
        %v2631 = vsub.s32 %v2628, %v2630
        %v2632 = vrot.slane %v2625, %v2631
        %v2633 = vcombine.low %v2553, %v2554
        %v2635 = vunpack.c.l.s4 1983009808
        %v2636 = vunpack.c.0.s8 %v2635
        %v2637 = vlaneseq
        %v2638 = vshrl.u32 %v2637, 7
        %v2639 = vsub.s32 %v2636, %v2638
        %v2640 = vrot.slane %v2633, %v2639
        %v2641 = vcombine.low %v2545, %v2552
        %v2643 = vunpack.c.l.s4 1983009808
        %v2644 = vunpack.c.0.s8 %v2643
        %v2645 = vlaneseq
        %v2646 = vshrl.u32 %v2645, 7
        %v2647 = vsub.s32 %v2644, %v2646
        %v2648 = vrot.slane %v2641, %v2647
        %v2649 = vcombine.low %v2555, %v2556
        %v2651 = vunpack.c.l.s4 1983009808
        %v2652 = vunpack.c.0.s8 %v2651
        %v2653 = vlaneseq
        %v2654 = vshrl.u32 %v2653, 7
        %v2655 = vsub.s32 %v2652, %v2654
        %v2656 = vrot.slane %v2649, %v2655
        %v2657 = vcombine.low %v2632, %v2640
        %v2658 = vcombine.high %v2632, %v2640
        %v2660 = vunpack.c.l.s4 1934713408
        %v2661 = vunpack.c.0.s8 %v2660
        %v2662 = vlaneseq
        %v2663 = vshrl.u32 %v2662, 7
        %v2664 = vsub.s32 %v2661, %v2663
        %v2665 = vrot.slane %v2657, %v2664
        %v2667 = vunpack.c.l.s4 1934713408
        %v2668 = vunpack.c.0.s8 %v2667
        %v2669 = vlaneseq
        %v2670 = vshrl.u32 %v2669, 7
        %v2671 = vsub.s32 %v2668, %v2670
        %v2672 = vrot.slane %v2658, %v2671
        %v2673 = vcombine.low %v2648, %v2656
        %v2674 = vcombine.high %v2648, %v2656
        %v2676 = vunpack.c.l.s4 1934713408
        %v2677 = vunpack.c.0.s8 %v2676
        %v2678 = vlaneseq
        %v2679 = vshrl.u32 %v2678, 7
        %v2680 = vsub.s32 %v2677, %v2679
        %v2681 = vrot.slane %v2673, %v2680
        %v2683 = vunpack.c.l.s4 1934713408
        %v2684 = vunpack.c.0.s8 %v2683
        %v2685 = vlaneseq
        %v2686 = vshrl.u32 %v2685, 7
        %v2687 = vsub.s32 %v2684, %v2686
        %v2688 = vrot.slane %v2674, %v2687
        %v2689 = vcombine.low %v2665, %v2681
        %v2690 = vcombine.high %v2665, %v2681
        %v2691 = vcombine.low %v2672, %v2688
        %v2692 = vcombine.high %v2672, %v2688
        %2695 = vrot.lane.b32.xlu0 %v2622, 16
        %v2696 = vpop.permute.xlu0 %2695
        %2697 = vrot.lane.b32.xlu0 %v2690, 16
        %v2698 = vpop.permute.xlu0 %2697
        %2703 = vrot.lane.b32.xlu0 %v2623, 32
        %v2704 = vpop.permute.xlu0 %2703
        %2705 = vrot.lane.b32.xlu0 %v2691, 32
        %v2706 = vpop.permute.xlu0 %2705
        %2711 = vrot.lane.b32.xlu0 %v2624, 48
        %v2712 = vpop.permute.xlu0 %2711
        %2713 = vrot.lane.b32.xlu0 %v2692, 48
        %v2714 = vpop.permute.xlu0 %2713
        %v2717 = vsel %vm1964, %v2621, %v2696
        %v2718 = vsel %vm1964, %v2689, %v2698
        %vm2719 = vcmask 261120
        %v2720 = vsel %vm2719, %v2717, %v2704
        %v2721 = vsel %vm2719, %v2718, %v2706
        %vm2722 = vcmask 392192
        %v2723 = vsel %vm2722, %v2720, %v2712
        %v2724 = vsel %vm2722, %v2721, %v2714
        %v2725 = vpack.c.bf16 %v2724, %v2723
        %v2726 = vld [vmem:[%s804] sm:$0xf]
        %v2727 = vld [vmem:[%s804 + $0x4] sm:$0xf]
        %v2728 = vld [vmem:[%s804 + $0x8] sm:$0xf]
        %v2729 = vld [vmem:[%s804 + $0xc] sm:$0xf]
        %v2730 = vld [vmem:[%s804 + $0x10] sm:$0xf]
        %v2731 = vld [vmem:[%s804 + $0x14] sm:$0xf]
        %v2732 = vld [vmem:[%s804 + $0x18] sm:$0xf]
        %v2733 = vld [vmem:[%s804 + $0x1c] sm:$0xf]
        %v2734 = vld [vmem:[%s812] sm:$0x1]
        %v2736 = vlaneseq
        %v2737 = vshrl.u32 %v2736, 7
        %v2738 = vsub.s32 0, %v2737
        %v2739 = vrot.slane %v2734, %v2738
        %v2749 = vunpack.c.l.b16 %v2726
        %v2750 = vunpack.c.l.b16 %v2727
        %v2751 = vunpack.c.l.b16 %v2728
        %v2752 = vunpack.c.l.b16 %v2729
        %v2753 = vunpack.c.l.b16 %v2730
        %v2754 = vunpack.c.l.b16 %v2731
        %v2755 = vunpack.c.l.b16 %v2732
        %v2756 = vunpack.c.l.b16 %v2733
        %v2757 = vpack.c.b16 %v2750, %v2749
        %v2758 = vpack.c.b16 %v2752, %v2751
        %v2759 = vpack.c.b16 %v2754, %v2753
        %v2760 = vpack.c.b16 %v2756, %v2755
        %v2766 = vsel %vm986, %v2725, 0
        %2768 = vmatprep.subr.bf16.mxu0 0
        %2769 = vmatpush1.bf16.msra.mxu0 %v2757
        %2770 = vmatprep.subr.bf16.mxu0 0
        %2771 = vmatpush1.bf16.msra.mxu0 %v2758
        %2772 = vmatprep.subr.bf16.mxu0 0
        %2773 = vmatpush1.bf16.msra.mxu0 %v2759
        %2774 = vmatprep.subr.bf16.mxu0 0
        %2775 = vmatpush1.bf16.msra.mxu0 %v2760
        %2776 = vmatprep.subr.bf16.mxu0 0
        %2777 = vmatpush1.bf16.msra.mxu0 0
        %2778 = vmatprep.subr.bf16.mxu0 0
        %2779 = vmatpush1.bf16.msra.mxu0 0
        %2780 = vmatprep.subr.bf16.mxu0 0
        %2781 = vmatpush1.bf16.msra.mxu0 0
        %2782 = vmatprep.subr.bf16.mxu0 0
        %2783 = vmatpush1.bf16.msra.mxu0 0
        %2784 = vmatprep.subr.bf16.mxu0 0
        %2785 = vmatpush1.bf16.msra.mxu0 0
        %2786 = vmatprep.subr.bf16.mxu0 0
        %2787 = vmatpush1.bf16.msra.mxu0 0
        %2788 = vmatprep.subr.bf16.mxu0 0
        %2789 = vmatpush1.bf16.msra.mxu0 0
        %2790 = vmatprep.subr.bf16.mxu0 0
        %2791 = vmatpush1.bf16.msra.mxu0 0
        %2792 = vmatprep.subr.bf16.mxu0 0
        %2793 = vmatpush1.bf16.msra.mxu0 0
        %2794 = vmatprep.subr.bf16.mxu0 0
        %2795 = vmatpush1.bf16.msra.mxu0 0
        %2796 = vmatprep.subr.bf16.mxu0 0
        %2797 = vmatpush1.bf16.msra.mxu0 0
        %2798 = vmatprep.subr.bf16.mxu0 0
        %2799 = vmatpush1.bf16.msra.mxu0 0
        %2800 = vmatprep.mubr.bf16.mxu0 0
        %2801 = vmatmul.mubr.bf16.gmra.mrb[0].mxu0 %v2766
        %v2802 = vpop.f32.mrb[0].mxu0
        %v2803 = vadd.f32 %v2739, %v2802
        %v2804 = vpop.f32.mrb[0].mxu0
        %v2805 = vpop.f32.mrb[0].mxu0
        %v2806 = vadd.f32 %v2739, %v2805
        %v2807 = vpop.f32.mrb[0].mxu0
        %2808 = vdwg.mxu0
        %v2809 = vadd.f32 %v2803, %v982
        %v2810 = vadd.f32 %v2806, %v983
        %v2811 = vld [vmem:[%s820] sm:$0x1]
        %v2812 = vld [vmem:[%s828] sm:$0x1]
        %v2813 = vsel %vm986, %v2809, 0.0
        %2814 = vadd.xlane.f32.xlu0 %v2813
        %v2815 = vpop.xlane.xlu0 %2814
        %v2816 = vsel %vm986, %v2810, 0.0
        %2817 = vadd.xlane.f32.xlu0 %v2816
        %v2818 = vpop.xlane.xlu0 %2817
        %v2819 = vmul.f32 %v2815, %v993
        %v2820 = vmul.f32 %v2818, %v993
        %v2821 = vmul.f32 %v2809, %v2809
        %v2822 = vmul.f32 %v2810, %v2810
        %v2823 = vsel %vm986, %v2821, 0.0
        %2824 = vadd.xlane.f32.xlu0 %v2823
        %v2825 = vpop.xlane.xlu0 %2824
        %v2826 = vsel %vm986, %v2822, 0.0
        %2827 = vadd.xlane.f32.xlu0 %v2826
        %v2828 = vpop.xlane.xlu0 %2827
        %v2829 = vmul.f32 %v2825, %v993
        %v2830 = vmul.f32 %v2828, %v993
        %v2831 = vmul.f32 %v2819, %v2819
        %v2832 = vmul.f32 %v2820, %v2820
        %v2833 = vsub.f32 %v2829, %v2831
        %v2834 = vsub.f32 %v2830, %v2832
        %v2835 = vadd.f32 %v2833, 1e-05
        %v2836 = vadd.f32 %v2834, 1e-05
        %v2837 = vrsqrt.pop %v2835
        %v2838 = vrsqrt.pop %v2836
        %v2839 = vsub.f32 %v2809, %v2819
        %v2840 = vsub.f32 %v2810, %v2820
        %v2841 = vmul.f32 %v2839, %v2837
        %v2842 = vmul.f32 %v2840, %v2838
        %v2844 = vlaneseq
        %v2845 = vshrl.u32 %v2844, 7
        %v2846 = vsub.s32 0, %v2845
        %v2847 = vrot.slane %v2811, %v2846
        %v2849 = vmul.f32 %v2841, %v2847
        %v2850 = vmul.f32 %v2842, %v2847
        %v2852 = vlaneseq
        %v2853 = vshrl.u32 %v2852, 7
        %v2854 = vsub.s32 0, %v2853
        %v2855 = vrot.slane %v2812, %v2854
        %v2857 = vadd.f32 %v2849, %v2855
        %v2858 = vadd.f32 %v2850, %v2855
        %v2859 = vpack.c.bf16 %v2858, %v2857
        %v2860 = vld [vmem:[%s837] sm:$0xff]
        %v2861 = vld [vmem:[%s837 + $0x8] sm:$0xff]
        %v2862 = vld [vmem:[%s837 + $0x10] sm:$0xff]
        %v2863 = vld [vmem:[%s837 + $0x18] sm:$0xff]
        %v2864 = vld [vmem:[%s837 + $0x20] sm:$0xff]
        %v2865 = vld [vmem:[%s837 + $0x28] sm:$0xff]
        %v2866 = vld [vmem:[%s837 + $0x30] sm:$0xff]
        %v2867 = vld [vmem:[%s837 + $0x38] sm:$0xff]
        %v2868 = vld [vmem:[%s846] sm:$0x3]
        %v2870 = vlaneseq
        %v2871 = vshrl.u32 %v2870, 7
        %v2872 = vsub.s32 0, %v2871
        %v2873 = vrot.slane %v2868, %v2872
        %v2874 = vlaneseq
        %v2875 = vshrl.u32 %v2874, 7
        %v2876 = vsub.s32 1, %v2875
        %v2877 = vrot.slane %v2868, %v2876
        %v2888 = vunpack.c.l.b16 %v2860
        %v2889 = vunpack.c.h.b16 %v2860
        %v2890 = vunpack.c.l.b16 %v2861
        %v2891 = vunpack.c.h.b16 %v2861
        %v2892 = vunpack.c.l.b16 %v2862
        %v2893 = vunpack.c.h.b16 %v2862
        %v2894 = vunpack.c.l.b16 %v2863
        %v2895 = vunpack.c.h.b16 %v2863
        %v2896 = vunpack.c.l.b16 %v2864
        %v2897 = vunpack.c.h.b16 %v2864
        %v2898 = vunpack.c.l.b16 %v2865
        %v2899 = vunpack.c.h.b16 %v2865
        %v2900 = vunpack.c.l.b16 %v2866
        %v2901 = vunpack.c.h.b16 %v2866
        %v2902 = vunpack.c.l.b16 %v2867
        %v2903 = vunpack.c.h.b16 %v2867
        %v2904 = vpack.c.b16 %v2890, %v2888
        %v2905 = vpack.c.b16 %v2891, %v2889
        %v2906 = vpack.c.b16 %v2894, %v2892
        %v2907 = vpack.c.b16 %v2895, %v2893
        %v2908 = vpack.c.b16 %v2898, %v2896
        %v2909 = vpack.c.b16 %v2899, %v2897
        %v2910 = vpack.c.b16 %v2902, %v2900
        %v2911 = vpack.c.b16 %v2903, %v2901
        %v2921 = vsel %vm986, %v2859, 0
        %2923 = vmatprep.subr.bf16.mxu0 %v2905
        %2924 = vmatpush1.bf16.msra.mxu0 %v2904
        %2925 = vmatprep.subr.bf16.mxu0 %v2907
        %2926 = vmatpush1.bf16.msra.mxu0 %v2906
        %2927 = vmatprep.subr.bf16.mxu0 %v2909
        %2928 = vmatpush1.bf16.msra.mxu0 %v2908
        %2929 = vmatprep.subr.bf16.mxu0 %v2911
        %2930 = vmatpush1.bf16.msra.mxu0 %v2910
        %2931 = vmatprep.subr.bf16.mxu0 0
        %2932 = vmatpush1.bf16.msra.mxu0 0
        %2933 = vmatprep.subr.bf16.mxu0 0
        %2934 = vmatpush1.bf16.msra.mxu0 0
        %2935 = vmatprep.subr.bf16.mxu0 0
        %2936 = vmatpush1.bf16.msra.mxu0 0
        %2937 = vmatprep.subr.bf16.mxu0 0
        %2938 = vmatpush1.bf16.msra.mxu0 0
        %2939 = vmatprep.subr.bf16.mxu0 0
        %2940 = vmatpush1.bf16.msra.mxu0 0
        %2941 = vmatprep.subr.bf16.mxu0 0
        %2942 = vmatpush1.bf16.msra.mxu0 0
        %2943 = vmatprep.subr.bf16.mxu0 0
        %2944 = vmatpush1.bf16.msra.mxu0 0
        %2945 = vmatprep.subr.bf16.mxu0 0
        %2946 = vmatpush1.bf16.msra.mxu0 0
        %2947 = vmatprep.subr.bf16.mxu0 0
        %2948 = vmatpush1.bf16.msra.mxu0 0
        %2949 = vmatprep.subr.bf16.mxu0 0
        %2950 = vmatpush1.bf16.msra.mxu0 0
        %2951 = vmatprep.subr.bf16.mxu0 0
        %2952 = vmatpush1.bf16.msra.mxu0 0
        %2953 = vmatprep.subr.bf16.mxu0 0
        %2954 = vmatpush1.bf16.msra.mxu0 0
        %2955 = vmatprep.mubr.bf16.mxu0 0
        %2956 = vmatmul.mubr.bf16.gmra.mrb[0].mxu0 %v2921
        %v2957 = vpop.f32.mrb[0].mxu0
        %v2958 = vadd.f32 %v2873, %v2957
        %v2959 = vpop.f32.mrb[0].mxu0
        %v2960 = vadd.f32 %v2877, %v2959
        %v2961 = vpop.f32.mrb[0].mxu0
        %v2962 = vadd.f32 %v2873, %v2961
        %v2963 = vpop.f32.mrb[0].mxu0
        %v2964 = vadd.f32 %v2877, %v2963
        %2965 = vdwg.mxu0
        %v2966 = vmul.f32 %v2958, 1.702
        %v2967 = vmul.f32 %v2960, 1.702
        %v2968 = vmul.f32 %v2962, 1.702
        %v2969 = vmul.f32 %v2964, 1.702
        %v2970 = vxor.u32 %v2966, 2147483648
        %v2971 = vxor.u32 %v2967, 2147483648
        %v2972 = vxor.u32 %v2968, 2147483648
        %v2973 = vxor.u32 %v2969, 2147483648
        %v2974 = vmul.f32 %v2970, 1.442695
        %v2975 = vpow.pop %v2974
        %v2976 = vmul.f32 %v2971, 1.442695
        %v2977 = vpow.pop %v2976
        %v2978 = vmul.f32 %v2972, 1.442695
        %v2979 = vpow.pop %v2978
        %v2980 = vmul.f32 %v2973, 1.442695
        %v2981 = vpow.pop %v2980
        %v2982 = vadd.f32 %v2975, 1.0
        %v2983 = vadd.f32 %v2977, 1.0
        %v2984 = vadd.f32 %v2979, 1.0
        %v2985 = vadd.f32 %v2981, 1.0
        %v2986 = vrcp.pop %v2982
        %v2987 = vmul.f32 1.0, %v2986
        %v2988 = vrcp.pop %v2983
        %v2989 = vmul.f32 1.0, %v2988
        %v2990 = vrcp.pop %v2984
        %v2991 = vmul.f32 1.0, %v2990
        %v2992 = vrcp.pop %v2985
        %v2993 = vmul.f32 1.0, %v2992
        %v2994 = vmul.f32 %v2958, %v2987
        %v2995 = vmul.f32 %v2960, %v2989
        %v2996 = vmul.f32 %v2962, %v2991
        %v2997 = vmul.f32 %v2964, %v2993
        %v2998 = vpack.c.bf16 %v2996, %v2994
        %v2999 = vpack.c.bf16 %v2997, %v2995
        %v3000 = vld [vmem:[%s855] sm:$0xf]
        %v3001 = vld [vmem:[%s855 + $0x4] sm:$0xf]
        %v3002 = vld [vmem:[%s855 + $0x8] sm:$0xf]
        %v3003 = vld [vmem:[%s855 + $0xc] sm:$0xf]
        %v3004 = vld [vmem:[%s855 + $0x10] sm:$0xf]
        %v3005 = vld [vmem:[%s855 + $0x14] sm:$0xf]
        %v3006 = vld [vmem:[%s855 + $0x18] sm:$0xf]
        %v3007 = vld [vmem:[%s855 + $0x1c] sm:$0xf]
        %v3008 = vld [vmem:[%s855 + $0x20] sm:$0xf]
        %v3009 = vld [vmem:[%s855 + $0x24] sm:$0xf]
        %v3010 = vld [vmem:[%s855 + $0x28] sm:$0xf]
        %v3011 = vld [vmem:[%s855 + $0x2c] sm:$0xf]
        %v3012 = vld [vmem:[%s855 + $0x30] sm:$0xf]
        %v3013 = vld [vmem:[%s855 + $0x34] sm:$0xf]
        %v3014 = vld [vmem:[%s855 + $0x38] sm:$0xf]
        %v3015 = vld [vmem:[%s855 + $0x3c] sm:$0xf]
        %v3016 = vld [vmem:[%s855 + $0x40] sm:$0xf]
        %v3017 = vld [vmem:[%s855 + $0x44] sm:$0xf]
        %v3018 = vld [vmem:[%s855 + $0x48] sm:$0xf]
        %v3019 = vld [vmem:[%s855 + $0x4c] sm:$0xf]
        %v3020 = vld [vmem:[%s855 + $0x50] sm:$0xf]
        %v3021 = vld [vmem:[%s855 + $0x54] sm:$0xf]
        %v3022 = vld [vmem:[%s855 + $0x58] sm:$0xf]
        %v3023 = vld [vmem:[%s855 + $0x5c] sm:$0xf]
        %v3024 = vld [vmem:[%s855 + $0x60] sm:$0xf]
        %v3025 = vld [vmem:[%s855 + $0x64] sm:$0xf]
        %v3026 = vld [vmem:[%s855 + $0x68] sm:$0xf]
        %v3027 = vld [vmem:[%s855 + $0x6c] sm:$0xf]
        %v3028 = vld [vmem:[%s855 + $0x70] sm:$0xf]
        %v3029 = vld [vmem:[%s855 + $0x74] sm:$0xf]
        %v3030 = vld [vmem:[%s855 + $0x78] sm:$0xf]
        %v3031 = vld [vmem:[%s855 + $0x7c] sm:$0xf]
        %v3032 = vld [vmem:[%s863] sm:$0x1]
        %v3034 = vlaneseq
        %v3035 = vshrl.u32 %v3034, 7
        %v3036 = vsub.s32 0, %v3035
        %v3037 = vrot.slane %v3032, %v3036
        %v3071 = vunpack.c.l.b16 %v3000
        %v3072 = vunpack.c.l.b16 %v3001
        %v3073 = vunpack.c.l.b16 %v3002
        %v3074 = vunpack.c.l.b16 %v3003
        %v3075 = vunpack.c.l.b16 %v3004
        %v3076 = vunpack.c.l.b16 %v3005
        %v3077 = vunpack.c.l.b16 %v3006
        %v3078 = vunpack.c.l.b16 %v3007
        %v3079 = vunpack.c.l.b16 %v3008
        %v3080 = vunpack.c.l.b16 %v3009
        %v3081 = vunpack.c.l.b16 %v3010
        %v3082 = vunpack.c.l.b16 %v3011
        %v3083 = vunpack.c.l.b16 %v3012
        %v3084 = vunpack.c.l.b16 %v3013
        %v3085 = vunpack.c.l.b16 %v3014
        %v3086 = vunpack.c.l.b16 %v3015
        %v3087 = vunpack.c.l.b16 %v3016
        %v3088 = vunpack.c.l.b16 %v3017
        %v3089 = vunpack.c.l.b16 %v3018
        %v3090 = vunpack.c.l.b16 %v3019
        %v3091 = vunpack.c.l.b16 %v3020
        %v3092 = vunpack.c.l.b16 %v3021
        %v3093 = vunpack.c.l.b16 %v3022
        %v3094 = vunpack.c.l.b16 %v3023
        %v3095 = vunpack.c.l.b16 %v3024
        %v3096 = vunpack.c.l.b16 %v3025
        %v3097 = vunpack.c.l.b16 %v3026
        %v3098 = vunpack.c.l.b16 %v3027
        %v3099 = vunpack.c.l.b16 %v3028
        %v3100 = vunpack.c.l.b16 %v3029
        %v3101 = vunpack.c.l.b16 %v3030
        %v3102 = vunpack.c.l.b16 %v3031
        %v3103 = vpack.c.b16 %v3072, %v3071
        %v3104 = vpack.c.b16 %v3074, %v3073
        %v3105 = vpack.c.b16 %v3076, %v3075
        %v3106 = vpack.c.b16 %v3078, %v3077
        %v3107 = vpack.c.b16 %v3080, %v3079
        %v3108 = vpack.c.b16 %v3082, %v3081
        %v3109 = vpack.c.b16 %v3084, %v3083
        %v3110 = vpack.c.b16 %v3086, %v3085
        %v3111 = vpack.c.b16 %v3088, %v3087
        %v3112 = vpack.c.b16 %v3090, %v3089
        %v3113 = vpack.c.b16 %v3092, %v3091
        %v3114 = vpack.c.b16 %v3094, %v3093
        %v3115 = vpack.c.b16 %v3096, %v3095
        %v3116 = vpack.c.b16 %v3098, %v3097
        %v3117 = vpack.c.b16 %v3100, %v3099
        %v3118 = vpack.c.b16 %v3102, %v3101
        %3135 = vmatprep.subr.bf16.mxu0 0
        %3136 = vmatpush1.bf16.msra.mxu0 %v3103
        %3137 = vmatprep.subr.bf16.mxu0 0
        %3138 = vmatpush1.bf16.msra.mxu0 %v3104
        %3139 = vmatprep.subr.bf16.mxu0 0
        %3140 = vmatpush1.bf16.msra.mxu0 %v3105
        %3141 = vmatprep.subr.bf16.mxu0 0
        %3142 = vmatpush1.bf16.msra.mxu0 %v3106
        %3143 = vmatprep.subr.bf16.mxu0 0
        %3144 = vmatpush1.bf16.msra.mxu0 %v3107
        %3145 = vmatprep.subr.bf16.mxu0 0
        %3146 = vmatpush1.bf16.msra.mxu0 %v3108
        %3147 = vmatprep.subr.bf16.mxu0 0
        %3148 = vmatpush1.bf16.msra.mxu0 %v3109
        %3149 = vmatprep.subr.bf16.mxu0 0
        %3150 = vmatpush1.bf16.msra.mxu0 %v3110
        %3151 = vmatprep.subr.bf16.mxu0 0
        %3152 = vmatpush1.bf16.msra.mxu0 %v3111
        %3153 = vmatprep.subr.bf16.mxu0 0
        %3154 = vmatpush1.bf16.msra.mxu0 %v3112
        %3155 = vmatprep.subr.bf16.mxu0 0
        %3156 = vmatpush1.bf16.msra.mxu0 %v3113
        %3157 = vmatprep.subr.bf16.mxu0 0
        %3158 = vmatpush1.bf16.msra.mxu0 %v3114
        %3159 = vmatprep.subr.bf16.mxu0 0
        %3160 = vmatpush1.bf16.msra.mxu0 %v3115
        %3161 = vmatprep.subr.bf16.mxu0 0
        %3162 = vmatpush1.bf16.msra.mxu0 %v3116
        %3163 = vmatprep.subr.bf16.mxu0 0
        %3164 = vmatpush1.bf16.msra.mxu0 %v3117
        %3165 = vmatprep.subr.bf16.mxu0 0
        %3166 = vmatpush1.bf16.msra.mxu0 %v3118
        %3167 = vmatprep.mubr.bf16.mxu0 %v2999
        %3168 = vmatmul.mubr.bf16.gmra.mrb[0].mxu0 %v2998
        %v3169 = vpop.f32.mrb[0].mxu0
        %v3170 = vadd.f32 %v3037, %v3169
        %v3171 = vpop.f32.mrb[0].mxu0
        %v3172 = vpop.f32.mrb[0].mxu0
        %v3173 = vadd.f32 %v3037, %v3172
        %v3174 = vpop.f32.mrb[0].mxu0
        %3175 = vdwg.mxu0
        %v3176 = vadd.f32 %v2809, %v3170
        %v3177 = vadd.f32 %v2810, %v3173
        %p3178 = scmp.lt.s32.totalorder %s56, 1
        // Predicated region
        $region145: #{clip_forward.1} parent=79 // pred_check
          %p3179 = pneg %p3178
        $region146: #{clip_forward.1} parent=79 // pred_check_branch
          %3181 = sbr.rel (%p3179) target = $region148
        $region147: #{clip_forward.1} parent=79 // pred_region
          %3182 = vst.msk [vmem:[%s971] sm:$0xff] %vm986, %v3176
          %3183 = vst.msk [vmem:[%s971 + $0x8] sm:$0xff] %vm986, %v3177
        $region148: #{clip_forward.1} parent=79 // pred_fallthru
          _
        %p3184 = scmp.eq.s32.totalorder %s56, 1
        // Predicated region
        $region149: #{clip_forward.1} parent=79 // pred_check
          %p3185 = pneg %p3184
        $region150: #{clip_forward.1} parent=79 // pred_check_branch
          %3187 = sbr.rel (%p3185) target = $region152
        $region151: #{clip_forward.1} parent=79 // pred_region
          %v3188 = vld [vmem:[#allocation23] sm:$0x1]
          %v3189 = vld [vmem:[#allocation25] sm:$0x1]
          %v3190 = vsel %vm986, %v3176, 0.0
          %3191 = vadd.xlane.f32.xlu0 %v3190
          %v3192 = vpop.xlane.xlu0 %3191
          %v3193 = vsel %vm986, %v3177, 0.0
          %3194 = vadd.xlane.f32.xlu0 %v3193
          %v3195 = vpop.xlane.xlu0 %3194
          %v3196 = vmul.f32 %v3192, %v993
          %v3197 = vmul.f32 %v3195, %v993
          %v3198 = vmul.f32 %v3176, %v3176
          %v3199 = vmul.f32 %v3177, %v3177
          %v3200 = vsel %vm986, %v3198, 0.0
          %3201 = vadd.xlane.f32.xlu0 %v3200
          %v3202 = vpop.xlane.xlu0 %3201
          %v3203 = vsel %vm986, %v3199, 0.0
          %3204 = vadd.xlane.f32.xlu0 %v3203
          %v3205 = vpop.xlane.xlu0 %3204
          %v3206 = vmul.f32 %v3202, %v993
          %v3207 = vmul.f32 %v3205, %v993
          %v3208 = vmul.f32 %v3196, %v3196
          %v3209 = vmul.f32 %v3197, %v3197
          %v3210 = vsub.f32 %v3206, %v3208
          %v3211 = vsub.f32 %v3207, %v3209
          %v3212 = vadd.f32 %v3210, 1e-05
          %v3213 = vadd.f32 %v3211, 1e-05
          %v3214 = vrsqrt.pop %v3212
          %v3215 = vrsqrt.pop %v3213
          %v3216 = vsub.f32 %v3176, %v3196
          %v3217 = vsub.f32 %v3177, %v3197
          %v3218 = vmul.f32 %v3216, %v3214
          %v3219 = vmul.f32 %v3217, %v3215
          %v3221 = vlaneseq
          %v3222 = vshrl.u32 %v3221, 7
          %v3223 = vsub.s32 0, %v3222
          %v3224 = vrot.slane %v3188, %v3223
          %v3226 = vmul.f32 %v3218, %v3224
          %v3227 = vmul.f32 %v3219, %v3224
          %v3229 = vlaneseq
          %v3230 = vshrl.u32 %v3229, 7
          %v3231 = vsub.s32 0, %v3230
          %v3232 = vrot.slane %v3189, %v3231
          %v3234 = vadd.f32 %v3226, %v3232
          %v3235 = vadd.f32 %v3227, %v3232
          %3236 = vst.msk [vmem:[%s971] sm:$0xff] %vm986, %v3234
          %3237 = vst.msk [vmem:[%s971 + $0x8] sm:$0xff] %vm986, %v3235
        $region152: #{clip_forward.1} parent=79 // pred_fallthru
          _
        %s3238 = sand.u32 %s451, 1
        %s3239 = scalar_lea.sflag [#allocation4], %s3238
        %s3240 = sand.u32 %s451, 1
        %s3241 = smul.addr %s3240, 16
        %s3242 = scalar_lea.vmem [#allocation26], %s3241
        // Predicated region
        $region153: #{clip_forward.1} parent=79 // pred_check
          %p3243 = pneg %p461
        $region154: #{clip_forward.1} parent=79 // pred_check_branch
          %3245 = sbr.rel (%p3243) target = $region156
        $region155: #{clip_forward.1} parent=79 // pred_region
          %s3247 = ssub.s32 256, 256
          %3248 = vsyncadd %s3239, %s3247
          %s3249 = smul.addr %s55, 2
          %s3250 = smul.addr %s3249, 128
          %s3251 = scalar_lea.hbm %s15, %s3250
          %s3252 = sshll.u32 %s3242, 4
          %s3253 = int_to_ptr.vmem [resolvable:$true] %s3252
          %3258 = dma.vmem_to_hbm [thread:$0]  %s3253, 256, %s3251, %s3239, 128, 128, 8
        $region156: #{clip_forward.1} parent=79 // pred_fallthru
          _
      $region80: #{clip_forward.1} parent=5 // pred_fallthru
        _
      %p3259 = scmp.le.s32.totalorder 2, %s46
      // Predicated region
      $region157: #{clip_forward.1} parent=5 // pred_check
        %p3260 = pneg %p3259
      $region158: #{clip_forward.1} parent=5 // pred_check_branch
        %3262 = sbr.rel (%p3260) target = $region160
      $region159: #{clip_forward.1} parent=5 // pred_region
        %s3263 = ssub.s32 %s46, 2
        // Predicated region
        $region161: #{clip_forward.1} parent=159 // pred_check
          %p3264 = pneg %p467
        $region162: #{clip_forward.1} parent=159 // pred_check_branch
          %3266 = sbr.rel (%p3264) target = $region164
        $region163: #{clip_forward.1} parent=159 // pred_region
          %s3267 = sand.u32 %s452, 1
          %s3268 = scalar_lea.sflag [#allocation4], %s3267
          %s3269 = sand.u32 %s452, 1
          %s3270 = smul.addr %s3269, 16
          %s3271 = scalar_lea.vmem [#allocation26], %s3270
          %3272 = dma.done %s3268, 256
        $region164: #{clip_forward.1} parent=159 // pred_fallthru
          _
      $region160: #{clip_forward.1} parent=5 // pred_fallthru
        _
    $region6: #{clip_forward.1} parent=1 // loop_footer
      %s50 = sadd.s32 1, %s46
    $region7: #{clip_forward.1} parent=1 // loop_footer_branch
      %45 = sbr.rel target = $region3
    $region8: #{clip_forward.1} parent=1 // loop_exit
      _
    %3273 = vsyncpa [#allocation3], 1
    %s3274 = scalar_lea.sflag [#allocation3], 1
    %3275 = vsyncpa %s3274, 1
    %3276 = vsyncpa [#allocation6], 1
    %s3277 = scalar_lea.sflag [#allocation6], 1
    %3278 = vsyncpa %s3277, 1
    %3279 = vsyncpa [#allocation9], 1
    %s3280 = scalar_lea.sflag [#allocation9], 1
    %3281 = vsyncpa %s3280, 1
    %3282 = vsyncpa [#allocation12], 1
    %s3283 = scalar_lea.sflag [#allocation12], 1
    %3284 = vsyncpa %s3283, 1
    %3285 = vsyncpa [#allocation15], 1
    %s3286 = scalar_lea.sflag [#allocation15], 1
    %3287 = vsyncpa %s3286, 1
    %3288 = vsyncpa [#allocation18], 1
    %s3289 = scalar_lea.sflag [#allocation18], 1
    %3290 = vsyncpa %s3289, 1
    %3291 = vsyncpa [#allocation21], 1
    %s3292 = scalar_lea.sflag [#allocation21], 1
    %3293 = vsyncpa %s3292, 1
    %3294 = vsyncpa [#allocation24], 1
    %3295 = vsyncpa [#allocation4], 1
    %s3296 = scalar_lea.sflag [#allocation4], 1
    %3297 = vsyncpa %s3296, 1

</llo_original>
